<compile_context>
chip_gen: v6e
topology: v6e:2x2x1
jax: 0.10.0
libtpu: 0.0.40
codegen_flags: <defaults>
</compile_context>

<pallas_src>
import functools

import jax
import jax.numpy as jnp
from jax.experimental import pallas as pl
from jax.experimental.pallas import tpu as pltpu


def _round_up(x, m):
    return (x + m - 1) // m * m


# Default tile sizes.  256x256 fits comfortably in the scoped VMEM of v5e
# (16 MiB), v6e (32 MiB) and v7x (32/64 MiB) with double buffering even at the
# largest single-K tile used here (K<=1536 bf16 ~= 1.5 MiB per input buffer).
# Per-generation tuning: v6e can raise TM to 512-1024 (with vmem_limit_bytes),
# v5e prefers 128-multiples (4x128^2 MXU), v7x should stay <=256-512 (64 MiB).
TM = 256
TN = 256


def _choose_k_tiling(K):
    """Return (Kp, tk).  tk divides Kp exactly so no garbage enters the
    contraction.  Small K keeps a single full-K tile with zero HBM padding
    (e.g. the first conv's K=27 stays 27); large K is split into
    multiple-of-128 tiles, padding K only when strictly required."""
    if K <= 1536:
        return K, K
    Kp = _round_up(K, 128)
    for tk in (1024, 768, 512, 384, 256, 128):
        if Kp % tk == 0:
            return Kp, tk
    return Kp, 128  # unreachable: 128 always divides Kp


# ----------------------------------------------------------------------------
# Pallas kernels: tiled matmul with f32 accumulator, fused bias/residual/ReLU
# ----------------------------------------------------------------------------
def _mm_bias_kernel(x_ref, w_ref, b_ref, o_ref, acc_ref, *, relu_out):
    k = pl.program_id(2)

    @pl.when(k == 0)
    def _init():
        acc_ref[...] = jnp.zeros_like(acc_ref)

    acc_ref[...] += jnp.dot(x_ref[...], w_ref[...],
                            preferred_element_type=jnp.float32)

    @pl.when(k == pl.num_programs(2) - 1)
    def _finalize():
        out = acc_ref[...] + b_ref[...]
        if relu_out:
            out = jnp.maximum(out, 0.0)
        o_ref[...] = out.astype(o_ref.dtype)


def _mm_bias_res_kernel(x_ref, w_ref, b_ref, r_ref, o_ref, acc_ref, *,
                        relu_out):
    k = pl.program_id(2)

    @pl.when(k == 0)
    def _init():
        acc_ref[...] = jnp.zeros_like(acc_ref)

    acc_ref[...] += jnp.dot(x_ref[...], w_ref[...],
                            preferred_element_type=jnp.float32)

    @pl.when(k == pl.num_programs(2) - 1)
    def _finalize():
        out = acc_ref[...] + b_ref[...] + r_ref[...]
        if relu_out:
            out = jnp.maximum(out, 0.0)
        o_ref[...] = out.astype(o_ref.dtype)


def fused_conv_matmul(patches, w_mat, bias2d, *, tk, residual=None,
                      relu_out=False):
    """patches: [M, Kp] bf16, w_mat: [Kp, N] bf16, bias2d: [1, N] f32,
    residual: [M, N] f32 or None.  Returns [M, N] f32."""
    M, Kp = patches.shape
    Kw, N = w_mat.shape
    assert Kw == Kp and Kp % tk == 0

    # Tile sizes: full-dim blocks when the dim is small (allowed by the
    # block==full-dim exception), otherwise (8,128)-aligned tiles; ragged
    # boundary blocks along M/N are masked by the Pallas pipeline.
    tm = M if M <= TM else TM
    tn = N if N <= TN else TN
    grid = (pl.cdiv(M, tm), pl.cdiv(N, tn), Kp // tk)

    in_specs = [
        pl.BlockSpec((tm, tk), lambda i, j, k: (i, k)),   # patches
        pl.BlockSpec((tk, tn), lambda i, j, k: (k, j)),   # weight
        pl.BlockSpec((1, tn), lambda i, j, k: (0, j)),    # bias
    ]
    args = [patches, w_mat, bias2d]
    if residual is not None:
        in_specs.append(pl.BlockSpec((tm, tn), lambda i, j, k: (i, j)))
        args.append(residual)
        kernel = functools.partial(_mm_bias_res_kernel, relu_out=relu_out)
    else:
        kernel = functools.partial(_mm_bias_kernel, relu_out=relu_out)

    return pl.pallas_call(
        kernel,
        out_shape=jax.ShapeDtypeStruct((M, N), jnp.float32),
        grid=grid,
        in_specs=in_specs,
        out_specs=pl.BlockSpec((tm, tn), lambda i, j, k: (i, j)),
        scratch_shapes=[pltpu.VMEM((tm, tn), jnp.float32)],
        compiler_params=pltpu.CompilerParams(
            dimension_semantics=("parallel", "parallel", "arbitrary")),
    )(*args)


# ----------------------------------------------------------------------------
# JAX glue: im2col patch extraction + conv wrapper
# ----------------------------------------------------------------------------
def _extract_patches(x, ksize, stride, padding, k_pad=0):
    """x: [B, H, W, C] -> ([B*Ho*Wo, kh*kw*C + k_pad], (B, Ho, Wo))."""
    B, H, W, C = x.shape
    if padding > 0:
        x = jnp.pad(x, ((0, 0), (padding, padding), (padding, padding), (0, 0)))
    Ho = (H + 2 * padding - ksize) // stride + 1
    Wo = (W + 2 * padding - ksize) // stride + 1
    cols = []
    for i in range(ksize):
        for j in range(ksize):
            cols.append(x[:, i:i + Ho * stride:stride,
                          j:j + Wo * stride:stride, :])
    if k_pad > 0:
        cols.append(jnp.zeros((B, Ho, Wo, k_pad), x.dtype))
    patches = jnp.concatenate(cols, axis=-1)          # [B, Ho, Wo, K + k_pad]
    return patches.reshape(B * Ho * Wo, ksize * ksize * C + k_pad), (B, Ho, Wo)


def conv2d(x, w, b, *, stride=1, padding=0,
           relu_in=False, relu_out=False, residual=None):
    """x: NHWC f32, w: [kh, kw, Cin, Cout], b: [Cout].
    Matches torch Conv2d semantics (with optional fused pre/post ReLU +
    residual add)."""
    kh, kw, cin, cout = w.shape
    if relu_in:
        # Apply ReLU before im2col: 9x fewer elements than relu'ing patches.
        x = jnp.maximum(x, 0.0)

    K = kh * kw * cin
    Kp, tk = _choose_k_tiling(K)

    # bf16 patches/weights feed the MXU; accumulation stays f32.
    patches, (B, Ho, Wo) = _extract_patches(
        x.astype(jnp.bfloat16), kh, stride, padding, k_pad=Kp - K)
    w_mat = w.reshape(K, cout).astype(jnp.bfloat16)
    if Kp > K:
        w_mat = jnp.pad(w_mat, ((0, Kp - K), (0, 0)))
    bias2d = b.astype(jnp.float32).reshape(1, cout)

    res_flat = None
    if residual is not None:
        res_flat = residual.reshape(B * Ho * Wo, cout).astype(jnp.float32)

    out = fused_conv_matmul(patches, w_mat, bias2d, tk=tk,
                            residual=res_flat, relu_out=relu_out)
    return out.reshape(B, Ho, Wo, cout)


# ----------------------------------------------------------------------------
# Deterministic parameter init + forward pass
# ----------------------------------------------------------------------------
def _init_conv(key, kh, kw, cin, cout):
    k_w, k_b = jax.random.split(key)
    w = jax.random.normal(k_w, (kh, kw, cin, cout), jnp.float32) * 0.05
    b = jax.random.normal(k_b, (cout,), jnp.float32) * 0.01
    return w, b


def init_patch_conv_encoder(key, *, in_ch=3, res_ch=256, out_ch=32,
                            num_res_block=2, res_block_bottleneck=2, stride=8):
    keys = iter(jax.random.split(key, 64))
    params = {"pre": [], "res": [], "post": None}
    in_ch_ = in_ch
    out_ch_ = 64
    s = stride
    while s > 1:
        s = s // 2
        if s == 1:
            out_ch_ = res_ch
        # DownSample(activate_before='none', activate_after='relu', type='conv')
        params["pre"].append(_init_conv(next(keys), 3, 3, in_ch_, out_ch_))
        in_ch_ = out_ch_
        out_ch_ = 2 * in_ch_
    for _ in range(num_res_block):
        mid = res_ch // res_block_bottleneck
        conv1 = _init_conv(next(keys), 3, 3, res_ch, mid)
        conv2 = _init_conv(next(keys), 1, 1, mid, res_ch)
        params["res"].append((conv1, conv2))
    params["post"] = _init_conv(next(keys), 3, 3, res_ch, out_ch)
    return params


def patch_conv_encoder_forward(params, x_nchw):
    """x_nchw: [B, 3, H, W] -> [B, out_ch, H//8, W//8] (NCHW, like PyTorch)."""
    x = jnp.transpose(x_nchw, (0, 2, 3, 1))            # NCHW -> NHWC
    # pre_layers: DownSample = Conv3x3 stride2 pad1 (+ ReLU after)
    for (w, b) in params["pre"]:
        x = conv2d(x, w, b, stride=2, padding=1, relu_in=False, relu_out=True)
    # res_layers: ConvResBlock = [ReLU, Conv3x3, ReLU, Conv1x1] + identity
    for (w1, b1), (w2, b2) in params["res"]:
        h = conv2d(x, w1, b1, stride=1, padding=1, relu_in=True, relu_out=True)
        x = conv2d(h, w2, b2, stride=1, padding=0,
                   relu_in=False, relu_out=False, residual=x)
    # post_layers: ReLU -> Conv3x3 pad1 -> ReLU
    w, b = params["post"]
    x = conv2d(x, w, b, stride=1, padding=1, relu_in=True, relu_out=True)
    return jnp.transpose(x, (0, 3, 1, 2))               # NHWC -> NCHW


if __name__ == "__main__":
    key = jax.random.PRNGKey(0)
    pkey, xkey = jax.random.split(key)

    OUT_CH = 32
    params = init_patch_conv_encoder(pkey, in_ch=3, res_ch=256, out_ch=OUT_CH,
                                     num_res_block=2, res_block_bottleneck=2,
                                     stride=8)
    x = jax.random.normal(xkey, (2, 3, 16, 16), jnp.float32)   # [B, 3, H, W]

    y = jax.jit(patch_conv_encoder_forward)(params, x)
    y = jax.block_until_ready(y)

    assert y.shape == (2, OUT_CH, 2, 2), y.shape
    assert y.dtype == jnp.float32
    assert bool(jnp.all(jnp.isfinite(y)))
    print("KERNEL_OK")
</pallas_src>

<mosaic_0001>
module attributes {stable_mosaic.version = 11 : i64} {
  func.func @_mm_bias_kernel(%arg0: i32, %arg1: i32, %arg2: i32, %arg3: memref<128x27xbf16, #tpu.memory_space<vmem>>, %arg4: memref<27x64xbf16, #tpu.memory_space<vmem>>, %arg5: memref<1x64xf32, #tpu.memory_space<vmem>>, %arg6: memref<128x64xf32, #tpu.memory_space<vmem>>, %arg7: memref<128x64xf32, #tpu.memory_space<vmem>>) attributes {dimension_semantics = [#tpu.dimension_semantics<parallel>, #tpu.dimension_semantics<parallel>, #tpu.dimension_semantics<arbitrary>], iteration_bounds = array<i64: 1, 1, 1>, scalar_prefetch = 0 : i64, scratch_operands = 1 : i64, tpu.core_type = #tpu.core_type<tc>, window_params = [{transform_indices = @transform_0, window_bounds = array<i64: 128, 27>}, {transform_indices = @transform_1, window_bounds = array<i64: 27, 64>}, {transform_indices = @transform_2, window_bounds = array<i64: 1, 64>}, {transform_indices = @transform_3, window_bounds = array<i64: 128, 64>}]} {
    %c0_i32 = arith.constant 0 : i32
    %0 = arith.cmpi eq, %arg2, %c0_i32 : i32
    %1 = arith.extui %0 : i1 to i32
    %c0_i32_0 = arith.constant 0 : i32
    %2 = arith.cmpi ne, %1, %c0_i32_0 : i32
    scf.if %2 {
      %cst_10 = arith.constant 0.000000e+00 : f32
      %12 = vector.broadcast %cst_10 : f32 to vector<128x64xf32>
      %c0_11 = arith.constant 0 : index
      %c0_12 = arith.constant 0 : index
      %13 = vector.load %arg7[%c0_11, %c0_12] : memref<128x64xf32, #tpu.memory_space<vmem>>, vector<128x64xf32>
      tpu.vector_store %arg7[%c0_11, %c0_12], %12 {strides = array<i32>} : memref<128x64xf32, #tpu.memory_space<vmem>>, vector<128x64xf32>,
    } else {
    }
    %c0 = arith.constant 0 : index
    %c0_1 = arith.constant 0 : index
    %3 = vector.load %arg7[%c0, %c0_1] : memref<128x64xf32, #tpu.memory_space<vmem>>, vector<128x64xf32>
    %c0_2 = arith.constant 0 : index
    %c0_3 = arith.constant 0 : index
    %4 = vector.load %arg3[%c0_2, %c0_3] : memref<128x27xbf16, #tpu.memory_space<vmem>>, vector<128x27xbf16>
    %c0_4 = arith.constant 0 : index
    %c0_5 = arith.constant 0 : index
    %5 = vector.load %arg4[%c0_4, %c0_5] : memref<27x64xbf16, #tpu.memory_space<vmem>>, vector<27x64xbf16>
    %cst = arith.constant dense<0.000000e+00> : vector<128x64xf32>
    %6 = tpu.matmul %4, %5, %cst {dimension_numbers = #tpu.dot_dimension_numbers<[1], [0], [0], [1], [0, 0, 1, 1], [], []>} : vector<128x27xbf16>, vector<27x64xbf16>, vector<128x64xf32> -> vector<128x64xf32>
    %7 = arith.addf %3, %6 : vector<128x64xf32>
    %c0_6 = arith.constant 0 : index
    %c0_7 = arith.constant 0 : index
    %8 = vector.load %arg7[%c0_6, %c0_7] : memref<128x64xf32, #tpu.memory_space<vmem>>, vector<128x64xf32>
    tpu.vector_store %arg7[%c0_6, %c0_7], %7 {strides = array<i32>} : memref<128x64xf32, #tpu.memory_space<vmem>>, vector<128x64xf32>,
    %c0_i32_8 = arith.constant 0 : i32
    %9 = arith.cmpi eq, %arg2, %c0_i32_8 : i32
    %10 = arith.extui %9 : i1 to i32
    %c0_i32_9 = arith.constant 0 : i32
    %11 = arith.cmpi ne, %10, %c0_i32_9 : i32
    scf.if %11 {
      %c0_10 = arith.constant 0 : index
      %c0_11 = arith.constant 0 : index
      %12 = vector.load %arg7[%c0_10, %c0_11] : memref<128x64xf32, #tpu.memory_space<vmem>>, vector<128x64xf32>
      %c0_12 = arith.constant 0 : index
      %c0_13 = arith.constant 0 : index
      %13 = vector.load %arg5[%c0_12, %c0_13] : memref<1x64xf32, #tpu.memory_space<vmem>>, vector<1x64xf32>
      %14 = vector.broadcast %13 : vector<1x64xf32> to vector<128x64xf32>
      %15 = arith.addf %12, %14 : vector<128x64xf32>
      %cst_14 = arith.constant 0.000000e+00 : f32
      %16 = vector.broadcast %cst_14 : f32 to vector<128x64xf32>
      %17 = arith.maximumf %15, %16 : vector<128x64xf32>
      %c0_15 = arith.constant 0 : index
      %c0_16 = arith.constant 0 : index
      %18 = vector.load %arg6[%c0_15, %c0_16] : memref<128x64xf32, #tpu.memory_space<vmem>>, vector<128x64xf32>
      tpu.vector_store %arg6[%c0_15, %c0_16], %17 {strides = array<i32>} : memref<128x64xf32, #tpu.memory_space<vmem>>, vector<128x64xf32>,
    } else {
    }
    return
  }
  func.func @transform_0(%arg0: i32, %arg1: i32, %arg2: i32) -> (i32, i32) {
    %c0_i32 = arith.constant 0 : i32
    return %arg0, %arg2 : i32, i32
  }
  func.func @transform_1(%arg0: i32, %arg1: i32, %arg2: i32) -> (i32, i32) {
    %c0_i32 = arith.constant 0 : i32
    return %arg2, %arg1 : i32, i32
  }
  func.func @transform_2(%arg0: i32, %arg1: i32, %arg2: i32) -> (i32, i32) {
    %c0_i32 = arith.constant 0 : i32
    %c0_i32_0 = arith.constant 0 : i32
    return %c0_i32, %arg1 : i32, i32
  }
  func.func @transform_3(%arg0: i32, %arg1: i32, %arg2: i32) -> (i32, i32) {
    %c0_i32 = arith.constant 0 : i32
    return %arg0, %arg1 : i32, i32
  }
}

module attributes {stable_mosaic.version = 11 : i64} {
  func.func @_mm_bias_kernel(%arg0: i32, %arg1: i32, %arg2: i32, %arg3: memref<32x576xbf16, #tpu.memory_space<vmem>>, %arg4: memref<576x128xbf16, #tpu.memory_space<vmem>>, %arg5: memref<1x128xf32, #tpu.memory_space<vmem>>, %arg6: memref<32x128xf32, #tpu.memory_space<vmem>>, %arg7: memref<32x128xf32, #tpu.memory_space<vmem>>) attributes {dimension_semantics = [#tpu.dimension_semantics<parallel>, #tpu.dimension_semantics<parallel>, #tpu.dimension_semantics<arbitrary>], iteration_bounds = array<i64: 1, 1, 1>, scalar_prefetch = 0 : i64, scratch_operands = 1 : i64, tpu.core_type = #tpu.core_type<tc>, window_params = [{transform_indices = @transform_0, window_bounds = array<i64: 32, 576>}, {transform_indices = @transform_1, window_bounds = array<i64: 576, 128>}, {transform_indices = @transform_2, window_bounds = array<i64: 1, 128>}, {transform_indices = @transform_3, window_bounds = array<i64: 32, 128>}]} {
    %c0_i32 = arith.constant 0 : i32
    %0 = arith.cmpi eq, %arg2, %c0_i32 : i32
    %1 = arith.extui %0 : i1 to i32
    %c0_i32_0 = arith.constant 0 : i32
    %2 = arith.cmpi ne, %1, %c0_i32_0 : i32
    scf.if %2 {
      %cst_10 = arith.constant 0.000000e+00 : f32
      %12 = vector.broadcast %cst_10 : f32 to vector<32x128xf32>
      %c0_11 = arith.constant 0 : index
      %c0_12 = arith.constant 0 : index
      %13 = vector.load %arg7[%c0_11, %c0_12] : memref<32x128xf32, #tpu.memory_space<vmem>>, vector<32x128xf32>
      tpu.vector_store %arg7[%c0_11, %c0_12], %12 {strides = array<i32>} : memref<32x128xf32, #tpu.memory_space<vmem>>, vector<32x128xf32>,
    } else {
    }
    %c0 = arith.constant 0 : index
    %c0_1 = arith.constant 0 : index
    %3 = vector.load %arg7[%c0, %c0_1] : memref<32x128xf32, #tpu.memory_space<vmem>>, vector<32x128xf32>
    %c0_2 = arith.constant 0 : index
    %c0_3 = arith.constant 0 : index
    %4 = vector.load %arg3[%c0_2, %c0_3] : memref<32x576xbf16, #tpu.memory_space<vmem>>, vector<32x576xbf16>
    %c0_4 = arith.constant 0 : index
    %c0_5 = arith.constant 0 : index
    %5 = vector.load %arg4[%c0_4, %c0_5] : memref<576x128xbf16, #tpu.memory_space<vmem>>, vector<576x128xbf16>
    %cst = arith.constant dense<0.000000e+00> : vector<32x128xf32>
    %6 = tpu.matmul %4, %5, %cst {dimension_numbers = #tpu.dot_dimension_numbers<[1], [0], [0], [1], [0, 0, 1, 1], [], []>} : vector<32x576xbf16>, vector<576x128xbf16>, vector<32x128xf32> -> vector<32x128xf32>
    %7 = arith.addf %3, %6 : vector<32x128xf32>
    %c0_6 = arith.constant 0 : index
    %c0_7 = arith.constant 0 : index
    %8 = vector.load %arg7[%c0_6, %c0_7] : memref<32x128xf32, #tpu.memory_space<vmem>>, vector<32x128xf32>
    tpu.vector_store %arg7[%c0_6, %c0_7], %7 {strides = array<i32>} : memref<32x128xf32, #tpu.memory_space<vmem>>, vector<32x128xf32>,
    %c0_i32_8 = arith.constant 0 : i32
    %9 = arith.cmpi eq, %arg2, %c0_i32_8 : i32
    %10 = arith.extui %9 : i1 to i32
    %c0_i32_9 = arith.constant 0 : i32
    %11 = arith.cmpi ne, %10, %c0_i32_9 : i32
    scf.if %11 {
      %c0_10 = arith.constant 0 : index
      %c0_11 = arith.constant 0 : index
      %12 = vector.load %arg7[%c0_10, %c0_11] : memref<32x128xf32, #tpu.memory_space<vmem>>, vector<32x128xf32>
      %c0_12 = arith.constant 0 : index
      %c0_13 = arith.constant 0 : index
      %13 = vector.load %arg5[%c0_12, %c0_13] : memref<1x128xf32, #tpu.memory_space<vmem>>, vector<1x128xf32>
      %14 = vector.broadcast %13 : vector<1x128xf32> to vector<32x128xf32>
      %15 = arith.addf %12, %14 : vector<32x128xf32>
      %cst_14 = arith.constant 0.000000e+00 : f32
      %16 = vector.broadcast %cst_14 : f32 to vector<32x128xf32>
      %17 = arith.maximumf %15, %16 : vector<32x128xf32>
      %c0_15 = arith.constant 0 : index
      %c0_16 = arith.constant 0 : index
      %18 = vector.load %arg6[%c0_15, %c0_16] : memref<32x128xf32, #tpu.memory_space<vmem>>, vector<32x128xf32>
      tpu.vector_store %arg6[%c0_15, %c0_16], %17 {strides = array<i32>} : memref<32x128xf32, #tpu.memory_space<vmem>>, vector<32x128xf32>,
    } else {
    }
    return
  }
  func.func @transform_0(%arg0: i32, %arg1: i32, %arg2: i32) -> (i32, i32) {
    %c0_i32 = arith.constant 0 : i32
    return %arg0, %arg2 : i32, i32
  }
  func.func @transform_1(%arg0: i32, %arg1: i32, %arg2: i32) -> (i32, i32) {
    %c0_i32 = arith.constant 0 : i32
    return %arg2, %arg1 : i32, i32
  }
  func.func @transform_2(%arg0: i32, %arg1: i32, %arg2: i32) -> (i32, i32) {
    %c0_i32 = arith.constant 0 : i32
    %c0_i32_0 = arith.constant 0 : i32
    return %c0_i32, %arg1 : i32, i32
  }
  func.func @transform_3(%arg0: i32, %arg1: i32, %arg2: i32) -> (i32, i32) {
    %c0_i32 = arith.constant 0 : i32
    return %arg0, %arg1 : i32, i32
  }
}

module attributes {stable_mosaic.version = 11 : i64} {
  func.func @_mm_bias_kernel(%arg0: i32, %arg1: i32, %arg2: i32, %arg3: memref<8x1152xbf16, #tpu.memory_space<vmem>>, %arg4: memref<1152x256xbf16, #tpu.memory_space<vmem>>, %arg5: memref<1x256xf32, #tpu.memory_space<vmem>>, %arg6: memref<8x256xf32, #tpu.memory_space<vmem>>, %arg7: memref<8x256xf32, #tpu.memory_space<vmem>>) attributes {dimension_semantics = [#tpu.dimension_semantics<parallel>, #tpu.dimension_semantics<parallel>, #tpu.dimension_semantics<arbitrary>], iteration_bounds = array<i64: 1, 1, 1>, scalar_prefetch = 0 : i64, scratch_operands = 1 : i64, tpu.core_type = #tpu.core_type<tc>, window_params = [{transform_indices = @transform_0, window_bounds = array<i64: 8, 1152>}, {transform_indices = @transform_1, window_bounds = array<i64: 1152, 256>}, {transform_indices = @transform_2, window_bounds = array<i64: 1, 256>}, {transform_indices = @transform_3, window_bounds = array<i64: 8, 256>}]} {
    %c0_i32 = arith.constant 0 : i32
    %0 = arith.cmpi eq, %arg2, %c0_i32 : i32
    %1 = arith.extui %0 : i1 to i32
    %c0_i32_0 = arith.constant 0 : i32
    %2 = arith.cmpi ne, %1, %c0_i32_0 : i32
    scf.if %2 {
      %cst_10 = arith.constant 0.000000e+00 : f32
      %12 = vector.broadcast %cst_10 : f32 to vector<8x256xf32>
      %c0_11 = arith.constant 0 : index
      %c0_12 = arith.constant 0 : index
      %13 = vector.load %arg7[%c0_11, %c0_12] : memref<8x256xf32, #tpu.memory_space<vmem>>, vector<8x256xf32>
      tpu.vector_store %arg7[%c0_11, %c0_12], %12 {strides = array<i32>} : memref<8x256xf32, #tpu.memory_space<vmem>>, vector<8x256xf32>,
    } else {
    }
    %c0 = arith.constant 0 : index
    %c0_1 = arith.constant 0 : index
    %3 = vector.load %arg7[%c0, %c0_1] : memref<8x256xf32, #tpu.memory_space<vmem>>, vector<8x256xf32>
    %c0_2 = arith.constant 0 : index
    %c0_3 = arith.constant 0 : index
    %4 = vector.load %arg3[%c0_2, %c0_3] : memref<8x1152xbf16, #tpu.memory_space<vmem>>, vector<8x1152xbf16>
    %c0_4 = arith.constant 0 : index
    %c0_5 = arith.constant 0 : index
    %5 = vector.load %arg4[%c0_4, %c0_5] : memref<1152x256xbf16, #tpu.memory_space<vmem>>, vector<1152x256xbf16>
    %cst = arith.constant dense<0.000000e+00> : vector<8x256xf32>
    %6 = tpu.matmul %4, %5, %cst {dimension_numbers = #tpu.dot_dimension_numbers<[1], [0], [0], [1], [0, 0, 1, 1], [], []>} : vector<8x1152xbf16>, vector<1152x256xbf16>, vector<8x256xf32> -> vector<8x256xf32>
    %7 = arith.addf %3, %6 : vector<8x256xf32>
    %c0_6 = arith.constant 0 : index
    %c0_7 = arith.constant 0 : index
    %8 = vector.load %arg7[%c0_6, %c0_7] : memref<8x256xf32, #tpu.memory_space<vmem>>, vector<8x256xf32>
    tpu.vector_store %arg7[%c0_6, %c0_7], %7 {strides = array<i32>} : memref<8x256xf32, #tpu.memory_space<vmem>>, vector<8x256xf32>,
    %c0_i32_8 = arith.constant 0 : i32
    %9 = arith.cmpi eq, %arg2, %c0_i32_8 : i32
    %10 = arith.extui %9 : i1 to i32
    %c0_i32_9 = arith.constant 0 : i32
    %11 = arith.cmpi ne, %10, %c0_i32_9 : i32
    scf.if %11 {
      %c0_10 = arith.constant 0 : index
      %c0_11 = arith.constant 0 : index
      %12 = vector.load %arg7[%c0_10, %c0_11] : memref<8x256xf32, #tpu.memory_space<vmem>>, vector<8x256xf32>
      %c0_12 = arith.constant 0 : index
      %c0_13 = arith.constant 0 : index
      %13 = vector.load %arg5[%c0_12, %c0_13] : memref<1x256xf32, #tpu.memory_space<vmem>>, vector<1x256xf32>
      %14 = vector.broadcast %13 : vector<1x256xf32> to vector<8x256xf32>
      %15 = arith.addf %12, %14 : vector<8x256xf32>
      %cst_14 = arith.constant 0.000000e+00 : f32
      %16 = vector.broadcast %cst_14 : f32 to vector<8x256xf32>
      %17 = arith.maximumf %15, %16 : vector<8x256xf32>
      %c0_15 = arith.constant 0 : index
      %c0_16 = arith.constant 0 : index
      %18 = vector.load %arg6[%c0_15, %c0_16] : memref<8x256xf32, #tpu.memory_space<vmem>>, vector<8x256xf32>
      tpu.vector_store %arg6[%c0_15, %c0_16], %17 {strides = array<i32>} : memref<8x256xf32, #tpu.memory_space<vmem>>, vector<8x256xf32>,
    } else {
    }
    return
  }
  func.func @transform_0(%arg0: i32, %arg1: i32, %arg2: i32) -> (i32, i32) {
    %c0_i32 = arith.constant 0 : i32
    return %arg0, %arg2 : i32, i32
  }
  func.func @transform_1(%arg0: i32, %arg1: i32, %arg2: i32) -> (i32, i32) {
    %c0_i32 = arith.constant 0 : i32
    return %arg2, %arg1 : i32, i32
  }
  func.func @transform_2(%arg0: i32, %arg1: i32, %arg2: i32) -> (i32, i32) {
    %c0_i32 = arith.constant 0 : i32
    %c0_i32_0 = arith.constant 0 : i32
    return %c0_i32, %arg1 : i32, i32
  }
  func.func @transform_3(%arg0: i32, %arg1: i32, %arg2: i32) -> (i32, i32) {
    %c0_i32 = arith.constant 0 : i32
    return %arg0, %arg1 : i32, i32
  }
}

module attributes {stable_mosaic.version = 11 : i64} {
  func.func @_mm_bias_kernel(%arg0: i32, %arg1: i32, %arg2: i32, %arg3: memref<8x768xbf16, #tpu.memory_space<vmem>>, %arg4: memref<768x128xbf16, #tpu.memory_space<vmem>>, %arg5: memref<1x128xf32, #tpu.memory_space<vmem>>, %arg6: memref<8x128xf32, #tpu.memory_space<vmem>>, %arg7: memref<8x128xf32, #tpu.memory_space<vmem>>) attributes {dimension_semantics = [#tpu.dimension_semantics<parallel>, #tpu.dimension_semantics<parallel>, #tpu.dimension_semantics<arbitrary>], iteration_bounds = array<i64: 1, 1, 3>, scalar_prefetch = 0 : i64, scratch_operands = 1 : i64, tpu.core_type = #tpu.core_type<tc>, window_params = [{transform_indices = @transform_0, window_bounds = array<i64: 8, 768>}, {transform_indices = @transform_1, window_bounds = array<i64: 768, 128>}, {transform_indices = @transform_2, window_bounds = array<i64: 1, 128>}, {transform_indices = @transform_3, window_bounds = array<i64: 8, 128>}]} {
    %c0_i32 = arith.constant 0 : i32
    %0 = arith.cmpi eq, %arg2, %c0_i32 : i32
    %1 = arith.extui %0 : i1 to i32
    %c0_i32_0 = arith.constant 0 : i32
    %2 = arith.cmpi ne, %1, %c0_i32_0 : i32
    scf.if %2 {
      %cst_9 = arith.constant 0.000000e+00 : f32
      %12 = vector.broadcast %cst_9 : f32 to vector<8x128xf32>
      %c0_10 = arith.constant 0 : index
      %c0_11 = arith.constant 0 : index
      %13 = vector.load %arg7[%c0_10, %c0_11] : memref<8x128xf32, #tpu.memory_space<vmem>>, vector<8x128xf32>
      tpu.vector_store %arg7[%c0_10, %c0_11], %12 {strides = array<i32>} : memref<8x128xf32, #tpu.memory_space<vmem>>, vector<8x128xf32>,
    } else {
    }
    %c0 = arith.constant 0 : index
    %c0_1 = arith.constant 0 : index
    %3 = vector.load %arg7[%c0, %c0_1] : memref<8x128xf32, #tpu.memory_space<vmem>>, vector<8x128xf32>
    %c0_2 = arith.constant 0 : index
    %c0_3 = arith.constant 0 : index
    %4 = vector.load %arg3[%c0_2, %c0_3] : memref<8x768xbf16, #tpu.memory_space<vmem>>, vector<8x768xbf16>
    %c0_4 = arith.constant 0 : index
    %c0_5 = arith.constant 0 : index
    %5 = vector.load %arg4[%c0_4, %c0_5] : memref<768x128xbf16, #tpu.memory_space<vmem>>, vector<768x128xbf16>
    %cst = arith.constant dense<0.000000e+00> : vector<8x128xf32>
    %6 = tpu.matmul %4, %5, %cst {dimension_numbers = #tpu.dot_dimension_numbers<[1], [0], [0], [1], [0, 0, 1, 1], [], []>} : vector<8x768xbf16>, vector<768x128xbf16>, vector<8x128xf32> -> vector<8x128xf32>
    %7 = arith.addf %3, %6 : vector<8x128xf32>
    %c0_6 = arith.constant 0 : index
    %c0_7 = arith.constant 0 : index
    %8 = vector.load %arg7[%c0_6, %c0_7] : memref<8x128xf32, #tpu.memory_space<vmem>>, vector<8x128xf32>
    tpu.vector_store %arg7[%c0_6, %c0_7], %7 {strides = array<i32>} : memref<8x128xf32, #tpu.memory_space<vmem>>, vector<8x128xf32>,
    %c2_i32 = arith.constant 2 : i32
    %9 = arith.cmpi eq, %arg2, %c2_i32 : i32
    %10 = arith.extui %9 : i1 to i32
    %c0_i32_8 = arith.constant 0 : i32
    %11 = arith.cmpi ne, %10, %c0_i32_8 : i32
    scf.if %11 {
      %c0_9 = arith.constant 0 : index
      %c0_10 = arith.constant 0 : index
      %12 = vector.load %arg7[%c0_9, %c0_10] : memref<8x128xf32, #tpu.memory_space<vmem>>, vector<8x128xf32>
      %c0_11 = arith.constant 0 : index
      %c0_12 = arith.constant 0 : index
      %13 = vector.load %arg5[%c0_11, %c0_12] : memref<1x128xf32, #tpu.memory_space<vmem>>, vector<1x128xf32>
      %14 = vector.broadcast %13 : vector<1x128xf32> to vector<8x128xf32>
      %15 = arith.addf %12, %14 : vector<8x128xf32>
      %cst_13 = arith.constant 0.000000e+00 : f32
      %16 = vector.broadcast %cst_13 : f32 to vector<8x128xf32>
      %17 = arith.maximumf %15, %16 : vector<8x128xf32>
      %c0_14 = arith.constant 0 : index
      %c0_15 = arith.constant 0 : index
      %18 = vector.load %arg6[%c0_14, %c0_15] : memref<8x128xf32, #tpu.memory_space<vmem>>, vector<8x128xf32>
      tpu.vector_store %arg6[%c0_14, %c0_15], %17 {strides = array<i32>} : memref<8x128xf32, #tpu.memory_space<vmem>>, vector<8x128xf32>,
    } else {
    }
    return
  }
  func.func @transform_0(%arg0: i32, %arg1: i32, %arg2: i32) -> (i32, i32) {
    %c0_i32 = arith.constant 0 : i32
    return %arg0, %arg2 : i32, i32
  }
  func.func @transform_1(%arg0: i32, %arg1: i32, %arg2: i32) -> (i32, i32) {
    %c0_i32 = arith.constant 0 : i32
    return %arg2, %arg1 : i32, i32
  }
  func.func @transform_2(%arg0: i32, %arg1: i32, %arg2: i32) -> (i32, i32) {
    %c0_i32 = arith.constant 0 : i32
    %c0_i32_0 = arith.constant 0 : i32
    return %c0_i32, %arg1 : i32, i32
  }
  func.func @transform_3(%arg0: i32, %arg1: i32, %arg2: i32) -> (i32, i32) {
    %c0_i32 = arith.constant 0 : i32
    return %arg0, %arg1 : i32, i32
  }
}

module attributes {stable_mosaic.version = 11 : i64} {
  func.func @_mm_bias_res_kernel(%arg0: i32, %arg1: i32, %arg2: i32, %arg3: memref<8x128xbf16, #tpu.memory_space<vmem>>, %arg4: memref<128x256xbf16, #tpu.memory_space<vmem>>, %arg5: memref<1x256xf32, #tpu.memory_space<vmem>>, %arg6: memref<8x256xf32, #tpu.memory_space<vmem>>, %arg7: memref<8x256xf32, #tpu.memory_space<vmem>>, %arg8: memref<8x256xf32, #tpu.memory_space<vmem>>) attributes {dimension_semantics = [#tpu.dimension_semantics<parallel>, #tpu.dimension_semantics<parallel>, #tpu.dimension_semantics<arbitrary>], iteration_bounds = array<i64: 1, 1, 1>, scalar_prefetch = 0 : i64, scratch_operands = 1 : i64, tpu.core_type = #tpu.core_type<tc>, window_params = [{transform_indices = @transform_0, window_bounds = array<i64: 8, 128>}, {transform_indices = @transform_1, window_bounds = array<i64: 128, 256>}, {transform_indices = @transform_2, window_bounds = array<i64: 1, 256>}, {transform_indices = @transform_3, window_bounds = array<i64: 8, 256>}, {transform_indices = @transform_4, window_bounds = array<i64: 8, 256>}]} {
    %c0_i32 = arith.constant 0 : i32
    %0 = arith.cmpi eq, %arg2, %c0_i32 : i32
    %1 = arith.extui %0 : i1 to i32
    %c0_i32_0 = arith.constant 0 : i32
    %2 = arith.cmpi ne, %1, %c0_i32_0 : i32
    scf.if %2 {
      %cst_10 = arith.constant 0.000000e+00 : f32
      %12 = vector.broadcast %cst_10 : f32 to vector<8x256xf32>
      %c0_11 = arith.constant 0 : index
      %c0_12 = arith.constant 0 : index
      %13 = vector.load %arg8[%c0_11, %c0_12] : memref<8x256xf32, #tpu.memory_space<vmem>>, vector<8x256xf32>
      tpu.vector_store %arg8[%c0_11, %c0_12], %12 {strides = array<i32>} : memref<8x256xf32, #tpu.memory_space<vmem>>, vector<8x256xf32>,
    } else {
    }
    %c0 = arith.constant 0 : index
    %c0_1 = arith.constant 0 : index
    %3 = vector.load %arg8[%c0, %c0_1] : memref<8x256xf32, #tpu.memory_space<vmem>>, vector<8x256xf32>
    %c0_2 = arith.constant 0 : index
    %c0_3 = arith.constant 0 : index
    %4 = vector.load %arg3[%c0_2, %c0_3] : memref<8x128xbf16, #tpu.memory_space<vmem>>, vector<8x128xbf16>
    %c0_4 = arith.constant 0 : index
    %c0_5 = arith.constant 0 : index
    %5 = vector.load %arg4[%c0_4, %c0_5] : memref<128x256xbf16, #tpu.memory_space<vmem>>, vector<128x256xbf16>
    %cst = arith.constant dense<0.000000e+00> : vector<8x256xf32>
    %6 = tpu.matmul %4, %5, %cst {dimension_numbers = #tpu.dot_dimension_numbers<[1], [0], [0], [1], [0, 0, 1, 1], [], []>} : vector<8x128xbf16>, vector<128x256xbf16>, vector<8x256xf32> -> vector<8x256xf32>
    %7 = arith.addf %3, %6 : vector<8x256xf32>
    %c0_6 = arith.constant 0 : index
    %c0_7 = arith.constant 0 : index
    %8 = vector.load %arg8[%c0_6, %c0_7] : memref<8x256xf32, #tpu.memory_space<vmem>>, vector<8x256xf32>
    tpu.vector_store %arg8[%c0_6, %c0_7], %7 {strides = array<i32>} : memref<8x256xf32, #tpu.memory_space<vmem>>, vector<8x256xf32>,
    %c0_i32_8 = arith.constant 0 : i32
    %9 = arith.cmpi eq, %arg2, %c0_i32_8 : i32
    %10 = arith.extui %9 : i1 to i32
    %c0_i32_9 = arith.constant 0 : i32
    %11 = arith.cmpi ne, %10, %c0_i32_9 : i32
    scf.if %11 {
      %c0_10 = arith.constant 0 : index
      %c0_11 = arith.constant 0 : index
      %12 = vector.load %arg8[%c0_10, %c0_11] : memref<8x256xf32, #tpu.memory_space<vmem>>, vector<8x256xf32>
      %c0_12 = arith.constant 0 : index
      %c0_13 = arith.constant 0 : index
      %13 = vector.load %arg5[%c0_12, %c0_13] : memref<1x256xf32, #tpu.memory_space<vmem>>, vector<1x256xf32>
      %14 = vector.broadcast %13 : vector<1x256xf32> to vector<8x256xf32>
      %15 = arith.addf %12, %14 : vector<8x256xf32>
      %c0_14 = arith.constant 0 : index
      %c0_15 = arith.constant 0 : index
      %16 = vector.load %arg6[%c0_14, %c0_15] : memref<8x256xf32, #tpu.memory_space<vmem>>, vector<8x256xf32>
      %17 = arith.addf %15, %16 : vector<8x256xf32>
      %c0_16 = arith.constant 0 : index
      %c0_17 = arith.constant 0 : index
      %18 = vector.load %arg7[%c0_16, %c0_17] : memref<8x256xf32, #tpu.memory_space<vmem>>, vector<8x256xf32>
      tpu.vector_store %arg7[%c0_16, %c0_17], %17 {strides = array<i32>} : memref<8x256xf32, #tpu.memory_space<vmem>>, vector<8x256xf32>,
    } else {
    }
    return
  }
  func.func @transform_0(%arg0: i32, %arg1: i32, %arg2: i32) -> (i32, i32) {
    %c0_i32 = arith.constant 0 : i32
    return %arg0, %arg2 : i32, i32
  }
  func.func @transform_1(%arg0: i32, %arg1: i32, %arg2: i32) -> (i32, i32) {
    %c0_i32 = arith.constant 0 : i32
    return %arg2, %arg1 : i32, i32
  }
  func.func @transform_2(%arg0: i32, %arg1: i32, %arg2: i32) -> (i32, i32) {
    %c0_i32 = arith.constant 0 : i32
    %c0_i32_0 = arith.constant 0 : i32
    return %c0_i32, %arg1 : i32, i32
  }
  func.func @transform_3(%arg0: i32, %arg1: i32, %arg2: i32) -> (i32, i32) {
    %c0_i32 = arith.constant 0 : i32
    return %arg0, %arg1 : i32, i32
  }
  func.func @transform_4(%arg0: i32, %arg1: i32, %arg2: i32) -> (i32, i32) {
    %c0_i32 = arith.constant 0 : i32
    return %arg0, %arg1 : i32, i32
  }
}

module attributes {stable_mosaic.version = 11 : i64} {
  func.func @_mm_bias_kernel(%arg0: i32, %arg1: i32, %arg2: i32, %arg3: memref<8x768xbf16, #tpu.memory_space<vmem>>, %arg4: memref<768x32xbf16, #tpu.memory_space<vmem>>, %arg5: memref<1x32xf32, #tpu.memory_space<vmem>>, %arg6: memref<8x32xf32, #tpu.memory_space<vmem>>, %arg7: memref<8x32xf32, #tpu.memory_space<vmem>>) attributes {dimension_semantics = [#tpu.dimension_semantics<parallel>, #tpu.dimension_semantics<parallel>, #tpu.dimension_semantics<arbitrary>], iteration_bounds = array<i64: 1, 1, 3>, scalar_prefetch = 0 : i64, scratch_operands = 1 : i64, tpu.core_type = #tpu.core_type<tc>, window_params = [{transform_indices = @transform_0, window_bounds = array<i64: 8, 768>}, {transform_indices = @transform_1, window_bounds = array<i64: 768, 32>}, {transform_indices = @transform_2, window_bounds = array<i64: 1, 32>}, {transform_indices = @transform_3, window_bounds = array<i64: 8, 32>}]} {
    %c0_i32 = arith.constant 0 : i32
    %0 = arith.cmpi eq, %arg2, %c0_i32 : i32
    %1 = arith.extui %0 : i1 to i32
    %c0_i32_0 = arith.constant 0 : i32
    %2 = arith.cmpi ne, %1, %c0_i32_0 : i32
    scf.if %2 {
      %cst_9 = arith.constant 0.000000e+00 : f32
      %12 = vector.broadcast %cst_9 : f32 to vector<8x32xf32>
      %c0_10 = arith.constant 0 : index
      %c0_11 = arith.constant 0 : index
      %13 = vector.load %arg7[%c0_10, %c0_11] : memref<8x32xf32, #tpu.memory_space<vmem>>, vector<8x32xf32>
      tpu.vector_store %arg7[%c0_10, %c0_11], %12 {strides = array<i32>} : memref<8x32xf32, #tpu.memory_space<vmem>>, vector<8x32xf32>,
    } else {
    }
    %c0 = arith.constant 0 : index
    %c0_1 = arith.constant 0 : index
    %3 = vector.load %arg7[%c0, %c0_1] : memref<8x32xf32, #tpu.memory_space<vmem>>, vector<8x32xf32>
    %c0_2 = arith.constant 0 : index
    %c0_3 = arith.constant 0 : index
    %4 = vector.load %arg3[%c0_2, %c0_3] : memref<8x768xbf16, #tpu.memory_space<vmem>>, vector<8x768xbf16>
    %c0_4 = arith.constant 0 : index
    %c0_5 = arith.constant 0 : index
    %5 = vector.load %arg4[%c0_4, %c0_5] : memref<768x32xbf16, #tpu.memory_space<vmem>>, vector<768x32xbf16>
    %cst = arith.constant dense<0.000000e+00> : vector<8x32xf32>
    %6 = tpu.matmul %4, %5, %cst {dimension_numbers = #tpu.dot_dimension_numbers<[1], [0], [0], [1], [0, 0, 1, 1], [], []>} : vector<8x768xbf16>, vector<768x32xbf16>, vector<8x32xf32> -> vector<8x32xf32>
    %7 = arith.addf %3, %6 : vector<8x32xf32>
    %c0_6 = arith.constant 0 : index
    %c0_7 = arith.constant 0 : index
    %8 = vector.load %arg7[%c0_6, %c0_7] : memref<8x32xf32, #tpu.memory_space<vmem>>, vector<8x32xf32>
    tpu.vector_store %arg7[%c0_6, %c0_7], %7 {strides = array<i32>} : memref<8x32xf32, #tpu.memory_space<vmem>>, vector<8x32xf32>,
    %c2_i32 = arith.constant 2 : i32
    %9 = arith.cmpi eq, %arg2, %c2_i32 : i32
    %10 = arith.extui %9 : i1 to i32
    %c0_i32_8 = arith.constant 0 : i32
    %11 = arith.cmpi ne, %10, %c0_i32_8 : i32
    scf.if %11 {
      %c0_9 = arith.constant 0 : index
      %c0_10 = arith.constant 0 : index
      %12 = vector.load %arg7[%c0_9, %c0_10] : memref<8x32xf32, #tpu.memory_space<vmem>>, vector<8x32xf32>
      %c0_11 = arith.constant 0 : index
      %c0_12 = arith.constant 0 : index
      %13 = vector.load %arg5[%c0_11, %c0_12] : memref<1x32xf32, #tpu.memory_space<vmem>>, vector<1x32xf32>
      %14 = vector.broadcast %13 : vector<1x32xf32> to vector<8x32xf32>
      %15 = arith.addf %12, %14 : vector<8x32xf32>
      %cst_13 = arith.constant 0.000000e+00 : f32
      %16 = vector.broadcast %cst_13 : f32 to vector<8x32xf32>
      %17 = arith.maximumf %15, %16 : vector<8x32xf32>
      %c0_14 = arith.constant 0 : index
      %c0_15 = arith.constant 0 : index
      %18 = vector.load %arg6[%c0_14, %c0_15] : memref<8x32xf32, #tpu.memory_space<vmem>>, vector<8x32xf32>
      tpu.vector_store %arg6[%c0_14, %c0_15], %17 {strides = array<i32>} : memref<8x32xf32, #tpu.memory_space<vmem>>, vector<8x32xf32>,
    } else {
    }
    return
  }
  func.func @transform_0(%arg0: i32, %arg1: i32, %arg2: i32) -> (i32, i32) {
    %c0_i32 = arith.constant 0 : i32
    return %arg0, %arg2 : i32, i32
  }
  func.func @transform_1(%arg0: i32, %arg1: i32, %arg2: i32) -> (i32, i32) {
    %c0_i32 = arith.constant 0 : i32
    return %arg2, %arg1 : i32, i32
  }
  func.func @transform_2(%arg0: i32, %arg1: i32, %arg2: i32) -> (i32, i32) {
    %c0_i32 = arith.constant 0 : i32
    %c0_i32_0 = arith.constant 0 : i32
    return %c0_i32, %arg1 : i32, i32
  }
  func.func @transform_3(%arg0: i32, %arg1: i32, %arg2: i32) -> (i32, i32) {
    %c0_i32 = arith.constant 0 : i32
    return %arg0, %arg1 : i32, i32
  }
}

</mosaic_0001>

<llo_original>
// kernel: patch_conv_encoder_forward.8
$region0: #{patch_conv_encoder_forward.8}
  #allocation0 [shape = 'u32[]', space=smem, size = 0x4, offset = 0x4, fixed_abs, tag = 'smem constant byte address 0x4 - core index']
  #allocation1 [shape = 'u32[144,128]{1,0:T(1,128)}', space=vmem, size = 0x12000, scoped, tag = 'internal scratch']
  #allocation2 [shape = 'f32[128,64]{1,0:T(8,128)}', space=vmem, size = 0x10000, scoped, tag = 'scratch operand']
  %s0 = inlined_call_operand.vmem [shape: bf16[128,27], index: 0, kind: input, shape index: {}]
  %s1 = inlined_call_operand.vmem [shape: bf16[27,64], index: 1, kind: input, shape index: {}]
  %s2 = inlined_call_operand.hbm [shape: f32[1,64], index: 2, kind: input, shape index: {}]
  %s3 = inlined_call_operand.vmem [shape: f32[128,64], index: 3, kind: output, shape index: {}]
  %s4 = sld [smem:[#allocation0]]
  $region34: #{patch_conv_encoder_forward.8} parent=0
    _
  %s6 = ssub.s32 1, %s4
  %s7 = scalar_select 0, %s6, %s4
  $region1: #{patch_conv_encoder_forward.8} parent=0
    #allocation3 [shape = 'u8[512]{0}', space=vmem, size = 0x400, scoped, tag = 'input window, operand 2, single buffered']
    #allocation4 [shape = 's32[1]{0}', space=sflag, size = 0x4, scoped, tag = 'scoped memory for patch_conv_encoder_forward.8']
    %8 = vsyncpa [#allocation4], 0
    // Predicated region
    $region2: #{patch_conv_encoder_forward.8} parent=1 // pred_check
      _
    $region3: #{patch_conv_encoder_forward.8} parent=1 // pred_check_branch
      %10 = sbr.rel (0) target = $region5
    $region4: #{patch_conv_encoder_forward.8} parent=1 // pred_region
      _
    $region5: #{patch_conv_encoder_forward.8} parent=1 // pred_fallthru
      _
    // Predicated region
    $region6: #{patch_conv_encoder_forward.8} parent=1 // pred_check
      _
    $region7: #{patch_conv_encoder_forward.8} parent=1 // pred_check_branch
      %12 = sbr.rel (0) target = $region9
    $region8: #{patch_conv_encoder_forward.8} parent=1 // pred_region
      _
    $region9: #{patch_conv_encoder_forward.8} parent=1 // pred_fallthru
      _
    // Predicated region
    $region10: #{patch_conv_encoder_forward.8} parent=1 // pred_check
      _
    $region11: #{patch_conv_encoder_forward.8} parent=1 // pred_check_branch
      %14 = sbr.rel (0) target = $region13
    $region12: #{patch_conv_encoder_forward.8} parent=1 // pred_region
      %s16 = ssub.s32 16, 16
      %17 = vsyncadd [#allocation4], %s16
      %s19 = sshll.u32 [#allocation3], 4
      %s20 = int_to_ptr.vmem [resolvable:$true] %s19
      %22 = dma.hbm_to_vmem [thread:$0]  %s2, 16, %s20, [#allocation4]
    $region13: #{patch_conv_encoder_forward.8} parent=1 // pred_fallthru
      _
    // Predicated region
    $region14: #{patch_conv_encoder_forward.8} parent=1 // pred_check
      _
    $region15: #{patch_conv_encoder_forward.8} parent=1 // pred_check_branch
      %24 = sbr.rel (0) target = $region17
    $region16: #{patch_conv_encoder_forward.8} parent=1 // pred_region
      %25 = dma.done [#allocation4], 16
    $region17: #{patch_conv_encoder_forward.8} parent=1 // pred_fallthru
      _
    %p27 = scmp.eq.s32.totalorder 0, 0
    // Predicated region
    $region18: #{patch_conv_encoder_forward.8} parent=1 // pred_check
      %p28 = pneg %p27
    $region19: #{patch_conv_encoder_forward.8} parent=1 // pred_check_branch
      %30 = sbr.rel (%p28) target = $region21
    $region20: #{patch_conv_encoder_forward.8} parent=1 // pred_region
      %vm31 = vcmask 523264
      %32 = vst.msk [vmem:[#allocation2] sm:$0xff] %vm31, 0.0
      %33 = vst.msk [vmem:[#allocation2 + $0x8] sm:$0xff] %vm31, 0.0
      %34 = vst.msk [vmem:[#allocation2 + $0x10] sm:$0xff] %vm31, 0.0
      %35 = vst.msk [vmem:[#allocation2 + $0x18] sm:$0xff] %vm31, 0.0
      %36 = vst.msk [vmem:[#allocation2 + $0x20] sm:$0xff] %vm31, 0.0
      %37 = vst.msk [vmem:[#allocation2 + $0x28] sm:$0xff] %vm31, 0.0
      %38 = vst.msk [vmem:[#allocation2 + $0x30] sm:$0xff] %vm31, 0.0
      %39 = vst.msk [vmem:[#allocation2 + $0x38] sm:$0xff] %vm31, 0.0
      %40 = vst.msk [vmem:[#allocation2 + $0x40] sm:$0xff] %vm31, 0.0
      %41 = vst.msk [vmem:[#allocation2 + $0x48] sm:$0xff] %vm31, 0.0
      %42 = vst.msk [vmem:[#allocation2 + $0x50] sm:$0xff] %vm31, 0.0
      %43 = vst.msk [vmem:[#allocation2 + $0x58] sm:$0xff] %vm31, 0.0
      %44 = vst.msk [vmem:[#allocation2 + $0x60] sm:$0xff] %vm31, 0.0
      %45 = vst.msk [vmem:[#allocation2 + $0x68] sm:$0xff] %vm31, 0.0
      %46 = vst.msk [vmem:[#allocation2 + $0x70] sm:$0xff] %vm31, 0.0
      %47 = vst.msk [vmem:[#allocation2 + $0x78] sm:$0xff] %vm31, 0.0
    $region21: #{patch_conv_encoder_forward.8} parent=1 // pred_fallthru
      _
    %v48 = vld [vmem:[#allocation2] sm:$0xff]
    %v49 = vld [vmem:[#allocation2 + $0x8] sm:$0xff]
    %v50 = vld [vmem:[#allocation2 + $0x10] sm:$0xff]
    %v51 = vld [vmem:[#allocation2 + $0x18] sm:$0xff]
    %v52 = vld [vmem:[#allocation2 + $0x20] sm:$0xff]
    %v53 = vld [vmem:[#allocation2 + $0x28] sm:$0xff]
    %v54 = vld [vmem:[#allocation2 + $0x30] sm:$0xff]
    %v55 = vld [vmem:[#allocation2 + $0x38] sm:$0xff]
    %v56 = vld [vmem:[#allocation2 + $0x40] sm:$0xff]
    %v57 = vld [vmem:[#allocation2 + $0x48] sm:$0xff]
    %v58 = vld [vmem:[#allocation2 + $0x50] sm:$0xff]
    %v59 = vld [vmem:[#allocation2 + $0x58] sm:$0xff]
    %v60 = vld [vmem:[#allocation2 + $0x60] sm:$0xff]
    %v61 = vld [vmem:[#allocation2 + $0x68] sm:$0xff]
    %v62 = vld [vmem:[#allocation2 + $0x70] sm:$0xff]
    %v63 = vld [vmem:[#allocation2 + $0x78] sm:$0xff]
    %v64 = vld [vmem:[%s0] sm:$0xf]
    %v65 = vld [vmem:[%s0 + $0x4] sm:$0xf]
    %v66 = vld [vmem:[%s0 + $0x8] sm:$0xf]
    %v67 = vld [vmem:[%s0 + $0xc] sm:$0xf]
    %v68 = vld [vmem:[%s0 + $0x10] sm:$0xf]
    %v69 = vld [vmem:[%s0 + $0x14] sm:$0xf]
    %v70 = vld [vmem:[%s0 + $0x18] sm:$0xf]
    %v71 = vld [vmem:[%s0 + $0x1c] sm:$0xf]
    %v72 = vld [vmem:[%s0 + $0x20] sm:$0xf]
    %v73 = vld [vmem:[%s0 + $0x24] sm:$0xf]
    %v74 = vld [vmem:[%s0 + $0x28] sm:$0xf]
    %v75 = vld [vmem:[%s0 + $0x2c] sm:$0xf]
    %v76 = vld [vmem:[%s0 + $0x30] sm:$0xf]
    %v77 = vld [vmem:[%s0 + $0x34] sm:$0xf]
    %v78 = vld [vmem:[%s0 + $0x38] sm:$0xf]
    %v79 = vld [vmem:[%s0 + $0x3c] sm:$0xf]
    %v80 = vld [vmem:[%s1] sm:$0xf]
    %v81 = vld [vmem:[%s1 + $0x4] sm:$0xf]
    %v82 = vld [vmem:[%s1 + $0x8] sm:$0xf]
    %v83 = vld [vmem:[%s1 + $0xc] sm:$0x3]
    %v100 = vunpack.c.l.b16 %v64
    %v101 = vunpack.c.l.b16 %v65
    %v102 = vunpack.c.l.b16 %v66
    %v103 = vunpack.c.l.b16 %v67
    %v104 = vunpack.c.l.b16 %v68
    %v105 = vunpack.c.l.b16 %v69
    %v106 = vunpack.c.l.b16 %v70
    %v107 = vunpack.c.l.b16 %v71
    %v108 = vunpack.c.l.b16 %v72
    %v109 = vunpack.c.l.b16 %v73
    %v110 = vunpack.c.l.b16 %v74
    %v111 = vunpack.c.l.b16 %v75
    %v112 = vunpack.c.l.b16 %v76
    %v113 = vunpack.c.l.b16 %v77
    %v114 = vunpack.c.l.b16 %v78
    %v115 = vunpack.c.l.b16 %v79
    %v116 = vpack.c.b16 %v101, %v100
    %v117 = vpack.c.b16 %v103, %v102
    %v118 = vpack.c.b16 %v105, %v104
    %v119 = vpack.c.b16 %v107, %v106
    %v120 = vpack.c.b16 %v109, %v108
    %v121 = vpack.c.b16 %v111, %v110
    %v122 = vpack.c.b16 %v113, %v112
    %v123 = vpack.c.b16 %v115, %v114
    %v128 = vunpack.c.l.b16 %v80
    %v129 = vunpack.c.l.b16 %v81
    %v130 = vunpack.c.l.b16 %v82
    %v131 = vunpack.c.l.b16 %v83
    %v132 = vpack.c.b16 %v129, %v128
    %v133 = vpack.c.b16 %v131, %v130
    %vm135 = vcmask 220160
    %v137 = vsel %vm135, %v116, 0
    %v140 = vsel %vm135, %v117, 0
    %v143 = vsel %vm135, %v118, 0
    %v146 = vsel %vm135, %v119, 0
    %v149 = vsel %vm135, %v120, 0
    %v152 = vsel %vm135, %v121, 0
    %v155 = vsel %vm135, %v122, 0
    %v158 = vsel %vm135, %v123, 0
    %vm160 = vcmask 1044480
    %vm161 = vcmask 1045504
    %v162 = vsel %vm160, 4294967295, 65535
    %v163 = vsel %vm161, %v162, 0
    %v165 = vand.u32 %v133, %v163
    %167 = vmatprep.subr.bf16.mxu0 0
    %168 = vmatpush1.bf16.msra.mxu0 0
    %169 = vmatprep.subr.bf16.mxu0 0
    %170 = vmatpush1.bf16.msra.mxu0 0
    %171 = vmatprep.subr.bf16.mxu0 0
    %172 = vmatpush1.bf16.msra.mxu0 0
    %173 = vmatprep.subr.bf16.mxu0 0
    %174 = vmatpush1.bf16.msra.mxu0 0
    %175 = vmatprep.subr.bf16.mxu0 0
    %176 = vmatpush1.bf16.msra.mxu0 0
    %177 = vmatprep.subr.bf16.mxu0 0
    %178 = vmatpush1.bf16.msra.mxu0 0
    %179 = vmatprep.subr.bf16.mxu0 0
    %180 = vmatpush1.bf16.msra.mxu0 %v165
    %181 = vmatprep.subr.bf16.mxu0 0
    %182 = vmatpush1.bf16.msra.mxu0 %v132
    %183 = vmatprep.subr.bf16.mxu0 0
    %184 = vmatpush2.bf16.msra.mxu0 0
    %185 = vmatprep.subr.bf16.mxu0 0
    %186 = vmatpush2.bf16.msra.mxu0 0
    %187 = vmatprep.subr.bf16.mxu0 0
    %188 = vmatpush2.bf16.msra.mxu0 0
    %189 = vmatprep.subr.bf16.mxu0 0
    %190 = vmatpush2.bf16.msra.mxu0 0
    %191 = vmatprep.subr.bf16.mxu0 0
    %192 = vmatpush2.bf16.msra.mxu0 0
    %193 = vmatprep.subr.bf16.mxu0 0
    %194 = vmatpush2.bf16.msra.mxu0 0
    %195 = vmatprep.subr.bf16.mxu0 0
    %196 = vmatpush2.bf16.msra.mxu0 0
    %197 = vmatprep.subr.bf16.mxu0 0
    %198 = vmatpush2.bf16.msra.mxu0 0
    %199 = vmatprep.mubr.bf16.mxu0 0
    %200 = vmatmul.mubr.bf16.gmra.mxu0 %v137
    %v201 = vpop.f32.mrf.mxu0
    %v202 = vadd.f32 0.0, %v201
    %v203 = vpop.f32.mrf.mxu0
    %v204 = vpop.f32.mrf.mxu0
    %v205 = vadd.f32 0.0, %v204
    %v206 = vpop.f32.mrf.mxu0
    %207 = vmatprep.mubr.bf16.mxu0 0
    %208 = vmatmul.mubr.bf16.gmra.mxu0 %v140
    %v209 = vpop.f32.mrf.mxu0
    %v210 = vadd.f32 0.0, %v209
    %v211 = vpop.f32.mrf.mxu0
    %v212 = vpop.f32.mrf.mxu0
    %v213 = vadd.f32 0.0, %v212
    %v214 = vpop.f32.mrf.mxu0
    %215 = vmatprep.mubr.bf16.mxu0 0
    %216 = vmatmul.mubr.bf16.gmra.mxu0 %v143
    %v217 = vpop.f32.mrf.mxu0
    %v218 = vadd.f32 0.0, %v217
    %v219 = vpop.f32.mrf.mxu0
    %v220 = vpop.f32.mrf.mxu0
    %v221 = vadd.f32 0.0, %v220
    %v222 = vpop.f32.mrf.mxu0
    %223 = vmatprep.mubr.bf16.mxu0 0
    %224 = vmatmul.mubr.bf16.gmra.mxu0 %v146
    %v225 = vpop.f32.mrf.mxu0
    %v226 = vadd.f32 0.0, %v225
    %v227 = vpop.f32.mrf.mxu0
    %v228 = vpop.f32.mrf.mxu0
    %v229 = vadd.f32 0.0, %v228
    %v230 = vpop.f32.mrf.mxu0
    %231 = vmatprep.mubr.bf16.mxu0 0
    %232 = vmatmul.mubr.bf16.gmra.mxu0 %v149
    %v233 = vpop.f32.mrf.mxu0
    %v234 = vadd.f32 0.0, %v233
    %v235 = vpop.f32.mrf.mxu0
    %v236 = vpop.f32.mrf.mxu0
    %v237 = vadd.f32 0.0, %v236
    %v238 = vpop.f32.mrf.mxu0
    %239 = vmatprep.mubr.bf16.mxu0 0
    %240 = vmatmul.mubr.bf16.gmra.mxu0 %v152
    %v241 = vpop.f32.mrf.mxu0
    %v242 = vadd.f32 0.0, %v241
    %v243 = vpop.f32.mrf.mxu0
    %v244 = vpop.f32.mrf.mxu0
    %v245 = vadd.f32 0.0, %v244
    %v246 = vpop.f32.mrf.mxu0
    %247 = vmatprep.mubr.bf16.mxu0 0
    %248 = vmatmul.mubr.bf16.gmra.mxu0 %v155
    %v249 = vpop.f32.mrf.mxu0
    %v250 = vadd.f32 0.0, %v249
    %v251 = vpop.f32.mrf.mxu0
    %v252 = vpop.f32.mrf.mxu0
    %v253 = vadd.f32 0.0, %v252
    %v254 = vpop.f32.mrf.mxu0
    %255 = vmatprep.mubr.bf16.mxu0 0
    %256 = vmatmul.mubr.bf16.gmra.mxu0 %v158
    %v257 = vpop.f32.mrf.mxu0
    %v258 = vadd.f32 0.0, %v257
    %v259 = vpop.f32.mrf.mxu0
    %v260 = vpop.f32.mrf.mxu0
    %v261 = vadd.f32 0.0, %v260
    %v262 = vpop.f32.mrf.mxu0
    %263 = vdwg.mxu0
    %v264 = vadd.f32 %v48, %v202
    %v265 = vadd.f32 %v49, %v205
    %v266 = vadd.f32 %v50, %v210
    %v267 = vadd.f32 %v51, %v213
    %v268 = vadd.f32 %v52, %v218
    %v269 = vadd.f32 %v53, %v221
    %v270 = vadd.f32 %v54, %v226
    %v271 = vadd.f32 %v55, %v229
    %v272 = vadd.f32 %v56, %v234
    %v273 = vadd.f32 %v57, %v237
    %v274 = vadd.f32 %v58, %v242
    %v275 = vadd.f32 %v59, %v245
    %v276 = vadd.f32 %v60, %v250
    %v277 = vadd.f32 %v61, %v253
    %v278 = vadd.f32 %v62, %v258
    %v279 = vadd.f32 %v63, %v261
    %vm280 = vcmask 523264
    %281 = vst.msk [vmem:[#allocation2] sm:$0xff] %vm280, %v264
    %282 = vst.msk [vmem:[#allocation2 + $0x8] sm:$0xff] %vm280, %v265
    %283 = vst.msk [vmem:[#allocation2 + $0x10] sm:$0xff] %vm280, %v266
    %284 = vst.msk [vmem:[#allocation2 + $0x18] sm:$0xff] %vm280, %v267
    %285 = vst.msk [vmem:[#allocation2 + $0x20] sm:$0xff] %vm280, %v268
    %286 = vst.msk [vmem:[#allocation2 + $0x28] sm:$0xff] %vm280, %v269
    %287 = vst.msk [vmem:[#allocation2 + $0x30] sm:$0xff] %vm280, %v270
    %288 = vst.msk [vmem:[#allocation2 + $0x38] sm:$0xff] %vm280, %v271
    %289 = vst.msk [vmem:[#allocation2 + $0x40] sm:$0xff] %vm280, %v272
    %290 = vst.msk [vmem:[#allocation2 + $0x48] sm:$0xff] %vm280, %v273
    %291 = vst.msk [vmem:[#allocation2 + $0x50] sm:$0xff] %vm280, %v274
    %292 = vst.msk [vmem:[#allocation2 + $0x58] sm:$0xff] %vm280, %v275
    %293 = vst.msk [vmem:[#allocation2 + $0x60] sm:$0xff] %vm280, %v276
    %294 = vst.msk [vmem:[#allocation2 + $0x68] sm:$0xff] %vm280, %v277
    %295 = vst.msk [vmem:[#allocation2 + $0x70] sm:$0xff] %vm280, %v278
    %296 = vst.msk [vmem:[#allocation2 + $0x78] sm:$0xff] %vm280, %v279
    // Predicated region
    $region22: #{patch_conv_encoder_forward.8} parent=1 // pred_check
      %p297 = pneg %p27
    $region23: #{patch_conv_encoder_forward.8} parent=1 // pred_check_branch
      %299 = sbr.rel (%p297) target = $region25
    $region24: #{patch_conv_encoder_forward.8} parent=1 // pred_region
      %v300 = vld [vmem:[#allocation2] sm:$0xff]
      %v301 = vld [vmem:[#allocation2 + $0x8] sm:$0xff]
      %v302 = vld [vmem:[#allocation2 + $0x10] sm:$0xff]
      %v303 = vld [vmem:[#allocation2 + $0x18] sm:$0xff]
      %v304 = vld [vmem:[#allocation2 + $0x20] sm:$0xff]
      %v305 = vld [vmem:[#allocation2 + $0x28] sm:$0xff]
      %v306 = vld [vmem:[#allocation2 + $0x30] sm:$0xff]
      %v307 = vld [vmem:[#allocation2 + $0x38] sm:$0xff]
      %v308 = vld [vmem:[#allocation2 + $0x40] sm:$0xff]
      %v309 = vld [vmem:[#allocation2 + $0x48] sm:$0xff]
      %v310 = vld [vmem:[#allocation2 + $0x50] sm:$0xff]
      %v311 = vld [vmem:[#allocation2 + $0x58] sm:$0xff]
      %v312 = vld [vmem:[#allocation2 + $0x60] sm:$0xff]
      %v313 = vld [vmem:[#allocation2 + $0x68] sm:$0xff]
      %v314 = vld [vmem:[#allocation2 + $0x70] sm:$0xff]
      %v315 = vld [vmem:[#allocation2 + $0x78] sm:$0xff]
      %v316 = vld [vmem:[#allocation3] sm:$0x1]
      %v318 = vlaneseq
      %v319 = vshrl.u32 %v318, 7
      %v320 = vsub.s32 0, %v319
      %v321 = vrot.slane %v316, %v320
      %v323 = vadd.f32 %v300, %v321
      %v324 = vadd.f32 %v301, %v321
      %v325 = vadd.f32 %v302, %v321
      %v326 = vadd.f32 %v303, %v321
      %v327 = vadd.f32 %v304, %v321
      %v328 = vadd.f32 %v305, %v321
      %v329 = vadd.f32 %v306, %v321
      %v330 = vadd.f32 %v307, %v321
      %v331 = vadd.f32 %v308, %v321
      %v332 = vadd.f32 %v309, %v321
      %v333 = vadd.f32 %v310, %v321
      %v334 = vadd.f32 %v311, %v321
      %v335 = vadd.f32 %v312, %v321
      %v336 = vadd.f32 %v313, %v321
      %v337 = vadd.f32 %v314, %v321
      %v338 = vadd.f32 %v315, %v321
      %v339 = vmax.f32 %v323, 0.0
      %v340 = vmax.f32 %v324, 0.0
      %v341 = vmax.f32 %v325, 0.0
      %v342 = vmax.f32 %v326, 0.0
      %v343 = vmax.f32 %v327, 0.0
      %v344 = vmax.f32 %v328, 0.0
      %v345 = vmax.f32 %v329, 0.0
      %v346 = vmax.f32 %v330, 0.0
      %v347 = vmax.f32 %v331, 0.0
      %v348 = vmax.f32 %v332, 0.0
      %v349 = vmax.f32 %v333, 0.0
      %v350 = vmax.f32 %v334, 0.0
      %v351 = vmax.f32 %v335, 0.0
      %v352 = vmax.f32 %v336, 0.0
      %v353 = vmax.f32 %v337, 0.0
      %v354 = vmax.f32 %v338, 0.0
      %355 = vst.msk [vmem:[%s3] sm:$0xff] %vm280, %v339
      %356 = vst.msk [vmem:[%s3 + $0x8] sm:$0xff] %vm280, %v340
      %357 = vst.msk [vmem:[%s3 + $0x10] sm:$0xff] %vm280, %v341
      %358 = vst.msk [vmem:[%s3 + $0x18] sm:$0xff] %vm280, %v342
      %359 = vst.msk [vmem:[%s3 + $0x20] sm:$0xff] %vm280, %v343
      %360 = vst.msk [vmem:[%s3 + $0x28] sm:$0xff] %vm280, %v344
      %361 = vst.msk [vmem:[%s3 + $0x30] sm:$0xff] %vm280, %v345
      %362 = vst.msk [vmem:[%s3 + $0x38] sm:$0xff] %vm280, %v346
      %363 = vst.msk [vmem:[%s3 + $0x40] sm:$0xff] %vm280, %v347
      %364 = vst.msk [vmem:[%s3 + $0x48] sm:$0xff] %vm280, %v348
      %365 = vst.msk [vmem:[%s3 + $0x50] sm:$0xff] %vm280, %v349
      %366 = vst.msk [vmem:[%s3 + $0x58] sm:$0xff] %vm280, %v350
      %367 = vst.msk [vmem:[%s3 + $0x60] sm:$0xff] %vm280, %v351
      %368 = vst.msk [vmem:[%s3 + $0x68] sm:$0xff] %vm280, %v352
      %369 = vst.msk [vmem:[%s3 + $0x70] sm:$0xff] %vm280, %v353
      %370 = vst.msk [vmem:[%s3 + $0x78] sm:$0xff] %vm280, %v354
    $region25: #{patch_conv_encoder_forward.8} parent=1 // pred_fallthru
      _
    // Predicated region
    $region26: #{patch_conv_encoder_forward.8} parent=1 // pred_check
      _
    $region27: #{patch_conv_encoder_forward.8} parent=1 // pred_check_branch
      %372 = sbr.rel (0) target = $region29
    $region28: #{patch_conv_encoder_forward.8} parent=1 // pred_region
      _
    $region29: #{patch_conv_encoder_forward.8} parent=1 // pred_fallthru
      _
    // Predicated region
    $region30: #{patch_conv_encoder_forward.8} parent=1 // pred_check
      _
    $region31: #{patch_conv_encoder_forward.8} parent=1 // pred_check_branch
      %374 = sbr.rel (0) target = $region33
    $region32: #{patch_conv_encoder_forward.8} parent=1 // pred_region
      _
    $region33: #{patch_conv_encoder_forward.8} parent=1 // pred_fallthru
      _
    %375 = vsyncpa [#allocation4], 1

// kernel: patch_conv_encoder_forward.9
$region0: #{patch_conv_encoder_forward.9}
  #allocation0 [shape = 'u32[]', space=smem, size = 0x4, offset = 0x4, fixed_abs, tag = 'smem constant byte address 0x4 - core index']
  #allocation1 [shape = 'u32[144,128]{1,0:T(1,128)}', space=vmem, size = 0x12000, scoped, tag = 'internal scratch']
  #allocation2 [shape = 'f32[32,128]{1,0:T(8,128)}', space=vmem, size = 0x4000, scoped, tag = 'scratch operand']
  %s0 = inlined_call_operand.vmem [shape: bf16[32,576], index: 0, kind: input, shape index: {}]
  %s1 = inlined_call_operand.vmem [shape: bf16[576,128], index: 1, kind: input, shape index: {}]
  %s2 = inlined_call_operand.vmem [shape: f32[1,128], index: 2, kind: input, shape index: {}]
  %s3 = inlined_call_operand.vmem [shape: f32[32,128], index: 3, kind: output, shape index: {}]
  %s4 = sld [smem:[#allocation0]]
  $region30: #{patch_conv_encoder_forward.9} parent=0
    _
  %s6 = ssub.s32 1, %s4
  %s7 = scalar_select 0, %s6, %s4
  // Predicated region
  $region2: #{patch_conv_encoder_forward.9} parent=0 // pred_check
    _
  $region3: #{patch_conv_encoder_forward.9} parent=0 // pred_check_branch
    %9 = sbr.rel (0) target = $region5
  $region4: #{patch_conv_encoder_forward.9} parent=0 // pred_region
    _
  $region5: #{patch_conv_encoder_forward.9} parent=0 // pred_fallthru
    _
  // Predicated region
  $region6: #{patch_conv_encoder_forward.9} parent=0 // pred_check
    _
  $region7: #{patch_conv_encoder_forward.9} parent=0 // pred_check_branch
    %11 = sbr.rel (0) target = $region9
  $region8: #{patch_conv_encoder_forward.9} parent=0 // pred_region
    _
  $region9: #{patch_conv_encoder_forward.9} parent=0 // pred_fallthru
    _
  // Predicated region
  $region10: #{patch_conv_encoder_forward.9} parent=0 // pred_check
    _
  $region11: #{patch_conv_encoder_forward.9} parent=0 // pred_check_branch
    %13 = sbr.rel (0) target = $region13
  $region12: #{patch_conv_encoder_forward.9} parent=0 // pred_region
    _
  $region13: #{patch_conv_encoder_forward.9} parent=0 // pred_fallthru
    _
  %p15 = scmp.eq.s32.totalorder 0, 0
  // Predicated region
  $region14: #{patch_conv_encoder_forward.9} parent=0 // pred_check
    %p16 = pneg %p15
  $region15: #{patch_conv_encoder_forward.9} parent=0 // pred_check_branch
    %18 = sbr.rel (%p16) target = $region17
  $region16: #{patch_conv_encoder_forward.9} parent=0 // pred_region
    %19 = vst [vmem:[#allocation2] sm:$0xff] 0.0
    %20 = vst [vmem:[#allocation2 + $0x8] sm:$0xff] 0.0
    %21 = vst [vmem:[#allocation2 + $0x10] sm:$0xff] 0.0
    %22 = vst [vmem:[#allocation2 + $0x18] sm:$0xff] 0.0
  $region17: #{patch_conv_encoder_forward.9} parent=0 // pred_fallthru
    _
  %v23 = vld [vmem:[#allocation2] sm:$0xff]
  %v24 = vld [vmem:[#allocation2 + $0x8] sm:$0xff]
  %v25 = vld [vmem:[#allocation2 + $0x10] sm:$0xff]
  %v26 = vld [vmem:[#allocation2 + $0x18] sm:$0xff]
  %v27 = vld [vmem:[%s0] sm:$0xff]
  %v28 = vld [vmem:[%s0 + $0x8] sm:$0xff]
  %v29 = vld [vmem:[%s0 + $0x10] sm:$0xf]
  %v30 = vld [vmem:[%s0 + $0x14] sm:$0xff]
  %v31 = vld [vmem:[%s0 + $0x1c] sm:$0xff]
  %v32 = vld [vmem:[%s0 + $0x24] sm:$0xf]
  %v33 = vld [vmem:[%s0 + $0x28] sm:$0xff]
  %v34 = vld [vmem:[%s0 + $0x30] sm:$0xff]
  %v35 = vld [vmem:[%s0 + $0x38] sm:$0xf]
  %v36 = vld [vmem:[%s0 + $0x3c] sm:$0xff]
  %v37 = vld [vmem:[%s0 + $0x44] sm:$0xff]
  %v38 = vld [vmem:[%s0 + $0x4c] sm:$0xf]
  %v39 = vld [vmem:[%s1] sm:$0xf]
  %v40 = vld [vmem:[%s1 + $0x4] sm:$0xf]
  %v41 = vld [vmem:[%s1 + $0x8] sm:$0xf]
  %v42 = vld [vmem:[%s1 + $0xc] sm:$0xf]
  %v43 = vld [vmem:[%s1 + $0x10] sm:$0xf]
  %v44 = vld [vmem:[%s1 + $0x14] sm:$0xf]
  %v45 = vld [vmem:[%s1 + $0x18] sm:$0xf]
  %v46 = vld [vmem:[%s1 + $0x1c] sm:$0xf]
  %v47 = vld [vmem:[%s1 + $0x20] sm:$0xf]
  %v48 = vld [vmem:[%s1 + $0x24] sm:$0xf]
  %v49 = vld [vmem:[%s1 + $0x28] sm:$0xf]
  %v50 = vld [vmem:[%s1 + $0x2c] sm:$0xf]
  %v51 = vld [vmem:[%s1 + $0x30] sm:$0xf]
  %v52 = vld [vmem:[%s1 + $0x34] sm:$0xf]
  %v53 = vld [vmem:[%s1 + $0x38] sm:$0xf]
  %v54 = vld [vmem:[%s1 + $0x3c] sm:$0xf]
  %v55 = vld [vmem:[%s1 + $0x40] sm:$0xf]
  %v56 = vld [vmem:[%s1 + $0x44] sm:$0xf]
  %v57 = vld [vmem:[%s1 + $0x48] sm:$0xf]
  %v58 = vld [vmem:[%s1 + $0x4c] sm:$0xf]
  %v59 = vld [vmem:[%s1 + $0x50] sm:$0xf]
  %v60 = vld [vmem:[%s1 + $0x54] sm:$0xf]
  %v61 = vld [vmem:[%s1 + $0x58] sm:$0xf]
  %v62 = vld [vmem:[%s1 + $0x5c] sm:$0xf]
  %v63 = vld [vmem:[%s1 + $0x60] sm:$0xf]
  %v64 = vld [vmem:[%s1 + $0x64] sm:$0xf]
  %v65 = vld [vmem:[%s1 + $0x68] sm:$0xf]
  %v66 = vld [vmem:[%s1 + $0x6c] sm:$0xf]
  %v67 = vld [vmem:[%s1 + $0x70] sm:$0xf]
  %v68 = vld [vmem:[%s1 + $0x74] sm:$0xf]
  %v69 = vld [vmem:[%s1 + $0x78] sm:$0xf]
  %v70 = vld [vmem:[%s1 + $0x7c] sm:$0xf]
  %v71 = vld [vmem:[%s1 + $0x80] sm:$0xf]
  %v72 = vld [vmem:[%s1 + $0x84] sm:$0xf]
  %v73 = vld [vmem:[%s1 + $0x88] sm:$0xf]
  %v74 = vld [vmem:[%s1 + $0x8c] sm:$0xf]
  %v75 = vld [vmem:[%s1 + $0x90] sm:$0xf]
  %v76 = vld [vmem:[%s1 + $0x94] sm:$0xf]
  %v77 = vld [vmem:[%s1 + $0x98] sm:$0xf]
  %v78 = vld [vmem:[%s1 + $0x9c] sm:$0xf]
  %v79 = vld [vmem:[%s1 + $0xa0] sm:$0xf]
  %v80 = vld [vmem:[%s1 + $0xa4] sm:$0xf]
  %v81 = vld [vmem:[%s1 + $0xa8] sm:$0xf]
  %v82 = vld [vmem:[%s1 + $0xac] sm:$0xf]
  %v83 = vld [vmem:[%s1 + $0xb0] sm:$0xf]
  %v84 = vld [vmem:[%s1 + $0xb4] sm:$0xf]
  %v85 = vld [vmem:[%s1 + $0xb8] sm:$0xf]
  %v86 = vld [vmem:[%s1 + $0xbc] sm:$0xf]
  %v87 = vld [vmem:[%s1 + $0xc0] sm:$0xf]
  %v88 = vld [vmem:[%s1 + $0xc4] sm:$0xf]
  %v89 = vld [vmem:[%s1 + $0xc8] sm:$0xf]
  %v90 = vld [vmem:[%s1 + $0xcc] sm:$0xf]
  %v91 = vld [vmem:[%s1 + $0xd0] sm:$0xf]
  %v92 = vld [vmem:[%s1 + $0xd4] sm:$0xf]
  %v93 = vld [vmem:[%s1 + $0xd8] sm:$0xf]
  %v94 = vld [vmem:[%s1 + $0xdc] sm:$0xf]
  %v95 = vld [vmem:[%s1 + $0xe0] sm:$0xf]
  %v96 = vld [vmem:[%s1 + $0xe4] sm:$0xf]
  %v97 = vld [vmem:[%s1 + $0xe8] sm:$0xf]
  %v98 = vld [vmem:[%s1 + $0xec] sm:$0xf]
  %v99 = vld [vmem:[%s1 + $0xf0] sm:$0xf]
  %v100 = vld [vmem:[%s1 + $0xf4] sm:$0xf]
  %v101 = vld [vmem:[%s1 + $0xf8] sm:$0xf]
  %v102 = vld [vmem:[%s1 + $0xfc] sm:$0xf]
  %v103 = vld [vmem:[%s1 + $0x100] sm:$0xf]
  %v104 = vld [vmem:[%s1 + $0x104] sm:$0xf]
  %v105 = vld [vmem:[%s1 + $0x108] sm:$0xf]
  %v106 = vld [vmem:[%s1 + $0x10c] sm:$0xf]
  %v107 = vld [vmem:[%s1 + $0x110] sm:$0xf]
  %v108 = vld [vmem:[%s1 + $0x114] sm:$0xf]
  %v109 = vld [vmem:[%s1 + $0x118] sm:$0xf]
  %v110 = vld [vmem:[%s1 + $0x11c] sm:$0xf]
  %v123 = vunpack.c.l.b16 %v27
  %v124 = vunpack.c.h.b16 %v27
  %v125 = vunpack.c.l.b16 %v28
  %v126 = vunpack.c.h.b16 %v28
  %v127 = vunpack.c.l.b16 %v29
  %v128 = vunpack.c.l.b16 %v30
  %v129 = vunpack.c.h.b16 %v30
  %v130 = vunpack.c.l.b16 %v31
  %v131 = vunpack.c.h.b16 %v31
  %v132 = vunpack.c.l.b16 %v32
  %v133 = vunpack.c.l.b16 %v33
  %v134 = vunpack.c.h.b16 %v33
  %v135 = vunpack.c.l.b16 %v34
  %v136 = vunpack.c.h.b16 %v34
  %v137 = vunpack.c.l.b16 %v35
  %v138 = vunpack.c.l.b16 %v36
  %v139 = vunpack.c.h.b16 %v36
  %v140 = vunpack.c.l.b16 %v37
  %v141 = vunpack.c.h.b16 %v37
  %v142 = vunpack.c.l.b16 %v38
  %v143 = vpack.c.b16 %v128, %v123
  %v144 = vpack.c.b16 %v129, %v124
  %v145 = vpack.c.b16 %v130, %v125
  %v146 = vpack.c.b16 %v131, %v126
  %v147 = vpack.c.b16 %v132, %v127
  %v148 = vpack.c.b16 %v138, %v133
  %v149 = vpack.c.b16 %v139, %v134
  %v150 = vpack.c.b16 %v140, %v135
  %v151 = vpack.c.b16 %v141, %v136
  %v152 = vpack.c.b16 %v142, %v137
  %v233 = vunpack.c.l.b16 %v39
  %v234 = vunpack.c.l.b16 %v40
  %v235 = vunpack.c.l.b16 %v41
  %v236 = vunpack.c.l.b16 %v42
  %v237 = vunpack.c.l.b16 %v43
  %v238 = vunpack.c.l.b16 %v44
  %v239 = vunpack.c.l.b16 %v45
  %v240 = vunpack.c.l.b16 %v46
  %v241 = vunpack.c.l.b16 %v47
  %v242 = vunpack.c.l.b16 %v48
  %v243 = vunpack.c.l.b16 %v49
  %v244 = vunpack.c.l.b16 %v50
  %v245 = vunpack.c.l.b16 %v51
  %v246 = vunpack.c.l.b16 %v52
  %v247 = vunpack.c.l.b16 %v53
  %v248 = vunpack.c.l.b16 %v54
  %v249 = vunpack.c.l.b16 %v55
  %v250 = vunpack.c.l.b16 %v56
  %v251 = vunpack.c.l.b16 %v57
  %v252 = vunpack.c.l.b16 %v58
  %v253 = vunpack.c.l.b16 %v59
  %v254 = vunpack.c.l.b16 %v60
  %v255 = vunpack.c.l.b16 %v61
  %v256 = vunpack.c.l.b16 %v62
  %v257 = vunpack.c.l.b16 %v63
  %v258 = vunpack.c.l.b16 %v64
  %v259 = vunpack.c.l.b16 %v65
  %v260 = vunpack.c.l.b16 %v66
  %v261 = vunpack.c.l.b16 %v67
  %v262 = vunpack.c.l.b16 %v68
  %v263 = vunpack.c.l.b16 %v69
  %v264 = vunpack.c.l.b16 %v70
  %v265 = vunpack.c.l.b16 %v71
  %v266 = vunpack.c.l.b16 %v72
  %v267 = vunpack.c.l.b16 %v73
  %v268 = vunpack.c.l.b16 %v74
  %v269 = vunpack.c.l.b16 %v75
  %v270 = vunpack.c.l.b16 %v76
  %v271 = vunpack.c.l.b16 %v77
  %v272 = vunpack.c.l.b16 %v78
  %v273 = vunpack.c.l.b16 %v79
  %v274 = vunpack.c.l.b16 %v80
  %v275 = vunpack.c.l.b16 %v81
  %v276 = vunpack.c.l.b16 %v82
  %v277 = vunpack.c.l.b16 %v83
  %v278 = vunpack.c.l.b16 %v84
  %v279 = vunpack.c.l.b16 %v85
  %v280 = vunpack.c.l.b16 %v86
  %v281 = vunpack.c.l.b16 %v87
  %v282 = vunpack.c.l.b16 %v88
  %v283 = vunpack.c.l.b16 %v89
  %v284 = vunpack.c.l.b16 %v90
  %v285 = vunpack.c.l.b16 %v91
  %v286 = vunpack.c.l.b16 %v92
  %v287 = vunpack.c.l.b16 %v93
  %v288 = vunpack.c.l.b16 %v94
  %v289 = vunpack.c.l.b16 %v95
  %v290 = vunpack.c.l.b16 %v96
  %v291 = vunpack.c.l.b16 %v97
  %v292 = vunpack.c.l.b16 %v98
  %v293 = vunpack.c.l.b16 %v99
  %v294 = vunpack.c.l.b16 %v100
  %v295 = vunpack.c.l.b16 %v101
  %v296 = vunpack.c.l.b16 %v102
  %v297 = vunpack.c.l.b16 %v103
  %v298 = vunpack.c.l.b16 %v104
  %v299 = vunpack.c.l.b16 %v105
  %v300 = vunpack.c.l.b16 %v106
  %v301 = vunpack.c.l.b16 %v107
  %v302 = vunpack.c.l.b16 %v108
  %v303 = vunpack.c.l.b16 %v109
  %v304 = vunpack.c.l.b16 %v110
  %v305 = vpack.c.b16 %v234, %v233
  %v306 = vpack.c.b16 %v236, %v235
  %v307 = vpack.c.b16 %v238, %v237
  %v308 = vpack.c.b16 %v240, %v239
  %v309 = vpack.c.b16 %v242, %v241
  %v310 = vpack.c.b16 %v244, %v243
  %v311 = vpack.c.b16 %v246, %v245
  %v312 = vpack.c.b16 %v248, %v247
  %v313 = vpack.c.b16 %v250, %v249
  %v314 = vpack.c.b16 %v252, %v251
  %v315 = vpack.c.b16 %v254, %v253
  %v316 = vpack.c.b16 %v256, %v255
  %v317 = vpack.c.b16 %v258, %v257
  %v318 = vpack.c.b16 %v260, %v259
  %v319 = vpack.c.b16 %v262, %v261
  %v320 = vpack.c.b16 %v264, %v263
  %v321 = vpack.c.b16 %v266, %v265
  %v322 = vpack.c.b16 %v268, %v267
  %v323 = vpack.c.b16 %v270, %v269
  %v324 = vpack.c.b16 %v272, %v271
  %v325 = vpack.c.b16 %v274, %v273
  %v326 = vpack.c.b16 %v276, %v275
  %v327 = vpack.c.b16 %v278, %v277
  %v328 = vpack.c.b16 %v280, %v279
  %v329 = vpack.c.b16 %v282, %v281
  %v330 = vpack.c.b16 %v284, %v283
  %v331 = vpack.c.b16 %v286, %v285
  %v332 = vpack.c.b16 %v288, %v287
  %v333 = vpack.c.b16 %v290, %v289
  %v334 = vpack.c.b16 %v292, %v291
  %v335 = vpack.c.b16 %v294, %v293
  %v336 = vpack.c.b16 %v296, %v295
  %v337 = vpack.c.b16 %v298, %v297
  %v338 = vpack.c.b16 %v300, %v299
  %v339 = vpack.c.b16 %v302, %v301
  %v340 = vpack.c.b16 %v304, %v303
  %vm377 = vcmask 523264
  %v379 = vsel %vm377, %v147, 0
  %v382 = vsel %vm377, %v152, 0
  %384 = vmatprep.subr.bf16.mxu0 0
  %385 = vmatpush1.bf16.msra.mxu0 %v312
  %386 = vmatprep.subr.bf16.mxu0 0
  %387 = vmatpush1.bf16.msra.mxu0 %v311
  %388 = vmatprep.subr.bf16.mxu0 0
  %389 = vmatpush1.bf16.msra.mxu0 %v310
  %390 = vmatprep.subr.bf16.mxu0 0
  %391 = vmatpush1.bf16.msra.mxu0 %v309
  %392 = vmatprep.subr.bf16.mxu0 0
  %393 = vmatpush1.bf16.msra.mxu0 %v308
  %394 = vmatprep.subr.bf16.mxu0 0
  %395 = vmatpush1.bf16.msra.mxu0 %v307
  %396 = vmatprep.subr.bf16.mxu0 0
  %397 = vmatpush1.bf16.msra.mxu0 %v306
  %398 = vmatprep.subr.bf16.mxu0 0
  %399 = vmatpush1.bf16.msra.mxu0 %v305
  %400 = vmatprep.subr.bf16.mxu0 0
  %401 = vmatpush2.bf16.msra.mxu0 %v320
  %402 = vmatprep.subr.bf16.mxu0 0
  %403 = vmatpush2.bf16.msra.mxu0 %v319
  %404 = vmatprep.subr.bf16.mxu0 0
  %405 = vmatpush2.bf16.msra.mxu0 %v318
  %406 = vmatprep.subr.bf16.mxu0 0
  %407 = vmatpush2.bf16.msra.mxu0 %v317
  %408 = vmatprep.subr.bf16.mxu0 0
  %409 = vmatpush2.bf16.msra.mxu0 %v316
  %410 = vmatprep.subr.bf16.mxu0 0
  %411 = vmatpush2.bf16.msra.mxu0 %v315
  %412 = vmatprep.subr.bf16.mxu0 0
  %413 = vmatpush2.bf16.msra.mxu0 %v314
  %414 = vmatprep.subr.bf16.mxu0 0
  %415 = vmatpush2.bf16.msra.mxu0 %v313
  %416 = vmatprep.mubr.bf16.mxu0 %v144
  %417 = vmatmul.mubr.bf16.gmra.mxu0 %v143
  %v418 = vpop.f32.mrf.mxu0
  %v419 = vadd.f32 0.0, %v418
  %v420 = vpop.f32.mrf.mxu0
  %v421 = vpop.f32.mrf.mxu0
  %v422 = vadd.f32 0.0, %v421
  %v423 = vpop.f32.mrf.mxu0
  %424 = vmatprep.mubr.bf16.mxu0 %v149
  %425 = vmatmul.mubr.bf16.gmra.mxu0 %v148
  %v426 = vpop.f32.mrf.mxu0
  %v427 = vadd.f32 0.0, %v426
  %v428 = vpop.f32.mrf.mxu0
  %v429 = vpop.f32.mrf.mxu0
  %v430 = vadd.f32 0.0, %v429
  %v431 = vpop.f32.mrf.mxu0
  %432 = vdwg.mxu0
  %433 = vmatprep.subr.bf16.mxu0 0
  %434 = vmatpush1.bf16.msra.mxu0 %v328
  %435 = vmatprep.subr.bf16.mxu0 0
  %436 = vmatpush1.bf16.msra.mxu0 %v327
  %437 = vmatprep.subr.bf16.mxu0 0
  %438 = vmatpush1.bf16.msra.mxu0 %v326
  %439 = vmatprep.subr.bf16.mxu0 0
  %440 = vmatpush1.bf16.msra.mxu0 %v325
  %441 = vmatprep.subr.bf16.mxu0 0
  %442 = vmatpush1.bf16.msra.mxu0 %v324
  %443 = vmatprep.subr.bf16.mxu0 0
  %444 = vmatpush1.bf16.msra.mxu0 %v323
  %445 = vmatprep.subr.bf16.mxu0 0
  %446 = vmatpush1.bf16.msra.mxu0 %v322
  %447 = vmatprep.subr.bf16.mxu0 0
  %448 = vmatpush1.bf16.msra.mxu0 %v321
  %449 = vmatprep.subr.bf16.mxu0 0
  %450 = vmatpush2.bf16.msra.mxu0 %v336
  %451 = vmatprep.subr.bf16.mxu0 0
  %452 = vmatpush2.bf16.msra.mxu0 %v335
  %453 = vmatprep.subr.bf16.mxu0 0
  %454 = vmatpush2.bf16.msra.mxu0 %v334
  %455 = vmatprep.subr.bf16.mxu0 0
  %456 = vmatpush2.bf16.msra.mxu0 %v333
  %457 = vmatprep.subr.bf16.mxu0 0
  %458 = vmatpush2.bf16.msra.mxu0 %v332
  %459 = vmatprep.subr.bf16.mxu0 0
  %460 = vmatpush2.bf16.msra.mxu0 %v331
  %461 = vmatprep.subr.bf16.mxu0 0
  %462 = vmatpush2.bf16.msra.mxu0 %v330
  %463 = vmatprep.subr.bf16.mxu0 0
  %464 = vmatpush2.bf16.msra.mxu0 %v329
  %465 = vmatprep.mubr.bf16.mxu0 %v146
  %466 = vmatmul.mubr.bf16.gmra.mxu0 %v145
  %v467 = vpop.f32.mrf.mxu0
  %v468 = vadd.f32 %v419, %v467
  %v469 = vpop.f32.mrf.mxu0
  %v470 = vpop.f32.mrf.mxu0
  %v471 = vadd.f32 %v422, %v470
  %v472 = vpop.f32.mrf.mxu0
  %473 = vmatprep.mubr.bf16.mxu0 %v151
  %474 = vmatmul.mubr.bf16.gmra.mxu0 %v150
  %v475 = vpop.f32.mrf.mxu0
  %v476 = vadd.f32 %v427, %v475
  %v477 = vpop.f32.mrf.mxu0
  %v478 = vpop.f32.mrf.mxu0
  %v479 = vadd.f32 %v430, %v478
  %v480 = vpop.f32.mrf.mxu0
  %481 = vdwg.mxu0
  %482 = vmatprep.subr.bf16.mxu0 0
  %483 = vmatpush1.bf16.msra.mxu0 0
  %484 = vmatprep.subr.bf16.mxu0 0
  %485 = vmatpush1.bf16.msra.mxu0 0
  %486 = vmatprep.subr.bf16.mxu0 0
  %487 = vmatpush1.bf16.msra.mxu0 0
  %488 = vmatprep.subr.bf16.mxu0 0
  %489 = vmatpush1.bf16.msra.mxu0 0
  %490 = vmatprep.subr.bf16.mxu0 0
  %491 = vmatpush1.bf16.msra.mxu0 %v340
  %492 = vmatprep.subr.bf16.mxu0 0
  %493 = vmatpush1.bf16.msra.mxu0 %v339
  %494 = vmatprep.subr.bf16.mxu0 0
  %495 = vmatpush1.bf16.msra.mxu0 %v338
  %496 = vmatprep.subr.bf16.mxu0 0
  %497 = vmatpush1.bf16.msra.mxu0 %v337
  %498 = vmatprep.subr.bf16.mxu0 0
  %499 = vmatpush2.bf16.msra.mxu0 0
  %500 = vmatprep.subr.bf16.mxu0 0
  %501 = vmatpush2.bf16.msra.mxu0 0
  %502 = vmatprep.subr.bf16.mxu0 0
  %503 = vmatpush2.bf16.msra.mxu0 0
  %504 = vmatprep.subr.bf16.mxu0 0
  %505 = vmatpush2.bf16.msra.mxu0 0
  %506 = vmatprep.subr.bf16.mxu0 0
  %507 = vmatpush2.bf16.msra.mxu0 0
  %508 = vmatprep.subr.bf16.mxu0 0
  %509 = vmatpush2.bf16.msra.mxu0 0
  %510 = vmatprep.subr.bf16.mxu0 0
  %511 = vmatpush2.bf16.msra.mxu0 0
  %512 = vmatprep.subr.bf16.mxu0 0
  %513 = vmatpush2.bf16.msra.mxu0 0
  %514 = vmatprep.mubr.bf16.mxu0 0
  %515 = vmatmul.mubr.bf16.gmra.mxu0 %v379
  %v516 = vpop.f32.mrf.mxu0
  %v517 = vadd.f32 %v468, %v516
  %v518 = vpop.f32.mrf.mxu0
  %v519 = vpop.f32.mrf.mxu0
  %v520 = vadd.f32 %v471, %v519
  %v521 = vpop.f32.mrf.mxu0
  %522 = vmatprep.mubr.bf16.mxu0 0
  %523 = vmatmul.mubr.bf16.gmra.mxu0 %v382
  %v524 = vpop.f32.mrf.mxu0
  %v525 = vadd.f32 %v476, %v524
  %v526 = vpop.f32.mrf.mxu0
  %v527 = vpop.f32.mrf.mxu0
  %v528 = vadd.f32 %v479, %v527
  %v529 = vpop.f32.mrf.mxu0
  %530 = vdwg.mxu0
  %v531 = vadd.f32 %v23, %v517
  %v532 = vadd.f32 %v24, %v520
  %v533 = vadd.f32 %v25, %v525
  %v534 = vadd.f32 %v26, %v528
  %535 = vst [vmem:[#allocation2] sm:$0xff] %v531
  %536 = vst [vmem:[#allocation2 + $0x8] sm:$0xff] %v532
  %537 = vst [vmem:[#allocation2 + $0x10] sm:$0xff] %v533
  %538 = vst [vmem:[#allocation2 + $0x18] sm:$0xff] %v534
  // Predicated region
  $region18: #{patch_conv_encoder_forward.9} parent=0 // pred_check
    %p539 = pneg %p15
  $region19: #{patch_conv_encoder_forward.9} parent=0 // pred_check_branch
    %541 = sbr.rel (%p539) target = $region21
  $region20: #{patch_conv_encoder_forward.9} parent=0 // pred_region
    %v542 = vld [vmem:[#allocation2] sm:$0xff]
    %v543 = vld [vmem:[#allocation2 + $0x8] sm:$0xff]
    %v544 = vld [vmem:[#allocation2 + $0x10] sm:$0xff]
    %v545 = vld [vmem:[#allocation2 + $0x18] sm:$0xff]
    %v546 = vld [vmem:[%s2] sm:$0x1]
    %v548 = vlaneseq
    %v549 = vshrl.u32 %v548, 7
    %v550 = vsub.s32 0, %v549
    %v551 = vrot.slane %v546, %v550
    %v553 = vadd.f32 %v542, %v551
    %v554 = vadd.f32 %v543, %v551
    %v555 = vadd.f32 %v544, %v551
    %v556 = vadd.f32 %v545, %v551
    %v557 = vmax.f32 %v553, 0.0
    %v558 = vmax.f32 %v554, 0.0
    %v559 = vmax.f32 %v555, 0.0
    %v560 = vmax.f32 %v556, 0.0
    %561 = vst [vmem:[%s3] sm:$0xff] %v557
    %562 = vst [vmem:[%s3 + $0x8] sm:$0xff] %v558
    %563 = vst [vmem:[%s3 + $0x10] sm:$0xff] %v559
    %564 = vst [vmem:[%s3 + $0x18] sm:$0xff] %v560
  $region21: #{patch_conv_encoder_forward.9} parent=0 // pred_fallthru
    _
  // Predicated region
  $region22: #{patch_conv_encoder_forward.9} parent=0 // pred_check
    _
  $region23: #{patch_conv_encoder_forward.9} parent=0 // pred_check_branch
    %566 = sbr.rel (0) target = $region25
  $region24: #{patch_conv_encoder_forward.9} parent=0 // pred_region
    _
  $region25: #{patch_conv_encoder_forward.9} parent=0 // pred_fallthru
    _
  // Predicated region
  $region26: #{patch_conv_encoder_forward.9} parent=0 // pred_check
    _
  $region27: #{patch_conv_encoder_forward.9} parent=0 // pred_check_branch
    %568 = sbr.rel (0) target = $region29
  $region28: #{patch_conv_encoder_forward.9} parent=0 // pred_region
    _
  $region29: #{patch_conv_encoder_forward.9} parent=0 // pred_fallthru
    _

// kernel: patch_conv_encoder_forward.11
$region0: #{patch_conv_encoder_forward.11}
  #allocation0 [shape = 'u32[]', space=smem, size = 0x4, offset = 0x4, fixed_abs, tag = 'smem constant byte address 0x4 - core index']
  #allocation1 [shape = 'u32[144,128]{1,0:T(1,128)}', space=vmem, size = 0x12000, scoped, tag = 'internal scratch']
  #allocation2 [shape = 'f32[8,128]{1,0:T(8,128)}', space=vmem, size = 0x1000, scoped, tag = 'scratch operand']
  %s0 = inlined_call_operand.vmem [shape: bf16[8,2304], index: 0, kind: input, shape index: {}]
  %s1 = inlined_call_operand.vmem [shape: bf16[2304,128], index: 1, kind: input, shape index: {}]
  %s2 = inlined_call_operand.vmem [shape: f32[1,128], index: 2, kind: input, shape index: {}]
  %s3 = inlined_call_operand.vmem [shape: f32[8,128], index: 3, kind: output, shape index: {}]
  %s4 = sld [smem:[#allocation0]]
  $region53: #{patch_conv_encoder_forward.11} parent=0
    _
  %s6 = ssub.s32 1, %s4
  %s7 = scalar_select 0, %s6, %s4
  loop: start=0, step=1, limit=5
  $region2: #{patch_conv_encoder_forward.11} parent=0 // loop_pre_header
    _
  $region3: #{patch_conv_encoder_forward.11} parent=0 // loop_header
    %s9 = sphi 0, %s13
    %p10 = scmp.ge.s32.totalorder %s9, 5
    %s16 = sphi 0, %s35
    %s17 = sphi 0, %s31
    %s18 = sphi 0, %s27
    %s19 = sphi 0, %s16
    %s20 = sphi 0, %s17
    %s21 = sphi 0, %s18
    %s22 = sphi 0, %s19
    %s23 = sphi 0, %s20
    %s24 = sphi 0, %s21
    %s40 = sphi 0, %s42
    %s43 = sphi 0, %s40
    %s44 = sphi 0, %s43
    %s60 = sphi 0, %s44
    %s68 = sphi 0, %s70
    %s71 = sphi 0, %s68
    %s72 = sphi 0, %s71
    %s88 = sphi 0, %s72
    %s94 = sphi 0, %s96
    %s97 = sphi 0, %s94
    %s98 = sphi 0, %s97
    %s114 = sphi 0, %s98
    %s122 = sphi 0, %s124
    %s125 = sphi 0, %s122
    %s126 = sphi 0, %s125
    %s142 = sphi 0, %s126
  $region4: #{patch_conv_encoder_forward.11} parent=0 // loop_header_branch
    %12 = sbr.rel (%p10) target = $region8
  $region5: #{patch_conv_encoder_forward.11} parent=0 // loop_body
    %s14 = ssub.s32 %s9, 1
    %s15 = ssub.s32 %s9, 2
    %s25 = sadd.s32 1, %s18
    %p26 = scmp.ge.s32.totalorder %s25, 3
    %s27 = scalar_select %p26, 0, %s25
    %s28 = sadd.s32 1, %s17
    %s29 = scalar_select %p26, %s28, %s17
    %p30 = scmp.ge.s32.totalorder %s29, 1
    %s31 = scalar_select %p30, 0, %s29
    %s32 = sadd.s32 1, %s16
    %s33 = scalar_select %p30, %s32, %s16
    %p34 = scmp.ge.s32.totalorder %s33, 1
    %s35 = scalar_select %p34, 0, %s33
    %s36 = ssub.s32 %s16, %s35
    %s37 = ssub.s32 %s18, %s27
    %s38 = sor.u32 %s36, %s37
    %p39 = scmp.eq.s32.totalorder %s38, 0
    %s41 = sadd.s32 %s40, 1
    %s42 = scalar_select %p39, %s40, %s41
    %p45 = pneg %p39
    %p46 = scmp.eq.s32.totalorder %s9, 2
    %p47 = por %p45, %p46
    %p48 = scmp.ne.s32.totalorder %s40, %s43
    %p49 = scmp.eq.s32.totalorder %s9, 0
    %p50 = por %p48, %p49
    %p51 = scmp.ne.s32.totalorder %s40, %s43
    %p52 = scmp.eq.s32.totalorder %s14, 2
    %p53 = por %p51, %p52
    %p54 = scmp.ne.s32.totalorder %s43, %s44
    %p55 = scmp.eq.s32.totalorder %s14, 0
    %p56 = por %p54, %p55
    %p57 = scmp.ne.s32.totalorder %s43, %s44
    %p58 = scmp.eq.s32.totalorder %s15, 2
    %p59 = por %p57, %p58
    %p61 = scmp.ne.s32.totalorder %s44, %s60
    %p62 = scmp.eq.s32.totalorder %s15, 0
    %p63 = por %p61, %p62
    %s64 = ssub.s32 %s18, %s27
    %s65 = ssub.s32 %s17, %s31
    %s66 = sor.u32 %s64, %s65
    %p67 = scmp.eq.s32.totalorder %s66, 0
    %s69 = sadd.s32 %s68, 1
    %s70 = scalar_select %p67, %s68, %s69
    %p73 = pneg %p67
    %p74 = scmp.eq.s32.totalorder %s9, 2
    %p75 = por %p73, %p74
    %p76 = scmp.ne.s32.totalorder %s68, %s71
    %p77 = scmp.eq.s32.totalorder %s9, 0
    %p78 = por %p76, %p77
    %p79 = scmp.ne.s32.totalorder %s68, %s71
    %p80 = scmp.eq.s32.totalorder %s14, 2
    %p81 = por %p79, %p80
    %p82 = scmp.ne.s32.totalorder %s71, %s72
    %p83 = scmp.eq.s32.totalorder %s14, 0
    %p84 = por %p82, %p83
    %p85 = scmp.ne.s32.totalorder %s71, %s72
    %p86 = scmp.eq.s32.totalorder %s15, 2
    %p87 = por %p85, %p86
    %p89 = scmp.ne.s32.totalorder %s72, %s88
    %p90 = scmp.eq.s32.totalorder %s15, 0
    %p91 = por %p89, %p90
    %s92 = ssub.s32 %s17, %s31
    %p93 = scmp.eq.s32.totalorder %s92, 0
    %s95 = sadd.s32 %s94, 1
    %s96 = scalar_select %p93, %s94, %s95
    %p99 = pneg %p93
    %p100 = scmp.eq.s32.totalorder %s9, 2
    %p101 = por %p99, %p100
    %p102 = scmp.ne.s32.totalorder %s94, %s97
    %p103 = scmp.eq.s32.totalorder %s9, 0
    %p104 = por %p102, %p103
    %p105 = scmp.ne.s32.totalorder %s94, %s97
    %p106 = scmp.eq.s32.totalorder %s14, 2
    %p107 = por %p105, %p106
    %p108 = scmp.ne.s32.totalorder %s97, %s98
    %p109 = scmp.eq.s32.totalorder %s14, 0
    %p110 = por %p108, %p109
    %p111 = scmp.ne.s32.totalorder %s97, %s98
    %p112 = scmp.eq.s32.totalorder %s15, 2
    %p113 = por %p111, %p112
    %p115 = scmp.ne.s32.totalorder %s98, %s114
    %p116 = scmp.eq.s32.totalorder %s15, 0
    %p117 = por %p115, %p116
    %s118 = ssub.s32 %s16, %s35
    %s119 = ssub.s32 %s17, %s31
    %s120 = sor.u32 %s118, %s119
    %p121 = scmp.eq.s32.totalorder %s120, 0
    %s123 = sadd.s32 %s122, 1
    %s124 = scalar_select %p121, %s122, %s123
    %p127 = pneg %p121
    %p128 = scmp.eq.s32.totalorder %s9, 2
    %p129 = por %p127, %p128
    %p130 = scmp.ne.s32.totalorder %s122, %s125
    %p131 = scmp.eq.s32.totalorder %s9, 0
    %p132 = por %p130, %p131
    %p133 = scmp.ne.s32.totalorder %s122, %s125
    %p134 = scmp.eq.s32.totalorder %s14, 2
    %p135 = por %p133, %p134
    %p136 = scmp.ne.s32.totalorder %s125, %s126
    %p137 = scmp.eq.s32.totalorder %s14, 0
    %p138 = por %p136, %p137
    %p139 = scmp.ne.s32.totalorder %s125, %s126
    %p140 = scmp.eq.s32.totalorder %s15, 2
    %p141 = por %p139, %p140
    %p143 = scmp.ne.s32.totalorder %s126, %s142
    %p144 = scmp.eq.s32.totalorder %s15, 0
    %p145 = por %p143, %p144
    %p146 = scmp.le.s32.totalorder 1, %s9
    %p147 = scmp.lt.s32.totalorder %s9, 4
    %p148 = pnand %p146, %p147
    %p149 = pneg %p148
    // Predicated region
    $region9: #{patch_conv_encoder_forward.11} parent=5 // pred_check
      _
    $region10: #{patch_conv_encoder_forward.11} parent=5 // pred_check_branch
      %151 = sbr.rel (%p148) target = $region12
    $region11: #{patch_conv_encoder_forward.11} parent=5 // pred_region
      %s152 = ssub.s32 %s9, 1
      // Predicated region
      $region13: #{patch_conv_encoder_forward.11} parent=11 // pred_check
        %p153 = pneg %p110
      $region14: #{patch_conv_encoder_forward.11} parent=11 // pred_check_branch
        %155 = sbr.rel (%p153) target = $region16
      $region15: #{patch_conv_encoder_forward.11} parent=11 // pred_region
        %p156 = scmp.lt.s32.totalorder %s20, 0
        %s157 = scalar_select %p156, %s20, 0
        %s158 = scalar_lea.vmem %s2, %s157
      $region16: #{patch_conv_encoder_forward.11} parent=11 // pred_fallthru
        _
    $region12: #{patch_conv_encoder_forward.11} parent=5 // pred_fallthru
      _
    %p159 = scmp.lt.s32.totalorder %s9, 3
    // Predicated region
    $region17: #{patch_conv_encoder_forward.11} parent=5 // pred_check
      %p160 = pneg %p159
    $region18: #{patch_conv_encoder_forward.11} parent=5 // pred_check_branch
      %162 = sbr.rel (%p160) target = $region20
    $region19: #{patch_conv_encoder_forward.11} parent=5 // pred_region
      // Predicated region
      $region21: #{patch_conv_encoder_forward.11} parent=19 // pred_check
        %p163 = pneg %p50
      $region22: #{patch_conv_encoder_forward.11} parent=19 // pred_check_branch
        %165 = sbr.rel (%p163) target = $region24
      $region23: #{patch_conv_encoder_forward.11} parent=19 // pred_region
        %s166 = smul.u32 6, %s18
        %p167 = scmp.lt.s32.totalorder %s16, 0
        %s168 = scalar_select %p167, %s16, 0
        %p169 = scmp.lt.s32.totalorder %s166, 17
        %s170 = scalar_select %p169, %s166, 17
        %s171 = smul.addr %s168, 18
        %s172 = sadd.s32 %s170, %s171
        %s173 = smul.addr %s172, 4
        %s174 = scalar_lea.vmem %s0, %s173
        %s175 = smul.u32 6, %s18
      $region24: #{patch_conv_encoder_forward.11} parent=19 // pred_fallthru
        _
      // Predicated region
      $region25: #{patch_conv_encoder_forward.11} parent=19 // pred_check
        %p176 = pneg %p78
      $region26: #{patch_conv_encoder_forward.11} parent=19 // pred_check_branch
        %178 = sbr.rel (%p176) target = $region28
      $region27: #{patch_conv_encoder_forward.11} parent=19 // pred_region
        %s179 = smul.u32 96, %s18
        %p180 = scmp.lt.s32.totalorder %s179, 287
        %s181 = scalar_select %p180, %s179, 287
        %p182 = scmp.lt.s32.totalorder %s17, 0
        %s183 = scalar_select %p182, %s17, 0
        %s184 = sadd.s32 %s183, %s181
        %s185 = smul.addr %s184, 4
        %s186 = scalar_lea.vmem %s1, %s185
        %s187 = smul.u32 96, %s18
      $region28: #{patch_conv_encoder_forward.11} parent=19 // pred_fallthru
        _
    $region20: #{patch_conv_encoder_forward.11} parent=5 // pred_fallthru
      _
    %p188 = scmp.le.s32.totalorder 1, %s9
    %p189 = scmp.lt.s32.totalorder %s9, 4
    %p190 = pnand %p188, %p189
    %p191 = pneg %p190
    // Predicated region
    $region29: #{patch_conv_encoder_forward.11} parent=5 // pred_check
      _
    $region30: #{patch_conv_encoder_forward.11} parent=5 // pred_check_branch
      %193 = sbr.rel (%p190) target = $region32
    $region31: #{patch_conv_encoder_forward.11} parent=5 // pred_region
      %s194 = ssub.s32 %s9, 1
      %s195 = smul.u32 6, %s21
      %p196 = scmp.lt.s32.totalorder %s19, 0
      %s197 = scalar_select %p196, %s19, 0
      %p198 = scmp.lt.s32.totalorder %s195, 17
      %s199 = scalar_select %p198, %s195, 17
      %s200 = smul.addr %s197, 18
      %s201 = sadd.s32 %s199, %s200
      %s202 = smul.addr %s201, 4
      %s203 = scalar_lea.vmem %s0, %s202
      %p204 = pneg %p56
      %p205 = pneg %p53
      %s206 = smul.u32 96, %s21
      %p207 = scmp.lt.s32.totalorder %s206, 287
      %s208 = scalar_select %p207, %s206, 287
      %p209 = scmp.lt.s32.totalorder %s20, 0
      %s210 = scalar_select %p209, %s20, 0
      %s211 = sadd.s32 %s210, %s208
      %s212 = smul.addr %s211, 4
      %s213 = scalar_lea.vmem %s1, %s212
      %p214 = pneg %p84
      %p215 = pneg %p81
      %p216 = scmp.lt.s32.totalorder %s20, 0
      %s217 = scalar_select %p216, %s20, 0
      %s218 = scalar_lea.vmem %s2, %s217
      %p219 = pneg %p110
      %p220 = pneg %p107
      %p221 = pneg %p138
      %p222 = pneg %p135
      %p223 = scmp.lt.s32.totalorder %s19, 0
      %s224 = scalar_select %p223, %s19, 0
      %p225 = scmp.lt.s32.totalorder %s20, 0
      %s226 = scalar_select %p225, %s20, 0
      %s227 = sadd.s32 %s226, %s224
      %s228 = smul.addr %s227, 8
      %s229 = scalar_lea.vmem %s3, %s228
      %s230 = smul.u32 6, %s21
      %p231 = scmp.lt.s32.totalorder %s19, 0
      %s232 = scalar_select %p231, %s19, 0
      %p233 = scmp.lt.s32.totalorder %s230, 17
      %s234 = scalar_select %p233, %s230, 17
      %s235 = smul.addr %s232, 18
      %s236 = sadd.s32 %s234, %s235
      %s237 = smul.addr %s236, 4
      %s238 = scalar_lea.vmem %s0, %s237
      %s239 = smul.u32 6, %s21
      %s240 = smul.u32 96, %s21
      %p241 = scmp.lt.s32.totalorder %s240, 287
      %s242 = scalar_select %p241, %s240, 287
      %p243 = scmp.lt.s32.totalorder %s20, 0
      %s244 = scalar_select %p243, %s20, 0
      %s245 = sadd.s32 %s244, %s242
      %s246 = smul.addr %s245, 4
      %s247 = scalar_lea.vmem %s1, %s246
      %s248 = smul.u32 96, %s21
      %p249 = scmp.lt.s32.totalorder %s20, 0
      %s250 = scalar_select %p249, %s20, 0
      %s251 = scalar_lea.vmem %s2, %s250
      %p252 = scmp.lt.s32.totalorder %s19, 0
      %s253 = scalar_select %p252, %s19, 0
      %p254 = scmp.lt.s32.totalorder %s20, 0
      %s255 = scalar_select %p254, %s20, 0
      %s256 = sadd.s32 %s255, %s253
      %s257 = smul.addr %s256, 8
      %s258 = scalar_lea.vmem %s3, %s257
      %p260 = scmp.eq.s32.totalorder %s21, 0
      // Predicated region
      $region33: #{patch_conv_encoder_forward.11} parent=31 // pred_check
        %p261 = pneg %p260
      $region34: #{patch_conv_encoder_forward.11} parent=31 // pred_check_branch
        %263 = sbr.rel (%p261) target = $region36
      $region35: #{patch_conv_encoder_forward.11} parent=31 // pred_region
        %264 = vst [vmem:[#allocation2] sm:$0xff] 0.0
      $region36: #{patch_conv_encoder_forward.11} parent=31 // pred_fallthru
        _
      %v265 = vld [vmem:[#allocation2] sm:$0xff]
      %v266 = vld [vmem:[%s238] sm:$0xff]
      %v267 = vld [vmem:[%s238 + $0x8] sm:$0xff]
      %v268 = vld [vmem:[%s238 + $0x10] sm:$0xff]
      %v269 = vld [vmem:[%s247] sm:$0xf]
      %v270 = vld [vmem:[%s247 + $0x4] sm:$0xf]
      %v271 = vld [vmem:[%s247 + $0x8] sm:$0xf]
      %v272 = vld [vmem:[%s247 + $0xc] sm:$0xf]
      %v273 = vld [vmem:[%s247 + $0x10] sm:$0xf]
      %v274 = vld [vmem:[%s247 + $0x14] sm:$0xf]
      %v275 = vld [vmem:[%s247 + $0x18] sm:$0xf]
      %v276 = vld [vmem:[%s247 + $0x1c] sm:$0xf]
      %v277 = vld [vmem:[%s247 + $0x20] sm:$0xf]
      %v278 = vld [vmem:[%s247 + $0x24] sm:$0xf]
      %v279 = vld [vmem:[%s247 + $0x28] sm:$0xf]
      %v280 = vld [vmem:[%s247 + $0x2c] sm:$0xf]
      %v281 = vld [vmem:[%s247 + $0x30] sm:$0xf]
      %v282 = vld [vmem:[%s247 + $0x34] sm:$0xf]
      %v283 = vld [vmem:[%s247 + $0x38] sm:$0xf]
      %v284 = vld [vmem:[%s247 + $0x3c] sm:$0xf]
      %v285 = vld [vmem:[%s247 + $0x40] sm:$0xf]
      %v286 = vld [vmem:[%s247 + $0x44] sm:$0xf]
      %v287 = vld [vmem:[%s247 + $0x48] sm:$0xf]
      %v288 = vld [vmem:[%s247 + $0x4c] sm:$0xf]
      %v289 = vld [vmem:[%s247 + $0x50] sm:$0xf]
      %v290 = vld [vmem:[%s247 + $0x54] sm:$0xf]
      %v291 = vld [vmem:[%s247 + $0x58] sm:$0xf]
      %v292 = vld [vmem:[%s247 + $0x5c] sm:$0xf]
      %v293 = vld [vmem:[%s247 + $0x60] sm:$0xf]
      %v294 = vld [vmem:[%s247 + $0x64] sm:$0xf]
      %v295 = vld [vmem:[%s247 + $0x68] sm:$0xf]
      %v296 = vld [vmem:[%s247 + $0x6c] sm:$0xf]
      %v297 = vld [vmem:[%s247 + $0x70] sm:$0xf]
      %v298 = vld [vmem:[%s247 + $0x74] sm:$0xf]
      %v299 = vld [vmem:[%s247 + $0x78] sm:$0xf]
      %v300 = vld [vmem:[%s247 + $0x7c] sm:$0xf]
      %v301 = vld [vmem:[%s247 + $0x80] sm:$0xf]
      %v302 = vld [vmem:[%s247 + $0x84] sm:$0xf]
      %v303 = vld [vmem:[%s247 + $0x88] sm:$0xf]
      %v304 = vld [vmem:[%s247 + $0x8c] sm:$0xf]
      %v305 = vld [vmem:[%s247 + $0x90] sm:$0xf]
      %v306 = vld [vmem:[%s247 + $0x94] sm:$0xf]
      %v307 = vld [vmem:[%s247 + $0x98] sm:$0xf]
      %v308 = vld [vmem:[%s247 + $0x9c] sm:$0xf]
      %v309 = vld [vmem:[%s247 + $0xa0] sm:$0xf]
      %v310 = vld [vmem:[%s247 + $0xa4] sm:$0xf]
      %v311 = vld [vmem:[%s247 + $0xa8] sm:$0xf]
      %v312 = vld [vmem:[%s247 + $0xac] sm:$0xf]
      %v313 = vld [vmem:[%s247 + $0xb0] sm:$0xf]
      %v314 = vld [vmem:[%s247 + $0xb4] sm:$0xf]
      %v315 = vld [vmem:[%s247 + $0xb8] sm:$0xf]
      %v316 = vld [vmem:[%s247 + $0xbc] sm:$0xf]
      %v317 = vld [vmem:[%s247 + $0xc0] sm:$0xf]
      %v318 = vld [vmem:[%s247 + $0xc4] sm:$0xf]
      %v319 = vld [vmem:[%s247 + $0xc8] sm:$0xf]
      %v320 = vld [vmem:[%s247 + $0xcc] sm:$0xf]
      %v321 = vld [vmem:[%s247 + $0xd0] sm:$0xf]
      %v322 = vld [vmem:[%s247 + $0xd4] sm:$0xf]
      %v323 = vld [vmem:[%s247 + $0xd8] sm:$0xf]
      %v324 = vld [vmem:[%s247 + $0xdc] sm:$0xf]
      %v325 = vld [vmem:[%s247 + $0xe0] sm:$0xf]
      %v326 = vld [vmem:[%s247 + $0xe4] sm:$0xf]
      %v327 = vld [vmem:[%s247 + $0xe8] sm:$0xf]
      %v328 = vld [vmem:[%s247 + $0xec] sm:$0xf]
      %v329 = vld [vmem:[%s247 + $0xf0] sm:$0xf]
      %v330 = vld [vmem:[%s247 + $0xf4] sm:$0xf]
      %v331 = vld [vmem:[%s247 + $0xf8] sm:$0xf]
      %v332 = vld [vmem:[%s247 + $0xfc] sm:$0xf]
      %v333 = vld [vmem:[%s247 + $0x100] sm:$0xf]
      %v334 = vld [vmem:[%s247 + $0x104] sm:$0xf]
      %v335 = vld [vmem:[%s247 + $0x108] sm:$0xf]
      %v336 = vld [vmem:[%s247 + $0x10c] sm:$0xf]
      %v337 = vld [vmem:[%s247 + $0x110] sm:$0xf]
      %v338 = vld [vmem:[%s247 + $0x114] sm:$0xf]
      %v339 = vld [vmem:[%s247 + $0x118] sm:$0xf]
      %v340 = vld [vmem:[%s247 + $0x11c] sm:$0xf]
      %v341 = vld [vmem:[%s247 + $0x120] sm:$0xf]
      %v342 = vld [vmem:[%s247 + $0x124] sm:$0xf]
      %v343 = vld [vmem:[%s247 + $0x128] sm:$0xf]
      %v344 = vld [vmem:[%s247 + $0x12c] sm:$0xf]
      %v345 = vld [vmem:[%s247 + $0x130] sm:$0xf]
      %v346 = vld [vmem:[%s247 + $0x134] sm:$0xf]
      %v347 = vld [vmem:[%s247 + $0x138] sm:$0xf]
      %v348 = vld [vmem:[%s247 + $0x13c] sm:$0xf]
      %v349 = vld [vmem:[%s247 + $0x140] sm:$0xf]
      %v350 = vld [vmem:[%s247 + $0x144] sm:$0xf]
      %v351 = vld [vmem:[%s247 + $0x148] sm:$0xf]
      %v352 = vld [vmem:[%s247 + $0x14c] sm:$0xf]
      %v353 = vld [vmem:[%s247 + $0x150] sm:$0xf]
      %v354 = vld [vmem:[%s247 + $0x154] sm:$0xf]
      %v355 = vld [vmem:[%s247 + $0x158] sm:$0xf]
      %v356 = vld [vmem:[%s247 + $0x15c] sm:$0xf]
      %v357 = vld [vmem:[%s247 + $0x160] sm:$0xf]
      %v358 = vld [vmem:[%s247 + $0x164] sm:$0xf]
      %v359 = vld [vmem:[%s247 + $0x168] sm:$0xf]
      %v360 = vld [vmem:[%s247 + $0x16c] sm:$0xf]
      %v361 = vld [vmem:[%s247 + $0x170] sm:$0xf]
      %v362 = vld [vmem:[%s247 + $0x174] sm:$0xf]
      %v363 = vld [vmem:[%s247 + $0x178] sm:$0xf]
      %v364 = vld [vmem:[%s247 + $0x17c] sm:$0xf]
      %v368 = vunpack.c.l.b16 %v266
      %v369 = vunpack.c.h.b16 %v266
      %v370 = vunpack.c.l.b16 %v267
      %v371 = vunpack.c.h.b16 %v267
      %v372 = vunpack.c.l.b16 %v268
      %v373 = vunpack.c.h.b16 %v268
      %v374 = vpack.c.b16 %v368, %v368
      %v375 = vpack.c.b16 %v369, %v369
      %v376 = vpack.c.b16 %v370, %v370
      %v377 = vpack.c.b16 %v371, %v371
      %v378 = vpack.c.b16 %v372, %v372
      %v379 = vpack.c.b16 %v373, %v373
      %v482 = vunpack.c.l.b16 %v269
      %v483 = vunpack.c.l.b16 %v270
      %v484 = vunpack.c.l.b16 %v271
      %v485 = vunpack.c.l.b16 %v272
      %v486 = vunpack.c.l.b16 %v273
      %v487 = vunpack.c.l.b16 %v274
      %v488 = vunpack.c.l.b16 %v275
      %v489 = vunpack.c.l.b16 %v276
      %v490 = vunpack.c.l.b16 %v277
      %v491 = vunpack.c.l.b16 %v278
      %v492 = vunpack.c.l.b16 %v279
      %v493 = vunpack.c.l.b16 %v280
      %v494 = vunpack.c.l.b16 %v281
      %v495 = vunpack.c.l.b16 %v282
      %v496 = vunpack.c.l.b16 %v283
      %v497 = vunpack.c.l.b16 %v284
      %v498 = vunpack.c.l.b16 %v285
      %v499 = vunpack.c.l.b16 %v286
      %v500 = vunpack.c.l.b16 %v287
      %v501 = vunpack.c.l.b16 %v288
      %v502 = vunpack.c.l.b16 %v289
      %v503 = vunpack.c.l.b16 %v290
      %v504 = vunpack.c.l.b16 %v291
      %v505 = vunpack.c.l.b16 %v292
      %v506 = vunpack.c.l.b16 %v293
      %v507 = vunpack.c.l.b16 %v294
      %v508 = vunpack.c.l.b16 %v295
      %v509 = vunpack.c.l.b16 %v296
      %v510 = vunpack.c.l.b16 %v297
      %v511 = vunpack.c.l.b16 %v298
      %v512 = vunpack.c.l.b16 %v299
      %v513 = vunpack.c.l.b16 %v300
      %v514 = vunpack.c.l.b16 %v301
      %v515 = vunpack.c.l.b16 %v302
      %v516 = vunpack.c.l.b16 %v303
      %v517 = vunpack.c.l.b16 %v304
      %v518 = vunpack.c.l.b16 %v305
      %v519 = vunpack.c.l.b16 %v306
      %v520 = vunpack.c.l.b16 %v307
      %v521 = vunpack.c.l.b16 %v308
      %v522 = vunpack.c.l.b16 %v309
      %v523 = vunpack.c.l.b16 %v310
      %v524 = vunpack.c.l.b16 %v311
      %v525 = vunpack.c.l.b16 %v312
      %v526 = vunpack.c.l.b16 %v313
      %v527 = vunpack.c.l.b16 %v314
      %v528 = vunpack.c.l.b16 %v315
      %v529 = vunpack.c.l.b16 %v316
      %v530 = vunpack.c.l.b16 %v317
      %v531 = vunpack.c.l.b16 %v318
      %v532 = vunpack.c.l.b16 %v319
      %v533 = vunpack.c.l.b16 %v320
      %v534 = vunpack.c.l.b16 %v321
      %v535 = vunpack.c.l.b16 %v322
      %v536 = vunpack.c.l.b16 %v323
      %v537 = vunpack.c.l.b16 %v324
      %v538 = vunpack.c.l.b16 %v325
      %v539 = vunpack.c.l.b16 %v326
      %v540 = vunpack.c.l.b16 %v327
      %v541 = vunpack.c.l.b16 %v328
      %v542 = vunpack.c.l.b16 %v329
      %v543 = vunpack.c.l.b16 %v330
      %v544 = vunpack.c.l.b16 %v331
      %v545 = vunpack.c.l.b16 %v332
      %v546 = vunpack.c.l.b16 %v333
      %v547 = vunpack.c.l.b16 %v334
      %v548 = vunpack.c.l.b16 %v335
      %v549 = vunpack.c.l.b16 %v336
      %v550 = vunpack.c.l.b16 %v337
      %v551 = vunpack.c.l.b16 %v338
      %v552 = vunpack.c.l.b16 %v339
      %v553 = vunpack.c.l.b16 %v340
      %v554 = vunpack.c.l.b16 %v341
      %v555 = vunpack.c.l.b16 %v342
      %v556 = vunpack.c.l.b16 %v343
      %v557 = vunpack.c.l.b16 %v344
      %v558 = vunpack.c.l.b16 %v345
      %v559 = vunpack.c.l.b16 %v346
      %v560 = vunpack.c.l.b16 %v347
      %v561 = vunpack.c.l.b16 %v348
      %v562 = vunpack.c.l.b16 %v349
      %v563 = vunpack.c.l.b16 %v350
      %v564 = vunpack.c.l.b16 %v351
      %v565 = vunpack.c.l.b16 %v352
      %v566 = vunpack.c.l.b16 %v353
      %v567 = vunpack.c.l.b16 %v354
      %v568 = vunpack.c.l.b16 %v355
      %v569 = vunpack.c.l.b16 %v356
      %v570 = vunpack.c.l.b16 %v357
      %v571 = vunpack.c.l.b16 %v358
      %v572 = vunpack.c.l.b16 %v359
      %v573 = vunpack.c.l.b16 %v360
      %v574 = vunpack.c.l.b16 %v361
      %v575 = vunpack.c.l.b16 %v362
      %v576 = vunpack.c.l.b16 %v363
      %v577 = vunpack.c.l.b16 %v364
      %v578 = vpack.c.b16 %v483, %v482
      %v579 = vpack.c.b16 %v485, %v484
      %v580 = vpack.c.b16 %v487, %v486
      %v581 = vpack.c.b16 %v489, %v488
      %v582 = vpack.c.b16 %v491, %v490
      %v583 = vpack.c.b16 %v493, %v492
      %v584 = vpack.c.b16 %v495, %v494
      %v585 = vpack.c.b16 %v497, %v496
      %v586 = vpack.c.b16 %v499, %v498
      %v587 = vpack.c.b16 %v501, %v500
      %v588 = vpack.c.b16 %v503, %v502
      %v589 = vpack.c.b16 %v505, %v504
      %v590 = vpack.c.b16 %v507, %v506
      %v591 = vpack.c.b16 %v509, %v508
      %v592 = vpack.c.b16 %v511, %v510
      %v593 = vpack.c.b16 %v513, %v512
      %v594 = vpack.c.b16 %v515, %v514
      %v595 = vpack.c.b16 %v517, %v516
      %v596 = vpack.c.b16 %v519, %v518
      %v597 = vpack.c.b16 %v521, %v520
      %v598 = vpack.c.b16 %v523, %v522
      %v599 = vpack.c.b16 %v525, %v524
      %v600 = vpack.c.b16 %v527, %v526
      %v601 = vpack.c.b16 %v529, %v528
      %v602 = vpack.c.b16 %v531, %v530
      %v603 = vpack.c.b16 %v533, %v532
      %v604 = vpack.c.b16 %v535, %v534
      %v605 = vpack.c.b16 %v537, %v536
      %v606 = vpack.c.b16 %v539, %v538
      %v607 = vpack.c.b16 %v541, %v540
      %v608 = vpack.c.b16 %v543, %v542
      %v609 = vpack.c.b16 %v545, %v544
      %v610 = vpack.c.b16 %v547, %v546
      %v611 = vpack.c.b16 %v549, %v548
      %v612 = vpack.c.b16 %v551, %v550
      %v613 = vpack.c.b16 %v553, %v552
      %v614 = vpack.c.b16 %v555, %v554
      %v615 = vpack.c.b16 %v557, %v556
      %v616 = vpack.c.b16 %v559, %v558
      %v617 = vpack.c.b16 %v561, %v560
      %v618 = vpack.c.b16 %v563, %v562
      %v619 = vpack.c.b16 %v565, %v564
      %v620 = vpack.c.b16 %v567, %v566
      %v621 = vpack.c.b16 %v569, %v568
      %v622 = vpack.c.b16 %v571, %v570
      %v623 = vpack.c.b16 %v573, %v572
      %v624 = vpack.c.b16 %v575, %v574
      %v625 = vpack.c.b16 %v577, %v576
      %674 = vmatprep.subr.bf16.mxu0 0
      %675 = vmatpush1.bf16.msra.mxu0 %v585
      %676 = vmatprep.subr.bf16.mxu0 0
      %677 = vmatpush1.bf16.msra.mxu0 %v584
      %678 = vmatprep.subr.bf16.mxu0 0
      %679 = vmatpush1.bf16.msra.mxu0 %v583
      %680 = vmatprep.subr.bf16.mxu0 0
      %681 = vmatpush1.bf16.msra.mxu0 %v582
      %682 = vmatprep.subr.bf16.mxu0 0
      %683 = vmatpush1.bf16.msra.mxu0 %v581
      %684 = vmatprep.subr.bf16.mxu0 0
      %685 = vmatpush1.bf16.msra.mxu0 %v580
      %686 = vmatprep.subr.bf16.mxu0 0
      %687 = vmatpush1.bf16.msra.mxu0 %v579
      %688 = vmatprep.subr.bf16.mxu0 0
      %689 = vmatpush1.bf16.msra.mxu0 %v578
      %690 = vmatprep.subr.bf16.mxu0 0
      %691 = vmatpush2.bf16.msra.mxu0 %v593
      %692 = vmatprep.subr.bf16.mxu0 0
      %693 = vmatpush2.bf16.msra.mxu0 %v592
      %694 = vmatprep.subr.bf16.mxu0 0
      %695 = vmatpush2.bf16.msra.mxu0 %v591
      %696 = vmatprep.subr.bf16.mxu0 0
      %697 = vmatpush2.bf16.msra.mxu0 %v590
      %698 = vmatprep.subr.bf16.mxu0 0
      %699 = vmatpush2.bf16.msra.mxu0 %v589
      %700 = vmatprep.subr.bf16.mxu0 0
      %701 = vmatpush2.bf16.msra.mxu0 %v588
      %702 = vmatprep.subr.bf16.mxu0 0
      %703 = vmatpush2.bf16.msra.mxu0 %v587
      %704 = vmatprep.subr.bf16.mxu0 0
      %705 = vmatpush2.bf16.msra.mxu0 %v586
      %706 = vmatprep.mubr.bf16.mxu0 %v375
      %707 = vmatmul.mubr.bf16.gmra.mxu0 %v374
      %v708 = vpop.f32.mrf.mxu0
      %v709 = vadd.f32 0.0, %v708
      %v710 = vpop.f32.mrf.mxu0
      %v711 = vpop.f32.mrf.mxu0
      %v712 = vpop.f32.mrf.mxu0
      %713 = vdwg.mxu0
      %714 = vmatprep.subr.bf16.mxu0 0
      %715 = vmatpush1.bf16.msra.mxu0 %v601
      %716 = vmatprep.subr.bf16.mxu0 0
      %717 = vmatpush1.bf16.msra.mxu0 %v600
      %718 = vmatprep.subr.bf16.mxu0 0
      %719 = vmatpush1.bf16.msra.mxu0 %v599
      %720 = vmatprep.subr.bf16.mxu0 0
      %721 = vmatpush1.bf16.msra.mxu0 %v598
      %722 = vmatprep.subr.bf16.mxu0 0
      %723 = vmatpush1.bf16.msra.mxu0 %v597
      %724 = vmatprep.subr.bf16.mxu0 0
      %725 = vmatpush1.bf16.msra.mxu0 %v596
      %726 = vmatprep.subr.bf16.mxu0 0
      %727 = vmatpush1.bf16.msra.mxu0 %v595
      %728 = vmatprep.subr.bf16.mxu0 0
      %729 = vmatpush1.bf16.msra.mxu0 %v594
      %730 = vmatprep.subr.bf16.mxu0 0
      %731 = vmatpush2.bf16.msra.mxu0 %v609
      %732 = vmatprep.subr.bf16.mxu0 0
      %733 = vmatpush2.bf16.msra.mxu0 %v608
      %734 = vmatprep.subr.bf16.mxu0 0
      %735 = vmatpush2.bf16.msra.mxu0 %v607
      %736 = vmatprep.subr.bf16.mxu0 0
      %737 = vmatpush2.bf16.msra.mxu0 %v606
      %738 = vmatprep.subr.bf16.mxu0 0
      %739 = vmatpush2.bf16.msra.mxu0 %v605
      %740 = vmatprep.subr.bf16.mxu0 0
      %741 = vmatpush2.bf16.msra.mxu0 %v604
      %742 = vmatprep.subr.bf16.mxu0 0
      %743 = vmatpush2.bf16.msra.mxu0 %v603
      %744 = vmatprep.subr.bf16.mxu0 0
      %745 = vmatpush2.bf16.msra.mxu0 %v602
      %746 = vmatprep.mubr.bf16.mxu0 %v377
      %747 = vmatmul.mubr.bf16.gmra.mxu0 %v376
      %v748 = vpop.f32.mrf.mxu0
      %v749 = vadd.f32 %v709, %v748
      %v750 = vpop.f32.mrf.mxu0
      %v751 = vpop.f32.mrf.mxu0
      %v752 = vpop.f32.mrf.mxu0
      %753 = vdwg.mxu0
      %754 = vmatprep.subr.bf16.mxu0 0
      %755 = vmatpush1.bf16.msra.mxu0 %v617
      %756 = vmatprep.subr.bf16.mxu0 0
      %757 = vmatpush1.bf16.msra.mxu0 %v616
      %758 = vmatprep.subr.bf16.mxu0 0
      %759 = vmatpush1.bf16.msra.mxu0 %v615
      %760 = vmatprep.subr.bf16.mxu0 0
      %761 = vmatpush1.bf16.msra.mxu0 %v614
      %762 = vmatprep.subr.bf16.mxu0 0
      %763 = vmatpush1.bf16.msra.mxu0 %v613
      %764 = vmatprep.subr.bf16.mxu0 0
      %765 = vmatpush1.bf16.msra.mxu0 %v612
      %766 = vmatprep.subr.bf16.mxu0 0
      %767 = vmatpush1.bf16.msra.mxu0 %v611
      %768 = vmatprep.subr.bf16.mxu0 0
      %769 = vmatpush1.bf16.msra.mxu0 %v610
      %770 = vmatprep.subr.bf16.mxu0 0
      %771 = vmatpush2.bf16.msra.mxu0 %v625
      %772 = vmatprep.subr.bf16.mxu0 0
      %773 = vmatpush2.bf16.msra.mxu0 %v624
      %774 = vmatprep.subr.bf16.mxu0 0
      %775 = vmatpush2.bf16.msra.mxu0 %v623
      %776 = vmatprep.subr.bf16.mxu0 0
      %777 = vmatpush2.bf16.msra.mxu0 %v622
      %778 = vmatprep.subr.bf16.mxu0 0
      %779 = vmatpush2.bf16.msra.mxu0 %v621
      %780 = vmatprep.subr.bf16.mxu0 0
      %781 = vmatpush2.bf16.msra.mxu0 %v620
      %782 = vmatprep.subr.bf16.mxu0 0
      %783 = vmatpush2.bf16.msra.mxu0 %v619
      %784 = vmatprep.subr.bf16.mxu0 0
      %785 = vmatpush2.bf16.msra.mxu0 %v618
      %786 = vmatprep.mubr.bf16.mxu0 %v379
      %787 = vmatmul.mubr.bf16.gmra.mxu0 %v378
      %v788 = vpop.f32.mrf.mxu0
      %v789 = vadd.f32 %v749, %v788
      %v790 = vpop.f32.mrf.mxu0
      %v791 = vpop.f32.mrf.mxu0
      %v792 = vpop.f32.mrf.mxu0
      %793 = vdwg.mxu0
      %v794 = vadd.f32 %v265, %v789
      %795 = vst [vmem:[#allocation2] sm:$0xff] %v794
      %p796 = scmp.eq.s32.totalorder %s21, 2
      // Predicated region
      $region37: #{patch_conv_encoder_forward.11} parent=31 // pred_check
        %p797 = pneg %p796
      $region38: #{patch_conv_encoder_forward.11} parent=31 // pred_check_branch
        %799 = sbr.rel (%p797) target = $region40
      $region39: #{patch_conv_encoder_forward.11} parent=31 // pred_region
        %v800 = vld [vmem:[#allocation2] sm:$0xff]
        %v801 = vld [vmem:[%s251] sm:$0x1]
        %v803 = vlaneseq
        %v804 = vshrl.u32 %v803, 7
        %v805 = vsub.s32 0, %v804
        %v806 = vrot.slane %v801, %v805
        %v808 = vadd.f32 %v800, %v806
        %v809 = vmax.f32 %v808, 0.0
        %810 = vst [vmem:[%s258] sm:$0xff] %v809
      $region40: #{patch_conv_encoder_forward.11} parent=31 // pred_fallthru
        _
      %p811 = scmp.lt.s32.totalorder %s19, 0
      %s812 = scalar_select %p811, %s19, 0
      %p813 = scmp.lt.s32.totalorder %s20, 0
      %s814 = scalar_select %p813, %s20, 0
      %s815 = sadd.s32 %s814, %s812
      %s816 = smul.addr %s815, 8
      %s817 = scalar_lea.vmem %s3, %s816
      // Predicated region
      $region41: #{patch_conv_encoder_forward.11} parent=31 // pred_check
        %p818 = pneg %p135
      $region42: #{patch_conv_encoder_forward.11} parent=31 // pred_check_branch
        %820 = sbr.rel (%p818) target = $region44
      $region43: #{patch_conv_encoder_forward.11} parent=31 // pred_region
        _
      $region44: #{patch_conv_encoder_forward.11} parent=31 // pred_fallthru
        _
      // Predicated region
      $region45: #{patch_conv_encoder_forward.11} parent=31 // pred_check
        %p821 = pneg %p135
      $region46: #{patch_conv_encoder_forward.11} parent=31 // pred_check_branch
        %823 = sbr.rel (%p821) target = $region48
      $region47: #{patch_conv_encoder_forward.11} parent=31 // pred_region
        %p824 = scmp.lt.s32.totalorder %s19, 0
        %s825 = scalar_select %p824, %s19, 0
        %p826 = scmp.lt.s32.totalorder %s20, 0
        %s827 = scalar_select %p826, %s20, 0
        %s828 = sadd.s32 %s827, %s825
        %s829 = smul.addr %s828, 8
        %s830 = scalar_lea.vmem %s3, %s829
      $region48: #{patch_conv_encoder_forward.11} parent=31 // pred_fallthru
        _
    $region32: #{patch_conv_encoder_forward.11} parent=5 // pred_fallthru
      _
    %p831 = scmp.le.s32.totalorder 2, %s9
    // Predicated region
    $region49: #{patch_conv_encoder_forward.11} parent=5 // pred_check
      %p832 = pneg %p831
    $region50: #{patch_conv_encoder_forward.11} parent=5 // pred_check_branch
      %834 = sbr.rel (%p832) target = $region52
    $region51: #{patch_conv_encoder_forward.11} parent=5 // pred_region
      %s835 = ssub.s32 %s9, 2
    $region52: #{patch_conv_encoder_forward.11} parent=5 // pred_fallthru
      _
  $region6: #{patch_conv_encoder_forward.11} parent=0 // loop_footer
    %s13 = sadd.s32 1, %s9
  $region7: #{patch_conv_encoder_forward.11} parent=0 // loop_footer_branch
    %8 = sbr.rel target = $region3
  $region8: #{patch_conv_encoder_forward.11} parent=0 // loop_exit
    _

// kernel: patch_conv_encoder_forward.10
$region0: #{patch_conv_encoder_forward.10}
  #allocation0 [shape = 'u32[]', space=smem, size = 0x4, offset = 0x4, fixed_abs, tag = 'smem constant byte address 0x4 - core index']
  #allocation1 [shape = 'u32[144,128]{1,0:T(1,128)}', space=vmem, size = 0x12000, scoped, tag = 'internal scratch']
  #allocation2 [shape = 'f32[8,256]{1,0:T(8,128)}', space=vmem, size = 0x2000, scoped, tag = 'scratch operand']
  %s0 = inlined_call_operand.vmem [shape: bf16[8,1152], index: 0, kind: input, shape index: {}]
  %s1 = inlined_call_operand.vmem [shape: bf16[1152,256], index: 1, kind: input, shape index: {}]
  %s2 = inlined_call_operand.vmem [shape: f32[1,256], index: 2, kind: input, shape index: {}]
  %s3 = inlined_call_operand.vmem [shape: f32[8,256], index: 3, kind: output, shape index: {}]
  %s4 = sld [smem:[#allocation0]]
  $region30: #{patch_conv_encoder_forward.10} parent=0
    _
  %s6 = ssub.s32 1, %s4
  %s7 = scalar_select 0, %s6, %s4
  // Predicated region
  $region2: #{patch_conv_encoder_forward.10} parent=0 // pred_check
    _
  $region3: #{patch_conv_encoder_forward.10} parent=0 // pred_check_branch
    %9 = sbr.rel (0) target = $region5
  $region4: #{patch_conv_encoder_forward.10} parent=0 // pred_region
    _
  $region5: #{patch_conv_encoder_forward.10} parent=0 // pred_fallthru
    _
  // Predicated region
  $region6: #{patch_conv_encoder_forward.10} parent=0 // pred_check
    _
  $region7: #{patch_conv_encoder_forward.10} parent=0 // pred_check_branch
    %11 = sbr.rel (0) target = $region9
  $region8: #{patch_conv_encoder_forward.10} parent=0 // pred_region
    _
  $region9: #{patch_conv_encoder_forward.10} parent=0 // pred_fallthru
    _
  // Predicated region
  $region10: #{patch_conv_encoder_forward.10} parent=0 // pred_check
    _
  $region11: #{patch_conv_encoder_forward.10} parent=0 // pred_check_branch
    %13 = sbr.rel (0) target = $region13
  $region12: #{patch_conv_encoder_forward.10} parent=0 // pred_region
    _
  $region13: #{patch_conv_encoder_forward.10} parent=0 // pred_fallthru
    _
  %p15 = scmp.eq.s32.totalorder 0, 0
  // Predicated region
  $region14: #{patch_conv_encoder_forward.10} parent=0 // pred_check
    %p16 = pneg %p15
  $region15: #{patch_conv_encoder_forward.10} parent=0 // pred_check_branch
    %18 = sbr.rel (%p16) target = $region17
  $region16: #{patch_conv_encoder_forward.10} parent=0 // pred_region
    %19 = vst [vmem:[#allocation2] sm:$0xff] 0.0
    %20 = vst [vmem:[#allocation2 + $0x8] sm:$0xff] 0.0
  $region17: #{patch_conv_encoder_forward.10} parent=0 // pred_fallthru
    _
  %v21 = vld [vmem:[#allocation2] sm:$0xff]
  %v22 = vld [vmem:[#allocation2 + $0x8] sm:$0xff]
  %v23 = vld [vmem:[%s0] sm:$0xff]
  %v24 = vld [vmem:[%s0 + $0x8] sm:$0xff]
  %v25 = vld [vmem:[%s0 + $0x10] sm:$0xff]
  %v26 = vld [vmem:[%s0 + $0x18] sm:$0xff]
  %v27 = vld [vmem:[%s0 + $0x20] sm:$0xf]
  %v28 = vld [vmem:[%s1] sm:$0xff]
  %v29 = vld [vmem:[%s1 + $0x8] sm:$0xff]
  %v30 = vld [vmem:[%s1 + $0x10] sm:$0xff]
  %v31 = vld [vmem:[%s1 + $0x18] sm:$0xff]
  %v32 = vld [vmem:[%s1 + $0x20] sm:$0xff]
  %v33 = vld [vmem:[%s1 + $0x28] sm:$0xff]
  %v34 = vld [vmem:[%s1 + $0x30] sm:$0xff]
  %v35 = vld [vmem:[%s1 + $0x38] sm:$0xff]
  %v36 = vld [vmem:[%s1 + $0x40] sm:$0xff]
  %v37 = vld [vmem:[%s1 + $0x48] sm:$0xff]
  %v38 = vld [vmem:[%s1 + $0x50] sm:$0xff]
  %v39 = vld [vmem:[%s1 + $0x58] sm:$0xff]
  %v40 = vld [vmem:[%s1 + $0x60] sm:$0xff]
  %v41 = vld [vmem:[%s1 + $0x68] sm:$0xff]
  %v42 = vld [vmem:[%s1 + $0x70] sm:$0xff]
  %v43 = vld [vmem:[%s1 + $0x78] sm:$0xff]
  %v44 = vld [vmem:[%s1 + $0x80] sm:$0xff]
  %v45 = vld [vmem:[%s1 + $0x88] sm:$0xff]
  %v46 = vld [vmem:[%s1 + $0x90] sm:$0xff]
  %v47 = vld [vmem:[%s1 + $0x98] sm:$0xff]
  %v48 = vld [vmem:[%s1 + $0xa0] sm:$0xff]
  %v49 = vld [vmem:[%s1 + $0xa8] sm:$0xff]
  %v50 = vld [vmem:[%s1 + $0xb0] sm:$0xff]
  %v51 = vld [vmem:[%s1 + $0xb8] sm:$0xff]
  %v52 = vld [vmem:[%s1 + $0xc0] sm:$0xff]
  %v53 = vld [vmem:[%s1 + $0xc8] sm:$0xff]
  %v54 = vld [vmem:[%s1 + $0xd0] sm:$0xff]
  %v55 = vld [vmem:[%s1 + $0xd8] sm:$0xff]
  %v56 = vld [vmem:[%s1 + $0xe0] sm:$0xff]
  %v57 = vld [vmem:[%s1 + $0xe8] sm:$0xff]
  %v58 = vld [vmem:[%s1 + $0xf0] sm:$0xff]
  %v59 = vld [vmem:[%s1 + $0xf8] sm:$0xff]
  %v60 = vld [vmem:[%s1 + $0x100] sm:$0xff]
  %v61 = vld [vmem:[%s1 + $0x108] sm:$0xff]
  %v62 = vld [vmem:[%s1 + $0x110] sm:$0xff]
  %v63 = vld [vmem:[%s1 + $0x118] sm:$0xff]
  %v64 = vld [vmem:[%s1 + $0x120] sm:$0xff]
  %v65 = vld [vmem:[%s1 + $0x128] sm:$0xff]
  %v66 = vld [vmem:[%s1 + $0x130] sm:$0xff]
  %v67 = vld [vmem:[%s1 + $0x138] sm:$0xff]
  %v68 = vld [vmem:[%s1 + $0x140] sm:$0xff]
  %v69 = vld [vmem:[%s1 + $0x148] sm:$0xff]
  %v70 = vld [vmem:[%s1 + $0x150] sm:$0xff]
  %v71 = vld [vmem:[%s1 + $0x158] sm:$0xff]
  %v72 = vld [vmem:[%s1 + $0x160] sm:$0xff]
  %v73 = vld [vmem:[%s1 + $0x168] sm:$0xff]
  %v74 = vld [vmem:[%s1 + $0x170] sm:$0xff]
  %v75 = vld [vmem:[%s1 + $0x178] sm:$0xff]
  %v76 = vld [vmem:[%s1 + $0x180] sm:$0xff]
  %v77 = vld [vmem:[%s1 + $0x188] sm:$0xff]
  %v78 = vld [vmem:[%s1 + $0x190] sm:$0xff]
  %v79 = vld [vmem:[%s1 + $0x198] sm:$0xff]
  %v80 = vld [vmem:[%s1 + $0x1a0] sm:$0xff]
  %v81 = vld [vmem:[%s1 + $0x1a8] sm:$0xff]
  %v82 = vld [vmem:[%s1 + $0x1b0] sm:$0xff]
  %v83 = vld [vmem:[%s1 + $0x1b8] sm:$0xff]
  %v84 = vld [vmem:[%s1 + $0x1c0] sm:$0xff]
  %v85 = vld [vmem:[%s1 + $0x1c8] sm:$0xff]
  %v86 = vld [vmem:[%s1 + $0x1d0] sm:$0xff]
  %v87 = vld [vmem:[%s1 + $0x1d8] sm:$0xff]
  %v88 = vld [vmem:[%s1 + $0x1e0] sm:$0xff]
  %v89 = vld [vmem:[%s1 + $0x1e8] sm:$0xff]
  %v90 = vld [vmem:[%s1 + $0x1f0] sm:$0xff]
  %v91 = vld [vmem:[%s1 + $0x1f8] sm:$0xff]
  %v92 = vld [vmem:[%s1 + $0x200] sm:$0xff]
  %v93 = vld [vmem:[%s1 + $0x208] sm:$0xff]
  %v94 = vld [vmem:[%s1 + $0x210] sm:$0xff]
  %v95 = vld [vmem:[%s1 + $0x218] sm:$0xff]
  %v96 = vld [vmem:[%s1 + $0x220] sm:$0xff]
  %v97 = vld [vmem:[%s1 + $0x228] sm:$0xff]
  %v98 = vld [vmem:[%s1 + $0x230] sm:$0xff]
  %v99 = vld [vmem:[%s1 + $0x238] sm:$0xff]
  %v100 = vld [vmem:[%s1 + $0x240] sm:$0xff]
  %v101 = vld [vmem:[%s1 + $0x248] sm:$0xff]
  %v102 = vld [vmem:[%s1 + $0x250] sm:$0xff]
  %v103 = vld [vmem:[%s1 + $0x258] sm:$0xff]
  %v104 = vld [vmem:[%s1 + $0x260] sm:$0xff]
  %v105 = vld [vmem:[%s1 + $0x268] sm:$0xff]
  %v106 = vld [vmem:[%s1 + $0x270] sm:$0xff]
  %v107 = vld [vmem:[%s1 + $0x278] sm:$0xff]
  %v108 = vld [vmem:[%s1 + $0x280] sm:$0xff]
  %v109 = vld [vmem:[%s1 + $0x288] sm:$0xff]
  %v110 = vld [vmem:[%s1 + $0x290] sm:$0xff]
  %v111 = vld [vmem:[%s1 + $0x298] sm:$0xff]
  %v112 = vld [vmem:[%s1 + $0x2a0] sm:$0xff]
  %v113 = vld [vmem:[%s1 + $0x2a8] sm:$0xff]
  %v114 = vld [vmem:[%s1 + $0x2b0] sm:$0xff]
  %v115 = vld [vmem:[%s1 + $0x2b8] sm:$0xff]
  %v116 = vld [vmem:[%s1 + $0x2c0] sm:$0xff]
  %v117 = vld [vmem:[%s1 + $0x2c8] sm:$0xff]
  %v118 = vld [vmem:[%s1 + $0x2d0] sm:$0xff]
  %v119 = vld [vmem:[%s1 + $0x2d8] sm:$0xff]
  %v120 = vld [vmem:[%s1 + $0x2e0] sm:$0xff]
  %v121 = vld [vmem:[%s1 + $0x2e8] sm:$0xff]
  %v122 = vld [vmem:[%s1 + $0x2f0] sm:$0xff]
  %v123 = vld [vmem:[%s1 + $0x2f8] sm:$0xff]
  %v124 = vld [vmem:[%s1 + $0x300] sm:$0xff]
  %v125 = vld [vmem:[%s1 + $0x308] sm:$0xff]
  %v126 = vld [vmem:[%s1 + $0x310] sm:$0xff]
  %v127 = vld [vmem:[%s1 + $0x318] sm:$0xff]
  %v128 = vld [vmem:[%s1 + $0x320] sm:$0xff]
  %v129 = vld [vmem:[%s1 + $0x328] sm:$0xff]
  %v130 = vld [vmem:[%s1 + $0x330] sm:$0xff]
  %v131 = vld [vmem:[%s1 + $0x338] sm:$0xff]
  %v132 = vld [vmem:[%s1 + $0x340] sm:$0xff]
  %v133 = vld [vmem:[%s1 + $0x348] sm:$0xff]
  %v134 = vld [vmem:[%s1 + $0x350] sm:$0xff]
  %v135 = vld [vmem:[%s1 + $0x358] sm:$0xff]
  %v136 = vld [vmem:[%s1 + $0x360] sm:$0xff]
  %v137 = vld [vmem:[%s1 + $0x368] sm:$0xff]
  %v138 = vld [vmem:[%s1 + $0x370] sm:$0xff]
  %v139 = vld [vmem:[%s1 + $0x378] sm:$0xff]
  %v140 = vld [vmem:[%s1 + $0x380] sm:$0xff]
  %v141 = vld [vmem:[%s1 + $0x388] sm:$0xff]
  %v142 = vld [vmem:[%s1 + $0x390] sm:$0xff]
  %v143 = vld [vmem:[%s1 + $0x398] sm:$0xff]
  %v144 = vld [vmem:[%s1 + $0x3a0] sm:$0xff]
  %v145 = vld [vmem:[%s1 + $0x3a8] sm:$0xff]
  %v146 = vld [vmem:[%s1 + $0x3b0] sm:$0xff]
  %v147 = vld [vmem:[%s1 + $0x3b8] sm:$0xff]
  %v148 = vld [vmem:[%s1 + $0x3c0] sm:$0xff]
  %v149 = vld [vmem:[%s1 + $0x3c8] sm:$0xff]
  %v150 = vld [vmem:[%s1 + $0x3d0] sm:$0xff]
  %v151 = vld [vmem:[%s1 + $0x3d8] sm:$0xff]
  %v152 = vld [vmem:[%s1 + $0x3e0] sm:$0xff]
  %v153 = vld [vmem:[%s1 + $0x3e8] sm:$0xff]
  %v154 = vld [vmem:[%s1 + $0x3f0] sm:$0xff]
  %v155 = vld [vmem:[%s1 + $0x3f8] sm:$0xff]
  %v156 = vld [vmem:[%s1 + $0x400] sm:$0xff]
  %v157 = vld [vmem:[%s1 + $0x408] sm:$0xff]
  %v158 = vld [vmem:[%s1 + $0x410] sm:$0xff]
  %v159 = vld [vmem:[%s1 + $0x418] sm:$0xff]
  %v160 = vld [vmem:[%s1 + $0x420] sm:$0xff]
  %v161 = vld [vmem:[%s1 + $0x428] sm:$0xff]
  %v162 = vld [vmem:[%s1 + $0x430] sm:$0xff]
  %v163 = vld [vmem:[%s1 + $0x438] sm:$0xff]
  %v164 = vld [vmem:[%s1 + $0x440] sm:$0xff]
  %v165 = vld [vmem:[%s1 + $0x448] sm:$0xff]
  %v166 = vld [vmem:[%s1 + $0x450] sm:$0xff]
  %v167 = vld [vmem:[%s1 + $0x458] sm:$0xff]
  %v168 = vld [vmem:[%s1 + $0x460] sm:$0xff]
  %v169 = vld [vmem:[%s1 + $0x468] sm:$0xff]
  %v170 = vld [vmem:[%s1 + $0x470] sm:$0xff]
  %v171 = vld [vmem:[%s1 + $0x478] sm:$0xff]
  %v177 = vunpack.c.l.b16 %v23
  %v178 = vunpack.c.h.b16 %v23
  %v179 = vunpack.c.l.b16 %v24
  %v180 = vunpack.c.h.b16 %v24
  %v181 = vunpack.c.l.b16 %v25
  %v182 = vunpack.c.h.b16 %v25
  %v183 = vunpack.c.l.b16 %v26
  %v184 = vunpack.c.h.b16 %v26
  %v185 = vunpack.c.l.b16 %v27
  %v186 = vpack.c.b16 %v177, %v177
  %v187 = vpack.c.b16 %v178, %v178
  %v188 = vpack.c.b16 %v179, %v179
  %v189 = vpack.c.b16 %v180, %v180
  %v190 = vpack.c.b16 %v181, %v181
  %v191 = vpack.c.b16 %v182, %v182
  %v192 = vpack.c.b16 %v183, %v183
  %v193 = vpack.c.b16 %v184, %v184
  %v194 = vpack.c.b16 %v185, %v185
  %v348 = vunpack.c.l.b16 %v28
  %v349 = vunpack.c.h.b16 %v28
  %v350 = vunpack.c.l.b16 %v29
  %v351 = vunpack.c.h.b16 %v29
  %v352 = vunpack.c.l.b16 %v30
  %v353 = vunpack.c.h.b16 %v30
  %v354 = vunpack.c.l.b16 %v31
  %v355 = vunpack.c.h.b16 %v31
  %v356 = vunpack.c.l.b16 %v32
  %v357 = vunpack.c.h.b16 %v32
  %v358 = vunpack.c.l.b16 %v33
  %v359 = vunpack.c.h.b16 %v33
  %v360 = vunpack.c.l.b16 %v34
  %v361 = vunpack.c.h.b16 %v34
  %v362 = vunpack.c.l.b16 %v35
  %v363 = vunpack.c.h.b16 %v35
  %v364 = vunpack.c.l.b16 %v36
  %v365 = vunpack.c.h.b16 %v36
  %v366 = vunpack.c.l.b16 %v37
  %v367 = vunpack.c.h.b16 %v37
  %v368 = vunpack.c.l.b16 %v38
  %v369 = vunpack.c.h.b16 %v38
  %v370 = vunpack.c.l.b16 %v39
  %v371 = vunpack.c.h.b16 %v39
  %v372 = vunpack.c.l.b16 %v40
  %v373 = vunpack.c.h.b16 %v40
  %v374 = vunpack.c.l.b16 %v41
  %v375 = vunpack.c.h.b16 %v41
  %v376 = vunpack.c.l.b16 %v42
  %v377 = vunpack.c.h.b16 %v42
  %v378 = vunpack.c.l.b16 %v43
  %v379 = vunpack.c.h.b16 %v43
  %v380 = vunpack.c.l.b16 %v44
  %v381 = vunpack.c.h.b16 %v44
  %v382 = vunpack.c.l.b16 %v45
  %v383 = vunpack.c.h.b16 %v45
  %v384 = vunpack.c.l.b16 %v46
  %v385 = vunpack.c.h.b16 %v46
  %v386 = vunpack.c.l.b16 %v47
  %v387 = vunpack.c.h.b16 %v47
  %v388 = vunpack.c.l.b16 %v48
  %v389 = vunpack.c.h.b16 %v48
  %v390 = vunpack.c.l.b16 %v49
  %v391 = vunpack.c.h.b16 %v49
  %v392 = vunpack.c.l.b16 %v50
  %v393 = vunpack.c.h.b16 %v50
  %v394 = vunpack.c.l.b16 %v51
  %v395 = vunpack.c.h.b16 %v51
  %v396 = vunpack.c.l.b16 %v52
  %v397 = vunpack.c.h.b16 %v52
  %v398 = vunpack.c.l.b16 %v53
  %v399 = vunpack.c.h.b16 %v53
  %v400 = vunpack.c.l.b16 %v54
  %v401 = vunpack.c.h.b16 %v54
  %v402 = vunpack.c.l.b16 %v55
  %v403 = vunpack.c.h.b16 %v55
  %v404 = vunpack.c.l.b16 %v56
  %v405 = vunpack.c.h.b16 %v56
  %v406 = vunpack.c.l.b16 %v57
  %v407 = vunpack.c.h.b16 %v57
  %v408 = vunpack.c.l.b16 %v58
  %v409 = vunpack.c.h.b16 %v58
  %v410 = vunpack.c.l.b16 %v59
  %v411 = vunpack.c.h.b16 %v59
  %v412 = vunpack.c.l.b16 %v60
  %v413 = vunpack.c.h.b16 %v60
  %v414 = vunpack.c.l.b16 %v61
  %v415 = vunpack.c.h.b16 %v61
  %v416 = vunpack.c.l.b16 %v62
  %v417 = vunpack.c.h.b16 %v62
  %v418 = vunpack.c.l.b16 %v63
  %v419 = vunpack.c.h.b16 %v63
  %v420 = vunpack.c.l.b16 %v64
  %v421 = vunpack.c.h.b16 %v64
  %v422 = vunpack.c.l.b16 %v65
  %v423 = vunpack.c.h.b16 %v65
  %v424 = vunpack.c.l.b16 %v66
  %v425 = vunpack.c.h.b16 %v66
  %v426 = vunpack.c.l.b16 %v67
  %v427 = vunpack.c.h.b16 %v67
  %v428 = vunpack.c.l.b16 %v68
  %v429 = vunpack.c.h.b16 %v68
  %v430 = vunpack.c.l.b16 %v69
  %v431 = vunpack.c.h.b16 %v69
  %v432 = vunpack.c.l.b16 %v70
  %v433 = vunpack.c.h.b16 %v70
  %v434 = vunpack.c.l.b16 %v71
  %v435 = vunpack.c.h.b16 %v71
  %v436 = vunpack.c.l.b16 %v72
  %v437 = vunpack.c.h.b16 %v72
  %v438 = vunpack.c.l.b16 %v73
  %v439 = vunpack.c.h.b16 %v73
  %v440 = vunpack.c.l.b16 %v74
  %v441 = vunpack.c.h.b16 %v74
  %v442 = vunpack.c.l.b16 %v75
  %v443 = vunpack.c.h.b16 %v75
  %v444 = vunpack.c.l.b16 %v76
  %v445 = vunpack.c.h.b16 %v76
  %v446 = vunpack.c.l.b16 %v77
  %v447 = vunpack.c.h.b16 %v77
  %v448 = vunpack.c.l.b16 %v78
  %v449 = vunpack.c.h.b16 %v78
  %v450 = vunpack.c.l.b16 %v79
  %v451 = vunpack.c.h.b16 %v79
  %v452 = vunpack.c.l.b16 %v80
  %v453 = vunpack.c.h.b16 %v80
  %v454 = vunpack.c.l.b16 %v81
  %v455 = vunpack.c.h.b16 %v81
  %v456 = vunpack.c.l.b16 %v82
  %v457 = vunpack.c.h.b16 %v82
  %v458 = vunpack.c.l.b16 %v83
  %v459 = vunpack.c.h.b16 %v83
  %v460 = vunpack.c.l.b16 %v84
  %v461 = vunpack.c.h.b16 %v84
  %v462 = vunpack.c.l.b16 %v85
  %v463 = vunpack.c.h.b16 %v85
  %v464 = vunpack.c.l.b16 %v86
  %v465 = vunpack.c.h.b16 %v86
  %v466 = vunpack.c.l.b16 %v87
  %v467 = vunpack.c.h.b16 %v87
  %v468 = vunpack.c.l.b16 %v88
  %v469 = vunpack.c.h.b16 %v88
  %v470 = vunpack.c.l.b16 %v89
  %v471 = vunpack.c.h.b16 %v89
  %v472 = vunpack.c.l.b16 %v90
  %v473 = vunpack.c.h.b16 %v90
  %v474 = vunpack.c.l.b16 %v91
  %v475 = vunpack.c.h.b16 %v91
  %v476 = vunpack.c.l.b16 %v92
  %v477 = vunpack.c.h.b16 %v92
  %v478 = vunpack.c.l.b16 %v93
  %v479 = vunpack.c.h.b16 %v93
  %v480 = vunpack.c.l.b16 %v94
  %v481 = vunpack.c.h.b16 %v94
  %v482 = vunpack.c.l.b16 %v95
  %v483 = vunpack.c.h.b16 %v95
  %v484 = vunpack.c.l.b16 %v96
  %v485 = vunpack.c.h.b16 %v96
  %v486 = vunpack.c.l.b16 %v97
  %v487 = vunpack.c.h.b16 %v97
  %v488 = vunpack.c.l.b16 %v98
  %v489 = vunpack.c.h.b16 %v98
  %v490 = vunpack.c.l.b16 %v99
  %v491 = vunpack.c.h.b16 %v99
  %v492 = vunpack.c.l.b16 %v100
  %v493 = vunpack.c.h.b16 %v100
  %v494 = vunpack.c.l.b16 %v101
  %v495 = vunpack.c.h.b16 %v101
  %v496 = vunpack.c.l.b16 %v102
  %v497 = vunpack.c.h.b16 %v102
  %v498 = vunpack.c.l.b16 %v103
  %v499 = vunpack.c.h.b16 %v103
  %v500 = vunpack.c.l.b16 %v104
  %v501 = vunpack.c.h.b16 %v104
  %v502 = vunpack.c.l.b16 %v105
  %v503 = vunpack.c.h.b16 %v105
  %v504 = vunpack.c.l.b16 %v106
  %v505 = vunpack.c.h.b16 %v106
  %v506 = vunpack.c.l.b16 %v107
  %v507 = vunpack.c.h.b16 %v107
  %v508 = vunpack.c.l.b16 %v108
  %v509 = vunpack.c.h.b16 %v108
  %v510 = vunpack.c.l.b16 %v109
  %v511 = vunpack.c.h.b16 %v109
  %v512 = vunpack.c.l.b16 %v110
  %v513 = vunpack.c.h.b16 %v110
  %v514 = vunpack.c.l.b16 %v111
  %v515 = vunpack.c.h.b16 %v111
  %v516 = vunpack.c.l.b16 %v112
  %v517 = vunpack.c.h.b16 %v112
  %v518 = vunpack.c.l.b16 %v113
  %v519 = vunpack.c.h.b16 %v113
  %v520 = vunpack.c.l.b16 %v114
  %v521 = vunpack.c.h.b16 %v114
  %v522 = vunpack.c.l.b16 %v115
  %v523 = vunpack.c.h.b16 %v115
  %v524 = vunpack.c.l.b16 %v116
  %v525 = vunpack.c.h.b16 %v116
  %v526 = vunpack.c.l.b16 %v117
  %v527 = vunpack.c.h.b16 %v117
  %v528 = vunpack.c.l.b16 %v118
  %v529 = vunpack.c.h.b16 %v118
  %v530 = vunpack.c.l.b16 %v119
  %v531 = vunpack.c.h.b16 %v119
  %v532 = vunpack.c.l.b16 %v120
  %v533 = vunpack.c.h.b16 %v120
  %v534 = vunpack.c.l.b16 %v121
  %v535 = vunpack.c.h.b16 %v121
  %v536 = vunpack.c.l.b16 %v122
  %v537 = vunpack.c.h.b16 %v122
  %v538 = vunpack.c.l.b16 %v123
  %v539 = vunpack.c.h.b16 %v123
  %v540 = vunpack.c.l.b16 %v124
  %v541 = vunpack.c.h.b16 %v124
  %v542 = vunpack.c.l.b16 %v125
  %v543 = vunpack.c.h.b16 %v125
  %v544 = vunpack.c.l.b16 %v126
  %v545 = vunpack.c.h.b16 %v126
  %v546 = vunpack.c.l.b16 %v127
  %v547 = vunpack.c.h.b16 %v127
  %v548 = vunpack.c.l.b16 %v128
  %v549 = vunpack.c.h.b16 %v128
  %v550 = vunpack.c.l.b16 %v129
  %v551 = vunpack.c.h.b16 %v129
  %v552 = vunpack.c.l.b16 %v130
  %v553 = vunpack.c.h.b16 %v130
  %v554 = vunpack.c.l.b16 %v131
  %v555 = vunpack.c.h.b16 %v131
  %v556 = vunpack.c.l.b16 %v132
  %v557 = vunpack.c.h.b16 %v132
  %v558 = vunpack.c.l.b16 %v133
  %v559 = vunpack.c.h.b16 %v133
  %v560 = vunpack.c.l.b16 %v134
  %v561 = vunpack.c.h.b16 %v134
  %v562 = vunpack.c.l.b16 %v135
  %v563 = vunpack.c.h.b16 %v135
  %v564 = vunpack.c.l.b16 %v136
  %v565 = vunpack.c.h.b16 %v136
  %v566 = vunpack.c.l.b16 %v137
  %v567 = vunpack.c.h.b16 %v137
  %v568 = vunpack.c.l.b16 %v138
  %v569 = vunpack.c.h.b16 %v138
  %v570 = vunpack.c.l.b16 %v139
  %v571 = vunpack.c.h.b16 %v139
  %v572 = vunpack.c.l.b16 %v140
  %v573 = vunpack.c.h.b16 %v140
  %v574 = vunpack.c.l.b16 %v141
  %v575 = vunpack.c.h.b16 %v141
  %v576 = vunpack.c.l.b16 %v142
  %v577 = vunpack.c.h.b16 %v142
  %v578 = vunpack.c.l.b16 %v143
  %v579 = vunpack.c.h.b16 %v143
  %v580 = vunpack.c.l.b16 %v144
  %v581 = vunpack.c.h.b16 %v144
  %v582 = vunpack.c.l.b16 %v145
  %v583 = vunpack.c.h.b16 %v145
  %v584 = vunpack.c.l.b16 %v146
  %v585 = vunpack.c.h.b16 %v146
  %v586 = vunpack.c.l.b16 %v147
  %v587 = vunpack.c.h.b16 %v147
  %v588 = vunpack.c.l.b16 %v148
  %v589 = vunpack.c.h.b16 %v148
  %v590 = vunpack.c.l.b16 %v149
  %v591 = vunpack.c.h.b16 %v149
  %v592 = vunpack.c.l.b16 %v150
  %v593 = vunpack.c.h.b16 %v150
  %v594 = vunpack.c.l.b16 %v151
  %v595 = vunpack.c.h.b16 %v151
  %v596 = vunpack.c.l.b16 %v152
  %v597 = vunpack.c.h.b16 %v152
  %v598 = vunpack.c.l.b16 %v153
  %v599 = vunpack.c.h.b16 %v153
  %v600 = vunpack.c.l.b16 %v154
  %v601 = vunpack.c.h.b16 %v154
  %v602 = vunpack.c.l.b16 %v155
  %v603 = vunpack.c.h.b16 %v155
  %v604 = vunpack.c.l.b16 %v156
  %v605 = vunpack.c.h.b16 %v156
  %v606 = vunpack.c.l.b16 %v157
  %v607 = vunpack.c.h.b16 %v157
  %v608 = vunpack.c.l.b16 %v158
  %v609 = vunpack.c.h.b16 %v158
  %v610 = vunpack.c.l.b16 %v159
  %v611 = vunpack.c.h.b16 %v159
  %v612 = vunpack.c.l.b16 %v160
  %v613 = vunpack.c.h.b16 %v160
  %v614 = vunpack.c.l.b16 %v161
  %v615 = vunpack.c.h.b16 %v161
  %v616 = vunpack.c.l.b16 %v162
  %v617 = vunpack.c.h.b16 %v162
  %v618 = vunpack.c.l.b16 %v163
  %v619 = vunpack.c.h.b16 %v163
  %v620 = vunpack.c.l.b16 %v164
  %v621 = vunpack.c.h.b16 %v164
  %v622 = vunpack.c.l.b16 %v165
  %v623 = vunpack.c.h.b16 %v165
  %v624 = vunpack.c.l.b16 %v166
  %v625 = vunpack.c.h.b16 %v166
  %v626 = vunpack.c.l.b16 %v167
  %v627 = vunpack.c.h.b16 %v167
  %v628 = vunpack.c.l.b16 %v168
  %v629 = vunpack.c.h.b16 %v168
  %v630 = vunpack.c.l.b16 %v169
  %v631 = vunpack.c.h.b16 %v169
  %v632 = vunpack.c.l.b16 %v170
  %v633 = vunpack.c.h.b16 %v170
  %v634 = vunpack.c.l.b16 %v171
  %v635 = vunpack.c.h.b16 %v171
  %v636 = vpack.c.b16 %v350, %v348
  %v637 = vpack.c.b16 %v351, %v349
  %v638 = vpack.c.b16 %v354, %v352
  %v639 = vpack.c.b16 %v355, %v353
  %v640 = vpack.c.b16 %v358, %v356
  %v641 = vpack.c.b16 %v359, %v357
  %v642 = vpack.c.b16 %v362, %v360
  %v643 = vpack.c.b16 %v363, %v361
  %v644 = vpack.c.b16 %v366, %v364
  %v645 = vpack.c.b16 %v367, %v365
  %v646 = vpack.c.b16 %v370, %v368
  %v647 = vpack.c.b16 %v371, %v369
  %v648 = vpack.c.b16 %v374, %v372
  %v649 = vpack.c.b16 %v375, %v373
  %v650 = vpack.c.b16 %v378, %v376
  %v651 = vpack.c.b16 %v379, %v377
  %v652 = vpack.c.b16 %v382, %v380
  %v653 = vpack.c.b16 %v383, %v381
  %v654 = vpack.c.b16 %v386, %v384
  %v655 = vpack.c.b16 %v387, %v385
  %v656 = vpack.c.b16 %v390, %v388
  %v657 = vpack.c.b16 %v391, %v389
  %v658 = vpack.c.b16 %v394, %v392
  %v659 = vpack.c.b16 %v395, %v393
  %v660 = vpack.c.b16 %v398, %v396
  %v661 = vpack.c.b16 %v399, %v397
  %v662 = vpack.c.b16 %v402, %v400
  %v663 = vpack.c.b16 %v403, %v401
  %v664 = vpack.c.b16 %v406, %v404
  %v665 = vpack.c.b16 %v407, %v405
  %v666 = vpack.c.b16 %v410, %v408
  %v667 = vpack.c.b16 %v411, %v409
  %v668 = vpack.c.b16 %v414, %v412
  %v669 = vpack.c.b16 %v415, %v413
  %v670 = vpack.c.b16 %v418, %v416
  %v671 = vpack.c.b16 %v419, %v417
  %v672 = vpack.c.b16 %v422, %v420
  %v673 = vpack.c.b16 %v423, %v421
  %v674 = vpack.c.b16 %v426, %v424
  %v675 = vpack.c.b16 %v427, %v425
  %v676 = vpack.c.b16 %v430, %v428
  %v677 = vpack.c.b16 %v431, %v429
  %v678 = vpack.c.b16 %v434, %v432
  %v679 = vpack.c.b16 %v435, %v433
  %v680 = vpack.c.b16 %v438, %v436
  %v681 = vpack.c.b16 %v439, %v437
  %v682 = vpack.c.b16 %v442, %v440
  %v683 = vpack.c.b16 %v443, %v441
  %v684 = vpack.c.b16 %v446, %v444
  %v685 = vpack.c.b16 %v447, %v445
  %v686 = vpack.c.b16 %v450, %v448
  %v687 = vpack.c.b16 %v451, %v449
  %v688 = vpack.c.b16 %v454, %v452
  %v689 = vpack.c.b16 %v455, %v453
  %v690 = vpack.c.b16 %v458, %v456
  %v691 = vpack.c.b16 %v459, %v457
  %v692 = vpack.c.b16 %v462, %v460
  %v693 = vpack.c.b16 %v463, %v461
  %v694 = vpack.c.b16 %v466, %v464
  %v695 = vpack.c.b16 %v467, %v465
  %v696 = vpack.c.b16 %v470, %v468
  %v697 = vpack.c.b16 %v471, %v469
  %v698 = vpack.c.b16 %v474, %v472
  %v699 = vpack.c.b16 %v475, %v473
  %v700 = vpack.c.b16 %v478, %v476
  %v701 = vpack.c.b16 %v479, %v477
  %v702 = vpack.c.b16 %v482, %v480
  %v703 = vpack.c.b16 %v483, %v481
  %v704 = vpack.c.b16 %v486, %v484
  %v705 = vpack.c.b16 %v487, %v485
  %v706 = vpack.c.b16 %v490, %v488
  %v707 = vpack.c.b16 %v491, %v489
  %v708 = vpack.c.b16 %v494, %v492
  %v709 = vpack.c.b16 %v495, %v493
  %v710 = vpack.c.b16 %v498, %v496
  %v711 = vpack.c.b16 %v499, %v497
  %v712 = vpack.c.b16 %v502, %v500
  %v713 = vpack.c.b16 %v503, %v501
  %v714 = vpack.c.b16 %v506, %v504
  %v715 = vpack.c.b16 %v507, %v505
  %v716 = vpack.c.b16 %v510, %v508
  %v717 = vpack.c.b16 %v511, %v509
  %v718 = vpack.c.b16 %v514, %v512
  %v719 = vpack.c.b16 %v515, %v513
  %v720 = vpack.c.b16 %v518, %v516
  %v721 = vpack.c.b16 %v519, %v517
  %v722 = vpack.c.b16 %v522, %v520
  %v723 = vpack.c.b16 %v523, %v521
  %v724 = vpack.c.b16 %v526, %v524
  %v725 = vpack.c.b16 %v527, %v525
  %v726 = vpack.c.b16 %v530, %v528
  %v727 = vpack.c.b16 %v531, %v529
  %v728 = vpack.c.b16 %v534, %v532
  %v729 = vpack.c.b16 %v535, %v533
  %v730 = vpack.c.b16 %v538, %v536
  %v731 = vpack.c.b16 %v539, %v537
  %v732 = vpack.c.b16 %v542, %v540
  %v733 = vpack.c.b16 %v543, %v541
  %v734 = vpack.c.b16 %v546, %v544
  %v735 = vpack.c.b16 %v547, %v545
  %v736 = vpack.c.b16 %v550, %v548
  %v737 = vpack.c.b16 %v551, %v549
  %v738 = vpack.c.b16 %v554, %v552
  %v739 = vpack.c.b16 %v555, %v553
  %v740 = vpack.c.b16 %v558, %v556
  %v741 = vpack.c.b16 %v559, %v557
  %v742 = vpack.c.b16 %v562, %v560
  %v743 = vpack.c.b16 %v563, %v561
  %v744 = vpack.c.b16 %v566, %v564
  %v745 = vpack.c.b16 %v567, %v565
  %v746 = vpack.c.b16 %v570, %v568
  %v747 = vpack.c.b16 %v571, %v569
  %v748 = vpack.c.b16 %v574, %v572
  %v749 = vpack.c.b16 %v575, %v573
  %v750 = vpack.c.b16 %v578, %v576
  %v751 = vpack.c.b16 %v579, %v577
  %v752 = vpack.c.b16 %v582, %v580
  %v753 = vpack.c.b16 %v583, %v581
  %v754 = vpack.c.b16 %v586, %v584
  %v755 = vpack.c.b16 %v587, %v585
  %v756 = vpack.c.b16 %v590, %v588
  %v757 = vpack.c.b16 %v591, %v589
  %v758 = vpack.c.b16 %v594, %v592
  %v759 = vpack.c.b16 %v595, %v593
  %v760 = vpack.c.b16 %v598, %v596
  %v761 = vpack.c.b16 %v599, %v597
  %v762 = vpack.c.b16 %v602, %v600
  %v763 = vpack.c.b16 %v603, %v601
  %v764 = vpack.c.b16 %v606, %v604
  %v765 = vpack.c.b16 %v607, %v605
  %v766 = vpack.c.b16 %v610, %v608
  %v767 = vpack.c.b16 %v611, %v609
  %v768 = vpack.c.b16 %v614, %v612
  %v769 = vpack.c.b16 %v615, %v613
  %v770 = vpack.c.b16 %v618, %v616
  %v771 = vpack.c.b16 %v619, %v617
  %v772 = vpack.c.b16 %v622, %v620
  %v773 = vpack.c.b16 %v623, %v621
  %v774 = vpack.c.b16 %v626, %v624
  %v775 = vpack.c.b16 %v627, %v625
  %v776 = vpack.c.b16 %v630, %v628
  %v777 = vpack.c.b16 %v631, %v629
  %v778 = vpack.c.b16 %v634, %v632
  %v779 = vpack.c.b16 %v635, %v633
  %924 = vmatprep.subr.bf16.mxu0 %v651
  %925 = vmatpush1.bf16.msra.mxu0 %v650
  %926 = vmatprep.subr.bf16.mxu0 %v649
  %927 = vmatpush1.bf16.msra.mxu0 %v648
  %928 = vmatprep.subr.bf16.mxu0 %v647
  %929 = vmatpush1.bf16.msra.mxu0 %v646
  %930 = vmatprep.subr.bf16.mxu0 %v645
  %931 = vmatpush1.bf16.msra.mxu0 %v644
  %932 = vmatprep.subr.bf16.mxu0 %v643
  %933 = vmatpush1.bf16.msra.mxu0 %v642
  %934 = vmatprep.subr.bf16.mxu0 %v641
  %935 = vmatpush1.bf16.msra.mxu0 %v640
  %936 = vmatprep.subr.bf16.mxu0 %v639
  %937 = vmatpush1.bf16.msra.mxu0 %v638
  %938 = vmatprep.subr.bf16.mxu0 %v637
  %939 = vmatpush1.bf16.msra.mxu0 %v636
  %940 = vmatprep.subr.bf16.mxu0 %v667
  %941 = vmatpush2.bf16.msra.mxu0 %v666
  %942 = vmatprep.subr.bf16.mxu0 %v665
  %943 = vmatpush2.bf16.msra.mxu0 %v664
  %944 = vmatprep.subr.bf16.mxu0 %v663
  %945 = vmatpush2.bf16.msra.mxu0 %v662
  %946 = vmatprep.subr.bf16.mxu0 %v661
  %947 = vmatpush2.bf16.msra.mxu0 %v660
  %948 = vmatprep.subr.bf16.mxu0 %v659
  %949 = vmatpush2.bf16.msra.mxu0 %v658
  %950 = vmatprep.subr.bf16.mxu0 %v657
  %951 = vmatpush2.bf16.msra.mxu0 %v656
  %952 = vmatprep.subr.bf16.mxu0 %v655
  %953 = vmatpush2.bf16.msra.mxu0 %v654
  %954 = vmatprep.subr.bf16.mxu0 %v653
  %955 = vmatpush2.bf16.msra.mxu0 %v652
  %956 = vmatprep.mubr.bf16.mxu0 %v187
  %957 = vmatmul.mubr.bf16.gmra.mxu0 %v186
  %v958 = vpop.f32.mrf.mxu0
  %v959 = vadd.f32 0.0, %v958
  %v960 = vpop.f32.mrf.mxu0
  %v961 = vadd.f32 0.0, %v960
  %v962 = vpop.f32.mrf.mxu0
  %v963 = vpop.f32.mrf.mxu0
  %964 = vdwg.mxu0
  %965 = vmatprep.subr.bf16.mxu0 %v683
  %966 = vmatpush1.bf16.msra.mxu0 %v682
  %967 = vmatprep.subr.bf16.mxu0 %v681
  %968 = vmatpush1.bf16.msra.mxu0 %v680
  %969 = vmatprep.subr.bf16.mxu0 %v679
  %970 = vmatpush1.bf16.msra.mxu0 %v678
  %971 = vmatprep.subr.bf16.mxu0 %v677
  %972 = vmatpush1.bf16.msra.mxu0 %v676
  %973 = vmatprep.subr.bf16.mxu0 %v675
  %974 = vmatpush1.bf16.msra.mxu0 %v674
  %975 = vmatprep.subr.bf16.mxu0 %v673
  %976 = vmatpush1.bf16.msra.mxu0 %v672
  %977 = vmatprep.subr.bf16.mxu0 %v671
  %978 = vmatpush1.bf16.msra.mxu0 %v670
  %979 = vmatprep.subr.bf16.mxu0 %v669
  %980 = vmatpush1.bf16.msra.mxu0 %v668
  %981 = vmatprep.subr.bf16.mxu0 %v699
  %982 = vmatpush2.bf16.msra.mxu0 %v698
  %983 = vmatprep.subr.bf16.mxu0 %v697
  %984 = vmatpush2.bf16.msra.mxu0 %v696
  %985 = vmatprep.subr.bf16.mxu0 %v695
  %986 = vmatpush2.bf16.msra.mxu0 %v694
  %987 = vmatprep.subr.bf16.mxu0 %v693
  %988 = vmatpush2.bf16.msra.mxu0 %v692
  %989 = vmatprep.subr.bf16.mxu0 %v691
  %990 = vmatpush2.bf16.msra.mxu0 %v690
  %991 = vmatprep.subr.bf16.mxu0 %v689
  %992 = vmatpush2.bf16.msra.mxu0 %v688
  %993 = vmatprep.subr.bf16.mxu0 %v687
  %994 = vmatpush2.bf16.msra.mxu0 %v686
  %995 = vmatprep.subr.bf16.mxu0 %v685
  %996 = vmatpush2.bf16.msra.mxu0 %v684
  %997 = vmatprep.mubr.bf16.mxu0 %v189
  %998 = vmatmul.mubr.bf16.gmra.mxu0 %v188
  %v999 = vpop.f32.mrf.mxu0
  %v1000 = vadd.f32 %v959, %v999
  %v1001 = vpop.f32.mrf.mxu0
  %v1002 = vadd.f32 %v961, %v1001
  %v1003 = vpop.f32.mrf.mxu0
  %v1004 = vpop.f32.mrf.mxu0
  %1005 = vdwg.mxu0
  %1006 = vmatprep.subr.bf16.mxu0 %v715
  %1007 = vmatpush1.bf16.msra.mxu0 %v714
  %1008 = vmatprep.subr.bf16.mxu0 %v713
  %1009 = vmatpush1.bf16.msra.mxu0 %v712
  %1010 = vmatprep.subr.bf16.mxu0 %v711
  %1011 = vmatpush1.bf16.msra.mxu0 %v710
  %1012 = vmatprep.subr.bf16.mxu0 %v709
  %1013 = vmatpush1.bf16.msra.mxu0 %v708
  %1014 = vmatprep.subr.bf16.mxu0 %v707
  %1015 = vmatpush1.bf16.msra.mxu0 %v706
  %1016 = vmatprep.subr.bf16.mxu0 %v705
  %1017 = vmatpush1.bf16.msra.mxu0 %v704
  %1018 = vmatprep.subr.bf16.mxu0 %v703
  %1019 = vmatpush1.bf16.msra.mxu0 %v702
  %1020 = vmatprep.subr.bf16.mxu0 %v701
  %1021 = vmatpush1.bf16.msra.mxu0 %v700
  %1022 = vmatprep.subr.bf16.mxu0 %v731
  %1023 = vmatpush2.bf16.msra.mxu0 %v730
  %1024 = vmatprep.subr.bf16.mxu0 %v729
  %1025 = vmatpush2.bf16.msra.mxu0 %v728
  %1026 = vmatprep.subr.bf16.mxu0 %v727
  %1027 = vmatpush2.bf16.msra.mxu0 %v726
  %1028 = vmatprep.subr.bf16.mxu0 %v725
  %1029 = vmatpush2.bf16.msra.mxu0 %v724
  %1030 = vmatprep.subr.bf16.mxu0 %v723
  %1031 = vmatpush2.bf16.msra.mxu0 %v722
  %1032 = vmatprep.subr.bf16.mxu0 %v721
  %1033 = vmatpush2.bf16.msra.mxu0 %v720
  %1034 = vmatprep.subr.bf16.mxu0 %v719
  %1035 = vmatpush2.bf16.msra.mxu0 %v718
  %1036 = vmatprep.subr.bf16.mxu0 %v717
  %1037 = vmatpush2.bf16.msra.mxu0 %v716
  %1038 = vmatprep.mubr.bf16.mxu0 %v191
  %1039 = vmatmul.mubr.bf16.gmra.mxu0 %v190
  %v1040 = vpop.f32.mrf.mxu0
  %v1041 = vadd.f32 %v1000, %v1040
  %v1042 = vpop.f32.mrf.mxu0
  %v1043 = vadd.f32 %v1002, %v1042
  %v1044 = vpop.f32.mrf.mxu0
  %v1045 = vpop.f32.mrf.mxu0
  %1046 = vdwg.mxu0
  %1047 = vmatprep.subr.bf16.mxu0 %v747
  %1048 = vmatpush1.bf16.msra.mxu0 %v746
  %1049 = vmatprep.subr.bf16.mxu0 %v745
  %1050 = vmatpush1.bf16.msra.mxu0 %v744
  %1051 = vmatprep.subr.bf16.mxu0 %v743
  %1052 = vmatpush1.bf16.msra.mxu0 %v742
  %1053 = vmatprep.subr.bf16.mxu0 %v741
  %1054 = vmatpush1.bf16.msra.mxu0 %v740
  %1055 = vmatprep.subr.bf16.mxu0 %v739
  %1056 = vmatpush1.bf16.msra.mxu0 %v738
  %1057 = vmatprep.subr.bf16.mxu0 %v737
  %1058 = vmatpush1.bf16.msra.mxu0 %v736
  %1059 = vmatprep.subr.bf16.mxu0 %v735
  %1060 = vmatpush1.bf16.msra.mxu0 %v734
  %1061 = vmatprep.subr.bf16.mxu0 %v733
  %1062 = vmatpush1.bf16.msra.mxu0 %v732
  %1063 = vmatprep.subr.bf16.mxu0 %v763
  %1064 = vmatpush2.bf16.msra.mxu0 %v762
  %1065 = vmatprep.subr.bf16.mxu0 %v761
  %1066 = vmatpush2.bf16.msra.mxu0 %v760
  %1067 = vmatprep.subr.bf16.mxu0 %v759
  %1068 = vmatpush2.bf16.msra.mxu0 %v758
  %1069 = vmatprep.subr.bf16.mxu0 %v757
  %1070 = vmatpush2.bf16.msra.mxu0 %v756
  %1071 = vmatprep.subr.bf16.mxu0 %v755
  %1072 = vmatpush2.bf16.msra.mxu0 %v754
  %1073 = vmatprep.subr.bf16.mxu0 %v753
  %1074 = vmatpush2.bf16.msra.mxu0 %v752
  %1075 = vmatprep.subr.bf16.mxu0 %v751
  %1076 = vmatpush2.bf16.msra.mxu0 %v750
  %1077 = vmatprep.subr.bf16.mxu0 %v749
  %1078 = vmatpush2.bf16.msra.mxu0 %v748
  %1079 = vmatprep.mubr.bf16.mxu0 %v193
  %1080 = vmatmul.mubr.bf16.gmra.mxu0 %v192
  %v1081 = vpop.f32.mrf.mxu0
  %v1082 = vadd.f32 %v1041, %v1081
  %v1083 = vpop.f32.mrf.mxu0
  %v1084 = vadd.f32 %v1043, %v1083
  %v1085 = vpop.f32.mrf.mxu0
  %v1086 = vpop.f32.mrf.mxu0
  %1087 = vdwg.mxu0
  %1088 = vmatprep.subr.bf16.mxu0 %v779
  %1089 = vmatpush1.bf16.msra.mxu0 %v778
  %1090 = vmatprep.subr.bf16.mxu0 %v777
  %1091 = vmatpush1.bf16.msra.mxu0 %v776
  %1092 = vmatprep.subr.bf16.mxu0 %v775
  %1093 = vmatpush1.bf16.msra.mxu0 %v774
  %1094 = vmatprep.subr.bf16.mxu0 %v773
  %1095 = vmatpush1.bf16.msra.mxu0 %v772
  %1096 = vmatprep.subr.bf16.mxu0 %v771
  %1097 = vmatpush1.bf16.msra.mxu0 %v770
  %1098 = vmatprep.subr.bf16.mxu0 %v769
  %1099 = vmatpush1.bf16.msra.mxu0 %v768
  %1100 = vmatprep.subr.bf16.mxu0 %v767
  %1101 = vmatpush1.bf16.msra.mxu0 %v766
  %1102 = vmatprep.subr.bf16.mxu0 %v765
  %1103 = vmatpush1.bf16.msra.mxu0 %v764
  %1104 = vmatprep.subr.bf16.mxu0 0
  %1105 = vmatpush2.bf16.msra.mxu0 0
  %1106 = vmatprep.subr.bf16.mxu0 0
  %1107 = vmatpush2.bf16.msra.mxu0 0
  %1108 = vmatprep.subr.bf16.mxu0 0
  %1109 = vmatpush2.bf16.msra.mxu0 0
  %1110 = vmatprep.subr.bf16.mxu0 0
  %1111 = vmatpush2.bf16.msra.mxu0 0
  %1112 = vmatprep.subr.bf16.mxu0 0
  %1113 = vmatpush2.bf16.msra.mxu0 0
  %1114 = vmatprep.subr.bf16.mxu0 0
  %1115 = vmatpush2.bf16.msra.mxu0 0
  %1116 = vmatprep.subr.bf16.mxu0 0
  %1117 = vmatpush2.bf16.msra.mxu0 0
  %1118 = vmatprep.subr.bf16.mxu0 0
  %1119 = vmatpush2.bf16.msra.mxu0 0
  %1120 = vmatprep.mubr.bf16.mxu0 0
  %1121 = vmatmul.mubr.bf16.gmra.mxu0 %v194
  %v1122 = vpop.f32.mrf.mxu0
  %v1123 = vadd.f32 %v1082, %v1122
  %v1124 = vpop.f32.mrf.mxu0
  %v1125 = vadd.f32 %v1084, %v1124
  %v1126 = vpop.f32.mrf.mxu0
  %v1127 = vpop.f32.mrf.mxu0
  %1128 = vdwg.mxu0
  %v1129 = vadd.f32 %v21, %v1123
  %v1130 = vadd.f32 %v22, %v1125
  %1131 = vst [vmem:[#allocation2] sm:$0xff] %v1129
  %1132 = vst [vmem:[#allocation2 + $0x8] sm:$0xff] %v1130
  // Predicated region
  $region18: #{patch_conv_encoder_forward.10} parent=0 // pred_check
    %p1133 = pneg %p15
  $region19: #{patch_conv_encoder_forward.10} parent=0 // pred_check_branch
    %1135 = sbr.rel (%p1133) target = $region21
  $region20: #{patch_conv_encoder_forward.10} parent=0 // pred_region
    %v1136 = vld [vmem:[#allocation2] sm:$0xff]
    %v1137 = vld [vmem:[#allocation2 + $0x8] sm:$0xff]
    %v1138 = vld [vmem:[%s2] sm:$0x3]
    %v1140 = vlaneseq
    %v1141 = vshrl.u32 %v1140, 7
    %v1142 = vsub.s32 0, %v1141
    %v1143 = vrot.slane %v1138, %v1142
    %v1144 = vlaneseq
    %v1145 = vshrl.u32 %v1144, 7
    %v1146 = vsub.s32 1, %v1145
    %v1147 = vrot.slane %v1138, %v1146
    %v1150 = vadd.f32 %v1136, %v1143
    %v1151 = vadd.f32 %v1137, %v1147
    %v1152 = vmax.f32 %v1150, 0.0
    %v1153 = vmax.f32 %v1151, 0.0
    %1154 = vst [vmem:[%s3] sm:$0xff] %v1152
    %1155 = vst [vmem:[%s3 + $0x8] sm:$0xff] %v1153
  $region21: #{patch_conv_encoder_forward.10} parent=0 // pred_fallthru
    _
  // Predicated region
  $region22: #{patch_conv_encoder_forward.10} parent=0 // pred_check
    _
  $region23: #{patch_conv_encoder_forward.10} parent=0 // pred_check_branch
    %1157 = sbr.rel (0) target = $region25
  $region24: #{patch_conv_encoder_forward.10} parent=0 // pred_region
    _
  $region25: #{patch_conv_encoder_forward.10} parent=0 // pred_fallthru
    _
  // Predicated region
  $region26: #{patch_conv_encoder_forward.10} parent=0 // pred_check
    _
  $region27: #{patch_conv_encoder_forward.10} parent=0 // pred_check_branch
    %1159 = sbr.rel (0) target = $region29
  $region28: #{patch_conv_encoder_forward.10} parent=0 // pred_region
    _
  $region29: #{patch_conv_encoder_forward.10} parent=0 // pred_fallthru
    _

// kernel: patch_conv_encoder_forward.12
$region0: #{patch_conv_encoder_forward.12}
  #allocation0 [shape = 'u32[]', space=smem, size = 0x4, offset = 0x4, fixed_abs, tag = 'smem constant byte address 0x4 - core index']
  #allocation1 [shape = 'u32[144,128]{1,0:T(1,128)}', space=vmem, size = 0x12000, scoped, tag = 'internal scratch']
  #allocation2 [shape = 'f32[8,256]{1,0:T(8,128)}', space=vmem, size = 0x2000, scoped, tag = 'scratch operand']
  %s0 = inlined_call_operand.vmem [shape: bf16[8,128], index: 0, kind: input, shape index: {}]
  %s1 = inlined_call_operand.vmem [shape: bf16[128,256], index: 1, kind: input, shape index: {}]
  %s2 = inlined_call_operand.vmem [shape: f32[1,256], index: 2, kind: input, shape index: {}]
  %s3 = inlined_call_operand.vmem [shape: f32[8,256], index: 3, kind: input, shape index: {}]
  %s4 = inlined_call_operand.vmem [shape: f32[8,256], index: 4, kind: output, shape index: {}]
  %s5 = sld [smem:[#allocation0]]
  $region34: #{patch_conv_encoder_forward.12} parent=0
    _
  %s7 = ssub.s32 1, %s5
  %s8 = scalar_select 0, %s7, %s5
  // Predicated region
  $region2: #{patch_conv_encoder_forward.12} parent=0 // pred_check
    _
  $region3: #{patch_conv_encoder_forward.12} parent=0 // pred_check_branch
    %10 = sbr.rel (0) target = $region5
  $region4: #{patch_conv_encoder_forward.12} parent=0 // pred_region
    _
  $region5: #{patch_conv_encoder_forward.12} parent=0 // pred_fallthru
    _
  // Predicated region
  $region6: #{patch_conv_encoder_forward.12} parent=0 // pred_check
    _
  $region7: #{patch_conv_encoder_forward.12} parent=0 // pred_check_branch
    %12 = sbr.rel (0) target = $region9
  $region8: #{patch_conv_encoder_forward.12} parent=0 // pred_region
    _
  $region9: #{patch_conv_encoder_forward.12} parent=0 // pred_fallthru
    _
  // Predicated region
  $region10: #{patch_conv_encoder_forward.12} parent=0 // pred_check
    _
  $region11: #{patch_conv_encoder_forward.12} parent=0 // pred_check_branch
    %14 = sbr.rel (0) target = $region13
  $region12: #{patch_conv_encoder_forward.12} parent=0 // pred_region
    _
  $region13: #{patch_conv_encoder_forward.12} parent=0 // pred_fallthru
    _
  // Predicated region
  $region14: #{patch_conv_encoder_forward.12} parent=0 // pred_check
    _
  $region15: #{patch_conv_encoder_forward.12} parent=0 // pred_check_branch
    %16 = sbr.rel (0) target = $region17
  $region16: #{patch_conv_encoder_forward.12} parent=0 // pred_region
    _
  $region17: #{patch_conv_encoder_forward.12} parent=0 // pred_fallthru
    _
  %p18 = scmp.eq.s32.totalorder 0, 0
  // Predicated region
  $region18: #{patch_conv_encoder_forward.12} parent=0 // pred_check
    %p19 = pneg %p18
  $region19: #{patch_conv_encoder_forward.12} parent=0 // pred_check_branch
    %21 = sbr.rel (%p19) target = $region21
  $region20: #{patch_conv_encoder_forward.12} parent=0 // pred_region
    %22 = vst [vmem:[#allocation2] sm:$0xff] 0.0
    %23 = vst [vmem:[#allocation2 + $0x8] sm:$0xff] 0.0
  $region21: #{patch_conv_encoder_forward.12} parent=0 // pred_fallthru
    _
  %v24 = vld [vmem:[#allocation2] sm:$0xff]
  %v25 = vld [vmem:[#allocation2 + $0x8] sm:$0xff]
  %v26 = vld [vmem:[%s0] sm:$0xf]
  %v27 = vld [vmem:[%s1] sm:$0xff]
  %v28 = vld [vmem:[%s1 + $0x8] sm:$0xff]
  %v29 = vld [vmem:[%s1 + $0x10] sm:$0xff]
  %v30 = vld [vmem:[%s1 + $0x18] sm:$0xff]
  %v31 = vld [vmem:[%s1 + $0x20] sm:$0xff]
  %v32 = vld [vmem:[%s1 + $0x28] sm:$0xff]
  %v33 = vld [vmem:[%s1 + $0x30] sm:$0xff]
  %v34 = vld [vmem:[%s1 + $0x38] sm:$0xff]
  %v35 = vld [vmem:[%s1 + $0x40] sm:$0xff]
  %v36 = vld [vmem:[%s1 + $0x48] sm:$0xff]
  %v37 = vld [vmem:[%s1 + $0x50] sm:$0xff]
  %v38 = vld [vmem:[%s1 + $0x58] sm:$0xff]
  %v39 = vld [vmem:[%s1 + $0x60] sm:$0xff]
  %v40 = vld [vmem:[%s1 + $0x68] sm:$0xff]
  %v41 = vld [vmem:[%s1 + $0x70] sm:$0xff]
  %v42 = vld [vmem:[%s1 + $0x78] sm:$0xff]
  %v59 = vunpack.c.l.b16 %v27
  %v60 = vunpack.c.h.b16 %v27
  %v61 = vunpack.c.l.b16 %v28
  %v62 = vunpack.c.h.b16 %v28
  %v63 = vunpack.c.l.b16 %v29
  %v64 = vunpack.c.h.b16 %v29
  %v65 = vunpack.c.l.b16 %v30
  %v66 = vunpack.c.h.b16 %v30
  %v67 = vunpack.c.l.b16 %v31
  %v68 = vunpack.c.h.b16 %v31
  %v69 = vunpack.c.l.b16 %v32
  %v70 = vunpack.c.h.b16 %v32
  %v71 = vunpack.c.l.b16 %v33
  %v72 = vunpack.c.h.b16 %v33
  %v73 = vunpack.c.l.b16 %v34
  %v74 = vunpack.c.h.b16 %v34
  %v75 = vunpack.c.l.b16 %v35
  %v76 = vunpack.c.h.b16 %v35
  %v77 = vunpack.c.l.b16 %v36
  %v78 = vunpack.c.h.b16 %v36
  %v79 = vunpack.c.l.b16 %v37
  %v80 = vunpack.c.h.b16 %v37
  %v81 = vunpack.c.l.b16 %v38
  %v82 = vunpack.c.h.b16 %v38
  %v83 = vunpack.c.l.b16 %v39
  %v84 = vunpack.c.h.b16 %v39
  %v85 = vunpack.c.l.b16 %v40
  %v86 = vunpack.c.h.b16 %v40
  %v87 = vunpack.c.l.b16 %v41
  %v88 = vunpack.c.h.b16 %v41
  %v89 = vunpack.c.l.b16 %v42
  %v90 = vunpack.c.h.b16 %v42
  %v91 = vpack.c.b16 %v61, %v59
  %v92 = vpack.c.b16 %v62, %v60
  %v93 = vpack.c.b16 %v65, %v63
  %v94 = vpack.c.b16 %v66, %v64
  %v95 = vpack.c.b16 %v69, %v67
  %v96 = vpack.c.b16 %v70, %v68
  %v97 = vpack.c.b16 %v73, %v71
  %v98 = vpack.c.b16 %v74, %v72
  %v99 = vpack.c.b16 %v77, %v75
  %v100 = vpack.c.b16 %v78, %v76
  %v101 = vpack.c.b16 %v81, %v79
  %v102 = vpack.c.b16 %v82, %v80
  %v103 = vpack.c.b16 %v85, %v83
  %v104 = vpack.c.b16 %v86, %v84
  %v105 = vpack.c.b16 %v89, %v87
  %v106 = vpack.c.b16 %v90, %v88
  %123 = vmatprep.subr.bf16.mxu0 %v106
  %124 = vmatpush1.bf16.msra.mxu0 %v105
  %125 = vmatprep.subr.bf16.mxu0 %v104
  %126 = vmatpush1.bf16.msra.mxu0 %v103
  %127 = vmatprep.subr.bf16.mxu0 %v102
  %128 = vmatpush1.bf16.msra.mxu0 %v101
  %129 = vmatprep.subr.bf16.mxu0 %v100
  %130 = vmatpush1.bf16.msra.mxu0 %v99
  %131 = vmatprep.subr.bf16.mxu0 %v98
  %132 = vmatpush1.bf16.msra.mxu0 %v97
  %133 = vmatprep.subr.bf16.mxu0 %v96
  %134 = vmatpush1.bf16.msra.mxu0 %v95
  %135 = vmatprep.subr.bf16.mxu0 %v94
  %136 = vmatpush1.bf16.msra.mxu0 %v93
  %137 = vmatprep.subr.bf16.mxu0 %v92
  %138 = vmatpush1.bf16.msra.mxu0 %v91
  %139 = vmatprep.subr.bf16.mxu0 0
  %140 = vmatpush2.bf16.msra.mxu0 0
  %141 = vmatprep.subr.bf16.mxu0 0
  %142 = vmatpush2.bf16.msra.mxu0 0
  %143 = vmatprep.subr.bf16.mxu0 0
  %144 = vmatpush2.bf16.msra.mxu0 0
  %145 = vmatprep.subr.bf16.mxu0 0
  %146 = vmatpush2.bf16.msra.mxu0 0
  %147 = vmatprep.subr.bf16.mxu0 0
  %148 = vmatpush2.bf16.msra.mxu0 0
  %149 = vmatprep.subr.bf16.mxu0 0
  %150 = vmatpush2.bf16.msra.mxu0 0
  %151 = vmatprep.subr.bf16.mxu0 0
  %152 = vmatpush2.bf16.msra.mxu0 0
  %153 = vmatprep.subr.bf16.mxu0 0
  %154 = vmatpush2.bf16.msra.mxu0 0
  %155 = vmatprep.mubr.bf16.mxu0 0
  %156 = vmatmul.mubr.bf16.gmra.mxu0 %v26
  %v157 = vpop.f32.mrf.mxu0
  %v158 = vadd.f32 0.0, %v157
  %v159 = vpop.f32.mrf.mxu0
  %v160 = vadd.f32 0.0, %v159
  %v161 = vpop.f32.mrf.mxu0
  %v162 = vpop.f32.mrf.mxu0
  %163 = vdwg.mxu0
  %v164 = vadd.f32 %v24, %v158
  %v165 = vadd.f32 %v25, %v160
  %166 = vst [vmem:[#allocation2] sm:$0xff] %v164
  %167 = vst [vmem:[#allocation2 + $0x8] sm:$0xff] %v165
  // Predicated region
  $region22: #{patch_conv_encoder_forward.12} parent=0 // pred_check
    %p168 = pneg %p18
  $region23: #{patch_conv_encoder_forward.12} parent=0 // pred_check_branch
    %170 = sbr.rel (%p168) target = $region25
  $region24: #{patch_conv_encoder_forward.12} parent=0 // pred_region
    %v171 = vld [vmem:[#allocation2] sm:$0xff]
    %v172 = vld [vmem:[#allocation2 + $0x8] sm:$0xff]
    %v173 = vld [vmem:[%s2] sm:$0x3]
    %v175 = vlaneseq
    %v176 = vshrl.u32 %v175, 7
    %v177 = vsub.s32 0, %v176
    %v178 = vrot.slane %v173, %v177
    %v179 = vlaneseq
    %v180 = vshrl.u32 %v179, 7
    %v181 = vsub.s32 1, %v180
    %v182 = vrot.slane %v173, %v181
    %v185 = vadd.f32 %v171, %v178
    %v186 = vadd.f32 %v172, %v182
    %v187 = vld [vmem:[%s3] sm:$0xff]
    %v188 = vld [vmem:[%s3 + $0x8] sm:$0xff]
    %v189 = vadd.f32 %v185, %v187
    %v190 = vadd.f32 %v186, %v188
    %191 = vst [vmem:[%s4] sm:$0xff] %v189
    %192 = vst [vmem:[%s4 + $0x8] sm:$0xff] %v190
  $region25: #{patch_conv_encoder_forward.12} parent=0 // pred_fallthru
    _
  // Predicated region
  $region26: #{patch_conv_encoder_forward.12} parent=0 // pred_check
    _
  $region27: #{patch_conv_encoder_forward.12} parent=0 // pred_check_branch
    %194 = sbr.rel (0) target = $region29
  $region28: #{patch_conv_encoder_forward.12} parent=0 // pred_region
    _
  $region29: #{patch_conv_encoder_forward.12} parent=0 // pred_fallthru
    _
  // Predicated region
  $region30: #{patch_conv_encoder_forward.12} parent=0 // pred_check
    _
  $region31: #{patch_conv_encoder_forward.12} parent=0 // pred_check_branch
    %196 = sbr.rel (0) target = $region33
  $region32: #{patch_conv_encoder_forward.12} parent=0 // pred_region
    _
  $region33: #{patch_conv_encoder_forward.12} parent=0 // pred_fallthru
    _

// kernel: patch_conv_encoder_forward.15
$region0: #{patch_conv_encoder_forward.15}
  #allocation0 [shape = 'u32[]', space=smem, size = 0x4, offset = 0x4, fixed_abs, tag = 'smem constant byte address 0x4 - core index']
  #allocation1 [shape = 'u32[144,128]{1,0:T(1,128)}', space=vmem, size = 0x12000, scoped, tag = 'internal scratch']
  #allocation2 [shape = 'f32[8,32]{1,0:T(8,128)}', space=vmem, size = 0x1000, scoped, tag = 'scratch operand']
  %s0 = inlined_call_operand.vmem [shape: bf16[8,2304], index: 0, kind: input, shape index: {}]
  %s1 = inlined_call_operand.vmem [shape: bf16[2304,32], index: 1, kind: input, shape index: {}]
  %s2 = inlined_call_operand.vmem [shape: f32[1,32], index: 2, kind: input, shape index: {}]
  %s3 = inlined_call_operand.hbm [shape: f32[8,32], index: 3, kind: output, shape index: {}]
  %s4 = sld [smem:[#allocation0]]
  $region53: #{patch_conv_encoder_forward.15} parent=0
    _
  %s6 = ssub.s32 1, %s4
  %s7 = scalar_select 0, %s6, %s4
  $region1: #{patch_conv_encoder_forward.15} parent=0
    #allocation3 [shape = 'u8[4096]{0}', space=vmem, size = 0x1000, scoped, tag = 'output window, operand 0, single buffered']
    #allocation4 [shape = 's32[2]{0}', space=sflag, size = 0x8, scoped, tag = 'scoped memory for patch_conv_encoder_forward.15']
    %8 = vsyncpa [#allocation4], 0
    loop: start=0, step=1, limit=5
    $region2: #{patch_conv_encoder_forward.15} parent=1 // loop_pre_header
      _
    $region3: #{patch_conv_encoder_forward.15} parent=1 // loop_header
      %s10 = sphi 0, %s14
      %p11 = scmp.ge.s32.totalorder %s10, 5
      %s17 = sphi 0, %s36
      %s18 = sphi 0, %s32
      %s19 = sphi 0, %s28
      %s20 = sphi 0, %s17
      %s21 = sphi 0, %s18
      %s22 = sphi 0, %s19
      %s23 = sphi 0, %s20
      %s24 = sphi 0, %s21
      %s25 = sphi 0, %s22
      %s41 = sphi 0, %s43
      %s44 = sphi 0, %s41
      %s45 = sphi 0, %s44
      %s61 = sphi 0, %s45
      %s69 = sphi 0, %s71
      %s72 = sphi 0, %s69
      %s73 = sphi 0, %s72
      %s89 = sphi 0, %s73
      %s95 = sphi 0, %s97
      %s98 = sphi 0, %s95
      %s99 = sphi 0, %s98
      %s115 = sphi 0, %s99
      %s123 = sphi 0, %s125
      %s126 = sphi 0, %s123
      %s127 = sphi 0, %s126
      %s143 = sphi 0, %s127
    $region4: #{patch_conv_encoder_forward.15} parent=1 // loop_header_branch
      %13 = sbr.rel (%p11) target = $region8
    $region5: #{patch_conv_encoder_forward.15} parent=1 // loop_body
      %s15 = ssub.s32 %s10, 1
      %s16 = ssub.s32 %s10, 2
      %s26 = sadd.s32 1, %s19
      %p27 = scmp.ge.s32.totalorder %s26, 3
      %s28 = scalar_select %p27, 0, %s26
      %s29 = sadd.s32 1, %s18
      %s30 = scalar_select %p27, %s29, %s18
      %p31 = scmp.ge.s32.totalorder %s30, 1
      %s32 = scalar_select %p31, 0, %s30
      %s33 = sadd.s32 1, %s17
      %s34 = scalar_select %p31, %s33, %s17
      %p35 = scmp.ge.s32.totalorder %s34, 1
      %s36 = scalar_select %p35, 0, %s34
      %s37 = ssub.s32 %s17, %s36
      %s38 = ssub.s32 %s19, %s28
      %s39 = sor.u32 %s37, %s38
      %p40 = scmp.eq.s32.totalorder %s39, 0
      %s42 = sadd.s32 %s41, 1
      %s43 = scalar_select %p40, %s41, %s42
      %p46 = pneg %p40
      %p47 = scmp.eq.s32.totalorder %s10, 2
      %p48 = por %p46, %p47
      %p49 = scmp.ne.s32.totalorder %s41, %s44
      %p50 = scmp.eq.s32.totalorder %s10, 0
      %p51 = por %p49, %p50
      %p52 = scmp.ne.s32.totalorder %s41, %s44
      %p53 = scmp.eq.s32.totalorder %s15, 2
      %p54 = por %p52, %p53
      %p55 = scmp.ne.s32.totalorder %s44, %s45
      %p56 = scmp.eq.s32.totalorder %s15, 0
      %p57 = por %p55, %p56
      %p58 = scmp.ne.s32.totalorder %s44, %s45
      %p59 = scmp.eq.s32.totalorder %s16, 2
      %p60 = por %p58, %p59
      %p62 = scmp.ne.s32.totalorder %s45, %s61
      %p63 = scmp.eq.s32.totalorder %s16, 0
      %p64 = por %p62, %p63
      %s65 = ssub.s32 %s19, %s28
      %s66 = ssub.s32 %s18, %s32
      %s67 = sor.u32 %s65, %s66
      %p68 = scmp.eq.s32.totalorder %s67, 0
      %s70 = sadd.s32 %s69, 1
      %s71 = scalar_select %p68, %s69, %s70
      %p74 = pneg %p68
      %p75 = scmp.eq.s32.totalorder %s10, 2
      %p76 = por %p74, %p75
      %p77 = scmp.ne.s32.totalorder %s69, %s72
      %p78 = scmp.eq.s32.totalorder %s10, 0
      %p79 = por %p77, %p78
      %p80 = scmp.ne.s32.totalorder %s69, %s72
      %p81 = scmp.eq.s32.totalorder %s15, 2
      %p82 = por %p80, %p81
      %p83 = scmp.ne.s32.totalorder %s72, %s73
      %p84 = scmp.eq.s32.totalorder %s15, 0
      %p85 = por %p83, %p84
      %p86 = scmp.ne.s32.totalorder %s72, %s73
      %p87 = scmp.eq.s32.totalorder %s16, 2
      %p88 = por %p86, %p87
      %p90 = scmp.ne.s32.totalorder %s73, %s89
      %p91 = scmp.eq.s32.totalorder %s16, 0
      %p92 = por %p90, %p91
      %s93 = ssub.s32 %s18, %s32
      %p94 = scmp.eq.s32.totalorder %s93, 0
      %s96 = sadd.s32 %s95, 1
      %s97 = scalar_select %p94, %s95, %s96
      %p100 = pneg %p94
      %p101 = scmp.eq.s32.totalorder %s10, 2
      %p102 = por %p100, %p101
      %p103 = scmp.ne.s32.totalorder %s95, %s98
      %p104 = scmp.eq.s32.totalorder %s10, 0
      %p105 = por %p103, %p104
      %p106 = scmp.ne.s32.totalorder %s95, %s98
      %p107 = scmp.eq.s32.totalorder %s15, 2
      %p108 = por %p106, %p107
      %p109 = scmp.ne.s32.totalorder %s98, %s99
      %p110 = scmp.eq.s32.totalorder %s15, 0
      %p111 = por %p109, %p110
      %p112 = scmp.ne.s32.totalorder %s98, %s99
      %p113 = scmp.eq.s32.totalorder %s16, 2
      %p114 = por %p112, %p113
      %p116 = scmp.ne.s32.totalorder %s99, %s115
      %p117 = scmp.eq.s32.totalorder %s16, 0
      %p118 = por %p116, %p117
      %s119 = ssub.s32 %s17, %s36
      %s120 = ssub.s32 %s18, %s32
      %s121 = sor.u32 %s119, %s120
      %p122 = scmp.eq.s32.totalorder %s121, 0
      %s124 = sadd.s32 %s123, 1
      %s125 = scalar_select %p122, %s123, %s124
      %p128 = pneg %p122
      %p129 = scmp.eq.s32.totalorder %s10, 2
      %p130 = por %p128, %p129
      %p131 = scmp.ne.s32.totalorder %s123, %s126
      %p132 = scmp.eq.s32.totalorder %s10, 0
      %p133 = por %p131, %p132
      %p134 = scmp.ne.s32.totalorder %s123, %s126
      %p135 = scmp.eq.s32.totalorder %s15, 2
      %p136 = por %p134, %p135
      %p137 = scmp.ne.s32.totalorder %s126, %s127
      %p138 = scmp.eq.s32.totalorder %s15, 0
      %p139 = por %p137, %p138
      %p140 = scmp.ne.s32.totalorder %s126, %s127
      %p141 = scmp.eq.s32.totalorder %s16, 2
      %p142 = por %p140, %p141
      %p144 = scmp.ne.s32.totalorder %s127, %s143
      %p145 = scmp.eq.s32.totalorder %s16, 0
      %p146 = por %p144, %p145
      %p147 = scmp.le.s32.totalorder 1, %s10
      %p148 = scmp.lt.s32.totalorder %s10, 4
      %p149 = pnand %p147, %p148
      %p150 = pneg %p149
      // Predicated region
      $region9: #{patch_conv_encoder_forward.15} parent=5 // pred_check
        _
      $region10: #{patch_conv_encoder_forward.15} parent=5 // pred_check_branch
        %152 = sbr.rel (%p149) target = $region12
      $region11: #{patch_conv_encoder_forward.15} parent=5 // pred_region
        %s153 = ssub.s32 %s10, 1
        // Predicated region
        $region13: #{patch_conv_encoder_forward.15} parent=11 // pred_check
          %p154 = pneg %p111
        $region14: #{patch_conv_encoder_forward.15} parent=11 // pred_check_branch
          %156 = sbr.rel (%p154) target = $region16
        $region15: #{patch_conv_encoder_forward.15} parent=11 // pred_region
          %p157 = scmp.lt.s32.totalorder %s21, 0
          %s158 = scalar_select %p157, %s21, 0
          %s159 = scalar_lea.vmem %s2, %s158
        $region16: #{patch_conv_encoder_forward.15} parent=11 // pred_fallthru
          _
      $region12: #{patch_conv_encoder_forward.15} parent=5 // pred_fallthru
        _
      %p160 = scmp.lt.s32.totalorder %s10, 3
      // Predicated region
      $region17: #{patch_conv_encoder_forward.15} parent=5 // pred_check
        %p161 = pneg %p160
      $region18: #{patch_conv_encoder_forward.15} parent=5 // pred_check_branch
        %163 = sbr.rel (%p161) target = $region20
      $region19: #{patch_conv_encoder_forward.15} parent=5 // pred_region
        // Predicated region
        $region21: #{patch_conv_encoder_forward.15} parent=19 // pred_check
          %p164 = pneg %p51
        $region22: #{patch_conv_encoder_forward.15} parent=19 // pred_check_branch
          %166 = sbr.rel (%p164) target = $region24
        $region23: #{patch_conv_encoder_forward.15} parent=19 // pred_region
          %s167 = smul.u32 6, %s19
          %p168 = scmp.lt.s32.totalorder %s17, 0
          %s169 = scalar_select %p168, %s17, 0
          %p170 = scmp.lt.s32.totalorder %s167, 17
          %s171 = scalar_select %p170, %s167, 17
          %s172 = smul.addr %s169, 18
          %s173 = sadd.s32 %s171, %s172
          %s174 = smul.addr %s173, 4
          %s175 = scalar_lea.vmem %s0, %s174
          %s176 = smul.u32 6, %s19
        $region24: #{patch_conv_encoder_forward.15} parent=19 // pred_fallthru
          _
        // Predicated region
        $region25: #{patch_conv_encoder_forward.15} parent=19 // pred_check
          %p177 = pneg %p79
        $region26: #{patch_conv_encoder_forward.15} parent=19 // pred_check_branch
          %179 = sbr.rel (%p177) target = $region28
        $region27: #{patch_conv_encoder_forward.15} parent=19 // pred_region
          %s180 = smul.u32 96, %s19
          %p181 = scmp.lt.s32.totalorder %s180, 287
          %s182 = scalar_select %p181, %s180, 287
          %p183 = scmp.lt.s32.totalorder %s18, 0
          %s184 = scalar_select %p183, %s18, 0
          %s185 = sadd.s32 %s184, %s182
          %s186 = smul.addr %s185, 4
          %s187 = scalar_lea.vmem %s1, %s186
          %s188 = smul.u32 96, %s19
        $region28: #{patch_conv_encoder_forward.15} parent=19 // pred_fallthru
          _
      $region20: #{patch_conv_encoder_forward.15} parent=5 // pred_fallthru
        _
      %p189 = scmp.le.s32.totalorder 1, %s10
      %p190 = scmp.lt.s32.totalorder %s10, 4
      %p191 = pnand %p189, %p190
      %p192 = pneg %p191
      // Predicated region
      $region29: #{patch_conv_encoder_forward.15} parent=5 // pred_check
        _
      $region30: #{patch_conv_encoder_forward.15} parent=5 // pred_check_branch
        %194 = sbr.rel (%p191) target = $region32
      $region31: #{patch_conv_encoder_forward.15} parent=5 // pred_region
        %s195 = ssub.s32 %s10, 1
        %s196 = smul.u32 6, %s22
        %p197 = scmp.lt.s32.totalorder %s20, 0
        %s198 = scalar_select %p197, %s20, 0
        %p199 = scmp.lt.s32.totalorder %s196, 17
        %s200 = scalar_select %p199, %s196, 17
        %s201 = smul.addr %s198, 18
        %s202 = sadd.s32 %s200, %s201
        %s203 = smul.addr %s202, 4
        %s204 = scalar_lea.vmem %s0, %s203
        %p205 = pneg %p57
        %p206 = pneg %p54
        %s207 = smul.u32 96, %s22
        %p208 = scmp.lt.s32.totalorder %s207, 287
        %s209 = scalar_select %p208, %s207, 287
        %p210 = scmp.lt.s32.totalorder %s21, 0
        %s211 = scalar_select %p210, %s21, 0
        %s212 = sadd.s32 %s211, %s209
        %s213 = smul.addr %s212, 4
        %s214 = scalar_lea.vmem %s1, %s213
        %p215 = pneg %p85
        %p216 = pneg %p82
        %p217 = scmp.lt.s32.totalorder %s21, 0
        %s218 = scalar_select %p217, %s21, 0
        %s219 = scalar_lea.vmem %s2, %s218
        %p220 = pneg %p111
        %p221 = pneg %p108
        %p222 = pneg %p139
        %p223 = pneg %p136
        %s224 = smul.u32 6, %s22
        %p225 = scmp.lt.s32.totalorder %s20, 0
        %s226 = scalar_select %p225, %s20, 0
        %p227 = scmp.lt.s32.totalorder %s224, 17
        %s228 = scalar_select %p227, %s224, 17
        %s229 = smul.addr %s226, 18
        %s230 = sadd.s32 %s228, %s229
        %s231 = smul.addr %s230, 4
        %s232 = scalar_lea.vmem %s0, %s231
        %s233 = smul.u32 6, %s22
        %s234 = smul.u32 96, %s22
        %p235 = scmp.lt.s32.totalorder %s234, 287
        %s236 = scalar_select %p235, %s234, 287
        %p237 = scmp.lt.s32.totalorder %s21, 0
        %s238 = scalar_select %p237, %s21, 0
        %s239 = sadd.s32 %s238, %s236
        %s240 = smul.addr %s239, 4
        %s241 = scalar_lea.vmem %s1, %s240
        %s242 = smul.u32 96, %s22
        %p243 = scmp.lt.s32.totalorder %s21, 0
        %s244 = scalar_select %p243, %s21, 0
        %s245 = scalar_lea.vmem %s2, %s244
        %p247 = scmp.eq.s32.totalorder %s22, 0
        // Predicated region
        $region33: #{patch_conv_encoder_forward.15} parent=31 // pred_check
          %p248 = pneg %p247
        $region34: #{patch_conv_encoder_forward.15} parent=31 // pred_check_branch
          %250 = sbr.rel (%p248) target = $region36
        $region35: #{patch_conv_encoder_forward.15} parent=31 // pred_region
          %vm251 = vcmask 261120
          %252 = vst.msk [vmem:[#allocation2] sm:$0xff] %vm251, 0.0
        $region36: #{patch_conv_encoder_forward.15} parent=31 // pred_fallthru
          _
        %v253 = vld [vmem:[#allocation2] sm:$0xff]
        %v254 = vld [vmem:[%s232] sm:$0xff]
        %v255 = vld [vmem:[%s232 + $0x8] sm:$0xff]
        %v256 = vld [vmem:[%s232 + $0x10] sm:$0xff]
        %v257 = vld [vmem:[%s241] sm:$0xf]
        %v258 = vld [vmem:[%s241 + $0x4] sm:$0xf]
        %v259 = vld [vmem:[%s241 + $0x8] sm:$0xf]
        %v260 = vld [vmem:[%s241 + $0xc] sm:$0xf]
        %v261 = vld [vmem:[%s241 + $0x10] sm:$0xf]
        %v262 = vld [vmem:[%s241 + $0x14] sm:$0xf]
        %v263 = vld [vmem:[%s241 + $0x18] sm:$0xf]
        %v264 = vld [vmem:[%s241 + $0x1c] sm:$0xf]
        %v265 = vld [vmem:[%s241 + $0x20] sm:$0xf]
        %v266 = vld [vmem:[%s241 + $0x24] sm:$0xf]
        %v267 = vld [vmem:[%s241 + $0x28] sm:$0xf]
        %v268 = vld [vmem:[%s241 + $0x2c] sm:$0xf]
        %v269 = vld [vmem:[%s241 + $0x30] sm:$0xf]
        %v270 = vld [vmem:[%s241 + $0x34] sm:$0xf]
        %v271 = vld [vmem:[%s241 + $0x38] sm:$0xf]
        %v272 = vld [vmem:[%s241 + $0x3c] sm:$0xf]
        %v273 = vld [vmem:[%s241 + $0x40] sm:$0xf]
        %v274 = vld [vmem:[%s241 + $0x44] sm:$0xf]
        %v275 = vld [vmem:[%s241 + $0x48] sm:$0xf]
        %v276 = vld [vmem:[%s241 + $0x4c] sm:$0xf]
        %v277 = vld [vmem:[%s241 + $0x50] sm:$0xf]
        %v278 = vld [vmem:[%s241 + $0x54] sm:$0xf]
        %v279 = vld [vmem:[%s241 + $0x58] sm:$0xf]
        %v280 = vld [vmem:[%s241 + $0x5c] sm:$0xf]
        %v281 = vld [vmem:[%s241 + $0x60] sm:$0xf]
        %v282 = vld [vmem:[%s241 + $0x64] sm:$0xf]
        %v283 = vld [vmem:[%s241 + $0x68] sm:$0xf]
        %v284 = vld [vmem:[%s241 + $0x6c] sm:$0xf]
        %v285 = vld [vmem:[%s241 + $0x70] sm:$0xf]
        %v286 = vld [vmem:[%s241 + $0x74] sm:$0xf]
        %v287 = vld [vmem:[%s241 + $0x78] sm:$0xf]
        %v288 = vld [vmem:[%s241 + $0x7c] sm:$0xf]
        %v289 = vld [vmem:[%s241 + $0x80] sm:$0xf]
        %v290 = vld [vmem:[%s241 + $0x84] sm:$0xf]
        %v291 = vld [vmem:[%s241 + $0x88] sm:$0xf]
        %v292 = vld [vmem:[%s241 + $0x8c] sm:$0xf]
        %v293 = vld [vmem:[%s241 + $0x90] sm:$0xf]
        %v294 = vld [vmem:[%s241 + $0x94] sm:$0xf]
        %v295 = vld [vmem:[%s241 + $0x98] sm:$0xf]
        %v296 = vld [vmem:[%s241 + $0x9c] sm:$0xf]
        %v297 = vld [vmem:[%s241 + $0xa0] sm:$0xf]
        %v298 = vld [vmem:[%s241 + $0xa4] sm:$0xf]
        %v299 = vld [vmem:[%s241 + $0xa8] sm:$0xf]
        %v300 = vld [vmem:[%s241 + $0xac] sm:$0xf]
        %v301 = vld [vmem:[%s241 + $0xb0] sm:$0xf]
        %v302 = vld [vmem:[%s241 + $0xb4] sm:$0xf]
        %v303 = vld [vmem:[%s241 + $0xb8] sm:$0xf]
        %v304 = vld [vmem:[%s241 + $0xbc] sm:$0xf]
        %v305 = vld [vmem:[%s241 + $0xc0] sm:$0xf]
        %v306 = vld [vmem:[%s241 + $0xc4] sm:$0xf]
        %v307 = vld [vmem:[%s241 + $0xc8] sm:$0xf]
        %v308 = vld [vmem:[%s241 + $0xcc] sm:$0xf]
        %v309 = vld [vmem:[%s241 + $0xd0] sm:$0xf]
        %v310 = vld [vmem:[%s241 + $0xd4] sm:$0xf]
        %v311 = vld [vmem:[%s241 + $0xd8] sm:$0xf]
        %v312 = vld [vmem:[%s241 + $0xdc] sm:$0xf]
        %v313 = vld [vmem:[%s241 + $0xe0] sm:$0xf]
        %v314 = vld [vmem:[%s241 + $0xe4] sm:$0xf]
        %v315 = vld [vmem:[%s241 + $0xe8] sm:$0xf]
        %v316 = vld [vmem:[%s241 + $0xec] sm:$0xf]
        %v317 = vld [vmem:[%s241 + $0xf0] sm:$0xf]
        %v318 = vld [vmem:[%s241 + $0xf4] sm:$0xf]
        %v319 = vld [vmem:[%s241 + $0xf8] sm:$0xf]
        %v320 = vld [vmem:[%s241 + $0xfc] sm:$0xf]
        %v321 = vld [vmem:[%s241 + $0x100] sm:$0xf]
        %v322 = vld [vmem:[%s241 + $0x104] sm:$0xf]
        %v323 = vld [vmem:[%s241 + $0x108] sm:$0xf]
        %v324 = vld [vmem:[%s241 + $0x10c] sm:$0xf]
        %v325 = vld [vmem:[%s241 + $0x110] sm:$0xf]
        %v326 = vld [vmem:[%s241 + $0x114] sm:$0xf]
        %v327 = vld [vmem:[%s241 + $0x118] sm:$0xf]
        %v328 = vld [vmem:[%s241 + $0x11c] sm:$0xf]
        %v329 = vld [vmem:[%s241 + $0x120] sm:$0xf]
        %v330 = vld [vmem:[%s241 + $0x124] sm:$0xf]
        %v331 = vld [vmem:[%s241 + $0x128] sm:$0xf]
        %v332 = vld [vmem:[%s241 + $0x12c] sm:$0xf]
        %v333 = vld [vmem:[%s241 + $0x130] sm:$0xf]
        %v334 = vld [vmem:[%s241 + $0x134] sm:$0xf]
        %v335 = vld [vmem:[%s241 + $0x138] sm:$0xf]
        %v336 = vld [vmem:[%s241 + $0x13c] sm:$0xf]
        %v337 = vld [vmem:[%s241 + $0x140] sm:$0xf]
        %v338 = vld [vmem:[%s241 + $0x144] sm:$0xf]
        %v339 = vld [vmem:[%s241 + $0x148] sm:$0xf]
        %v340 = vld [vmem:[%s241 + $0x14c] sm:$0xf]
        %v341 = vld [vmem:[%s241 + $0x150] sm:$0xf]
        %v342 = vld [vmem:[%s241 + $0x154] sm:$0xf]
        %v343 = vld [vmem:[%s241 + $0x158] sm:$0xf]
        %v344 = vld [vmem:[%s241 + $0x15c] sm:$0xf]
        %v345 = vld [vmem:[%s241 + $0x160] sm:$0xf]
        %v346 = vld [vmem:[%s241 + $0x164] sm:$0xf]
        %v347 = vld [vmem:[%s241 + $0x168] sm:$0xf]
        %v348 = vld [vmem:[%s241 + $0x16c] sm:$0xf]
        %v349 = vld [vmem:[%s241 + $0x170] sm:$0xf]
        %v350 = vld [vmem:[%s241 + $0x174] sm:$0xf]
        %v351 = vld [vmem:[%s241 + $0x178] sm:$0xf]
        %v352 = vld [vmem:[%s241 + $0x17c] sm:$0xf]
        %v356 = vunpack.c.l.b16 %v254
        %v357 = vunpack.c.h.b16 %v254
        %v358 = vunpack.c.l.b16 %v255
        %v359 = vunpack.c.h.b16 %v255
        %v360 = vunpack.c.l.b16 %v256
        %v361 = vunpack.c.h.b16 %v256
        %v362 = vpack.c.b16 %v356, %v356
        %v363 = vpack.c.b16 %v357, %v357
        %v364 = vpack.c.b16 %v358, %v358
        %v365 = vpack.c.b16 %v359, %v359
        %v366 = vpack.c.b16 %v360, %v360
        %v367 = vpack.c.b16 %v361, %v361
        %v470 = vunpack.c.l.b16 %v257
        %v471 = vunpack.c.l.b16 %v258
        %v472 = vunpack.c.l.b16 %v259
        %v473 = vunpack.c.l.b16 %v260
        %v474 = vunpack.c.l.b16 %v261
        %v475 = vunpack.c.l.b16 %v262
        %v476 = vunpack.c.l.b16 %v263
        %v477 = vunpack.c.l.b16 %v264
        %v478 = vunpack.c.l.b16 %v265
        %v479 = vunpack.c.l.b16 %v266
        %v480 = vunpack.c.l.b16 %v267
        %v481 = vunpack.c.l.b16 %v268
        %v482 = vunpack.c.l.b16 %v269
        %v483 = vunpack.c.l.b16 %v270
        %v484 = vunpack.c.l.b16 %v271
        %v485 = vunpack.c.l.b16 %v272
        %v486 = vunpack.c.l.b16 %v273
        %v487 = vunpack.c.l.b16 %v274
        %v488 = vunpack.c.l.b16 %v275
        %v489 = vunpack.c.l.b16 %v276
        %v490 = vunpack.c.l.b16 %v277
        %v491 = vunpack.c.l.b16 %v278
        %v492 = vunpack.c.l.b16 %v279
        %v493 = vunpack.c.l.b16 %v280
        %v494 = vunpack.c.l.b16 %v281
        %v495 = vunpack.c.l.b16 %v282
        %v496 = vunpack.c.l.b16 %v283
        %v497 = vunpack.c.l.b16 %v284
        %v498 = vunpack.c.l.b16 %v285
        %v499 = vunpack.c.l.b16 %v286
        %v500 = vunpack.c.l.b16 %v287
        %v501 = vunpack.c.l.b16 %v288
        %v502 = vunpack.c.l.b16 %v289
        %v503 = vunpack.c.l.b16 %v290
        %v504 = vunpack.c.l.b16 %v291
        %v505 = vunpack.c.l.b16 %v292
        %v506 = vunpack.c.l.b16 %v293
        %v507 = vunpack.c.l.b16 %v294
        %v508 = vunpack.c.l.b16 %v295
        %v509 = vunpack.c.l.b16 %v296
        %v510 = vunpack.c.l.b16 %v297
        %v511 = vunpack.c.l.b16 %v298
        %v512 = vunpack.c.l.b16 %v299
        %v513 = vunpack.c.l.b16 %v300
        %v514 = vunpack.c.l.b16 %v301
        %v515 = vunpack.c.l.b16 %v302
        %v516 = vunpack.c.l.b16 %v303
        %v517 = vunpack.c.l.b16 %v304
        %v518 = vunpack.c.l.b16 %v305
        %v519 = vunpack.c.l.b16 %v306
        %v520 = vunpack.c.l.b16 %v307
        %v521 = vunpack.c.l.b16 %v308
        %v522 = vunpack.c.l.b16 %v309
        %v523 = vunpack.c.l.b16 %v310
        %v524 = vunpack.c.l.b16 %v311
        %v525 = vunpack.c.l.b16 %v312
        %v526 = vunpack.c.l.b16 %v313
        %v527 = vunpack.c.l.b16 %v314
        %v528 = vunpack.c.l.b16 %v315
        %v529 = vunpack.c.l.b16 %v316
        %v530 = vunpack.c.l.b16 %v317
        %v531 = vunpack.c.l.b16 %v318
        %v532 = vunpack.c.l.b16 %v319
        %v533 = vunpack.c.l.b16 %v320
        %v534 = vunpack.c.l.b16 %v321
        %v535 = vunpack.c.l.b16 %v322
        %v536 = vunpack.c.l.b16 %v323
        %v537 = vunpack.c.l.b16 %v324
        %v538 = vunpack.c.l.b16 %v325
        %v539 = vunpack.c.l.b16 %v326
        %v540 = vunpack.c.l.b16 %v327
        %v541 = vunpack.c.l.b16 %v328
        %v542 = vunpack.c.l.b16 %v329
        %v543 = vunpack.c.l.b16 %v330
        %v544 = vunpack.c.l.b16 %v331
        %v545 = vunpack.c.l.b16 %v332
        %v546 = vunpack.c.l.b16 %v333
        %v547 = vunpack.c.l.b16 %v334
        %v548 = vunpack.c.l.b16 %v335
        %v549 = vunpack.c.l.b16 %v336
        %v550 = vunpack.c.l.b16 %v337
        %v551 = vunpack.c.l.b16 %v338
        %v552 = vunpack.c.l.b16 %v339
        %v553 = vunpack.c.l.b16 %v340
        %v554 = vunpack.c.l.b16 %v341
        %v555 = vunpack.c.l.b16 %v342
        %v556 = vunpack.c.l.b16 %v343
        %v557 = vunpack.c.l.b16 %v344
        %v558 = vunpack.c.l.b16 %v345
        %v559 = vunpack.c.l.b16 %v346
        %v560 = vunpack.c.l.b16 %v347
        %v561 = vunpack.c.l.b16 %v348
        %v562 = vunpack.c.l.b16 %v349
        %v563 = vunpack.c.l.b16 %v350
        %v564 = vunpack.c.l.b16 %v351
        %v565 = vunpack.c.l.b16 %v352
        %v566 = vpack.c.b16 %v471, %v470
        %v567 = vpack.c.b16 %v473, %v472
        %v568 = vpack.c.b16 %v475, %v474
        %v569 = vpack.c.b16 %v477, %v476
        %v570 = vpack.c.b16 %v479, %v478
        %v571 = vpack.c.b16 %v481, %v480
        %v572 = vpack.c.b16 %v483, %v482
        %v573 = vpack.c.b16 %v485, %v484
        %v574 = vpack.c.b16 %v487, %v486
        %v575 = vpack.c.b16 %v489, %v488
        %v576 = vpack.c.b16 %v491, %v490
        %v577 = vpack.c.b16 %v493, %v492
        %v578 = vpack.c.b16 %v495, %v494
        %v579 = vpack.c.b16 %v497, %v496
        %v580 = vpack.c.b16 %v499, %v498
        %v581 = vpack.c.b16 %v501, %v500
        %v582 = vpack.c.b16 %v503, %v502
        %v583 = vpack.c.b16 %v505, %v504
        %v584 = vpack.c.b16 %v507, %v506
        %v585 = vpack.c.b16 %v509, %v508
        %v586 = vpack.c.b16 %v511, %v510
        %v587 = vpack.c.b16 %v513, %v512
        %v588 = vpack.c.b16 %v515, %v514
        %v589 = vpack.c.b16 %v517, %v516
        %v590 = vpack.c.b16 %v519, %v518
        %v591 = vpack.c.b16 %v521, %v520
        %v592 = vpack.c.b16 %v523, %v522
        %v593 = vpack.c.b16 %v525, %v524
        %v594 = vpack.c.b16 %v527, %v526
        %v595 = vpack.c.b16 %v529, %v528
        %v596 = vpack.c.b16 %v531, %v530
        %v597 = vpack.c.b16 %v533, %v532
        %v598 = vpack.c.b16 %v535, %v534
        %v599 = vpack.c.b16 %v537, %v536
        %v600 = vpack.c.b16 %v539, %v538
        %v601 = vpack.c.b16 %v541, %v540
        %v602 = vpack.c.b16 %v543, %v542
        %v603 = vpack.c.b16 %v545, %v544
        %v604 = vpack.c.b16 %v547, %v546
        %v605 = vpack.c.b16 %v549, %v548
        %v606 = vpack.c.b16 %v551, %v550
        %v607 = vpack.c.b16 %v553, %v552
        %v608 = vpack.c.b16 %v555, %v554
        %v609 = vpack.c.b16 %v557, %v556
        %v610 = vpack.c.b16 %v559, %v558
        %v611 = vpack.c.b16 %v561, %v560
        %v612 = vpack.c.b16 %v563, %v562
        %v613 = vpack.c.b16 %v565, %v564
        %662 = vmatprep.subr.bf16.mxu0 0
        %663 = vmatpush1.bf16.msra.mxu0 %v573
        %664 = vmatprep.subr.bf16.mxu0 0
        %665 = vmatpush1.bf16.msra.mxu0 %v572
        %666 = vmatprep.subr.bf16.mxu0 0
        %667 = vmatpush1.bf16.msra.mxu0 %v571
        %668 = vmatprep.subr.bf16.mxu0 0
        %669 = vmatpush1.bf16.msra.mxu0 %v570
        %670 = vmatprep.subr.bf16.mxu0 0
        %671 = vmatpush1.bf16.msra.mxu0 %v569
        %672 = vmatprep.subr.bf16.mxu0 0
        %673 = vmatpush1.bf16.msra.mxu0 %v568
        %674 = vmatprep.subr.bf16.mxu0 0
        %675 = vmatpush1.bf16.msra.mxu0 %v567
        %676 = vmatprep.subr.bf16.mxu0 0
        %677 = vmatpush1.bf16.msra.mxu0 %v566
        %678 = vmatprep.subr.bf16.mxu0 0
        %679 = vmatpush2.bf16.msra.mxu0 %v581
        %680 = vmatprep.subr.bf16.mxu0 0
        %681 = vmatpush2.bf16.msra.mxu0 %v580
        %682 = vmatprep.subr.bf16.mxu0 0
        %683 = vmatpush2.bf16.msra.mxu0 %v579
        %684 = vmatprep.subr.bf16.mxu0 0
        %685 = vmatpush2.bf16.msra.mxu0 %v578
        %686 = vmatprep.subr.bf16.mxu0 0
        %687 = vmatpush2.bf16.msra.mxu0 %v577
        %688 = vmatprep.subr.bf16.mxu0 0
        %689 = vmatpush2.bf16.msra.mxu0 %v576
        %690 = vmatprep.subr.bf16.mxu0 0
        %691 = vmatpush2.bf16.msra.mxu0 %v575
        %692 = vmatprep.subr.bf16.mxu0 0
        %693 = vmatpush2.bf16.msra.mxu0 %v574
        %694 = vmatprep.mubr.bf16.mxu0 %v363
        %695 = vmatmul.mubr.bf16.gmra.mxu0 %v362
        %v696 = vpop.f32.mrf.mxu0
        %v697 = vadd.f32 0.0, %v696
        %v698 = vpop.f32.mrf.mxu0
        %v699 = vpop.f32.mrf.mxu0
        %v700 = vpop.f32.mrf.mxu0
        %701 = vdwg.mxu0
        %702 = vmatprep.subr.bf16.mxu0 0
        %703 = vmatpush1.bf16.msra.mxu0 %v589
        %704 = vmatprep.subr.bf16.mxu0 0
        %705 = vmatpush1.bf16.msra.mxu0 %v588
        %706 = vmatprep.subr.bf16.mxu0 0
        %707 = vmatpush1.bf16.msra.mxu0 %v587
        %708 = vmatprep.subr.bf16.mxu0 0
        %709 = vmatpush1.bf16.msra.mxu0 %v586
        %710 = vmatprep.subr.bf16.mxu0 0
        %711 = vmatpush1.bf16.msra.mxu0 %v585
        %712 = vmatprep.subr.bf16.mxu0 0
        %713 = vmatpush1.bf16.msra.mxu0 %v584
        %714 = vmatprep.subr.bf16.mxu0 0
        %715 = vmatpush1.bf16.msra.mxu0 %v583
        %716 = vmatprep.subr.bf16.mxu0 0
        %717 = vmatpush1.bf16.msra.mxu0 %v582
        %718 = vmatprep.subr.bf16.mxu0 0
        %719 = vmatpush2.bf16.msra.mxu0 %v597
        %720 = vmatprep.subr.bf16.mxu0 0
        %721 = vmatpush2.bf16.msra.mxu0 %v596
        %722 = vmatprep.subr.bf16.mxu0 0
        %723 = vmatpush2.bf16.msra.mxu0 %v595
        %724 = vmatprep.subr.bf16.mxu0 0
        %725 = vmatpush2.bf16.msra.mxu0 %v594
        %726 = vmatprep.subr.bf16.mxu0 0
        %727 = vmatpush2.bf16.msra.mxu0 %v593
        %728 = vmatprep.subr.bf16.mxu0 0
        %729 = vmatpush2.bf16.msra.mxu0 %v592
        %730 = vmatprep.subr.bf16.mxu0 0
        %731 = vmatpush2.bf16.msra.mxu0 %v591
        %732 = vmatprep.subr.bf16.mxu0 0
        %733 = vmatpush2.bf16.msra.mxu0 %v590
        %734 = vmatprep.mubr.bf16.mxu0 %v365
        %735 = vmatmul.mubr.bf16.gmra.mxu0 %v364
        %v736 = vpop.f32.mrf.mxu0
        %v737 = vadd.f32 %v697, %v736
        %v738 = vpop.f32.mrf.mxu0
        %v739 = vpop.f32.mrf.mxu0
        %v740 = vpop.f32.mrf.mxu0
        %741 = vdwg.mxu0
        %742 = vmatprep.subr.bf16.mxu0 0
        %743 = vmatpush1.bf16.msra.mxu0 %v605
        %744 = vmatprep.subr.bf16.mxu0 0
        %745 = vmatpush1.bf16.msra.mxu0 %v604
        %746 = vmatprep.subr.bf16.mxu0 0
        %747 = vmatpush1.bf16.msra.mxu0 %v603
        %748 = vmatprep.subr.bf16.mxu0 0
        %749 = vmatpush1.bf16.msra.mxu0 %v602
        %750 = vmatprep.subr.bf16.mxu0 0
        %751 = vmatpush1.bf16.msra.mxu0 %v601
        %752 = vmatprep.subr.bf16.mxu0 0
        %753 = vmatpush1.bf16.msra.mxu0 %v600
        %754 = vmatprep.subr.bf16.mxu0 0
        %755 = vmatpush1.bf16.msra.mxu0 %v599
        %756 = vmatprep.subr.bf16.mxu0 0
        %757 = vmatpush1.bf16.msra.mxu0 %v598
        %758 = vmatprep.subr.bf16.mxu0 0
        %759 = vmatpush2.bf16.msra.mxu0 %v613
        %760 = vmatprep.subr.bf16.mxu0 0
        %761 = vmatpush2.bf16.msra.mxu0 %v612
        %762 = vmatprep.subr.bf16.mxu0 0
        %763 = vmatpush2.bf16.msra.mxu0 %v611
        %764 = vmatprep.subr.bf16.mxu0 0
        %765 = vmatpush2.bf16.msra.mxu0 %v610
        %766 = vmatprep.subr.bf16.mxu0 0
        %767 = vmatpush2.bf16.msra.mxu0 %v609
        %768 = vmatprep.subr.bf16.mxu0 0
        %769 = vmatpush2.bf16.msra.mxu0 %v608
        %770 = vmatprep.subr.bf16.mxu0 0
        %771 = vmatpush2.bf16.msra.mxu0 %v607
        %772 = vmatprep.subr.bf16.mxu0 0
        %773 = vmatpush2.bf16.msra.mxu0 %v606
        %774 = vmatprep.mubr.bf16.mxu0 %v367
        %775 = vmatmul.mubr.bf16.gmra.mxu0 %v366
        %v776 = vpop.f32.mrf.mxu0
        %v777 = vadd.f32 %v737, %v776
        %v778 = vpop.f32.mrf.mxu0
        %v779 = vpop.f32.mrf.mxu0
        %v780 = vpop.f32.mrf.mxu0
        %781 = vdwg.mxu0
        %v782 = vadd.f32 %v253, %v777
        %vm783 = vcmask 261120
        %784 = vst.msk [vmem:[#allocation2] sm:$0xff] %vm783, %v782
        %p785 = scmp.eq.s32.totalorder %s22, 2
        // Predicated region
        $region37: #{patch_conv_encoder_forward.15} parent=31 // pred_check
          %p786 = pneg %p785
        $region38: #{patch_conv_encoder_forward.15} parent=31 // pred_check_branch
          %788 = sbr.rel (%p786) target = $region40
        $region39: #{patch_conv_encoder_forward.15} parent=31 // pred_region
          %v789 = vld [vmem:[#allocation2] sm:$0xff]
          %v790 = vld [vmem:[%s245] sm:$0x1]
          %v792 = vlaneseq
          %v793 = vshrl.u32 %v792, 7
          %v794 = vsub.s32 0, %v793
          %v795 = vrot.slane %v790, %v794
          %v797 = vadd.f32 %v789, %v795
          %v798 = vmax.f32 %v797, 0.0
          %799 = vst.msk [vmem:[#allocation3] sm:$0xff] %vm783, %v798
        $region40: #{patch_conv_encoder_forward.15} parent=31 // pred_fallthru
          _
        // Predicated region
        $region41: #{patch_conv_encoder_forward.15} parent=31 // pred_check
          %p800 = pneg %p136
        $region42: #{patch_conv_encoder_forward.15} parent=31 // pred_check_branch
          %802 = sbr.rel (%p800) target = $region44
        $region43: #{patch_conv_encoder_forward.15} parent=31 // pred_region
          %s804 = ssub.s32 128, 128
          %805 = vsyncadd [#allocation4], %s804
          %s806 = sadd.s32 %s21, %s20
          %s807 = smul.addr %s806, 128
          %s808 = scalar_lea.hbm %s3, %s807
          %s810 = sshll.u32 [#allocation3], 4
          %s811 = int_to_ptr.vmem [resolvable:$true] %s810
          %813 = dma.vmem_to_hbm [thread:$0]  %s811, 128, %s808, [#allocation4]
        $region44: #{patch_conv_encoder_forward.15} parent=31 // pred_fallthru
          _
        // Predicated region
        $region45: #{patch_conv_encoder_forward.15} parent=31 // pred_check
          %p814 = pneg %p136
        $region46: #{patch_conv_encoder_forward.15} parent=31 // pred_check_branch
          %816 = sbr.rel (%p814) target = $region48
        $region47: #{patch_conv_encoder_forward.15} parent=31 // pred_region
          %817 = dma.done [#allocation4], 128
        $region48: #{patch_conv_encoder_forward.15} parent=31 // pred_fallthru
          _
      $region32: #{patch_conv_encoder_forward.15} parent=5 // pred_fallthru
        _
      %p818 = scmp.le.s32.totalorder 2, %s10
      // Predicated region
      $region49: #{patch_conv_encoder_forward.15} parent=5 // pred_check
        %p819 = pneg %p818
      $region50: #{patch_conv_encoder_forward.15} parent=5 // pred_check_branch
        %821 = sbr.rel (%p819) target = $region52
      $region51: #{patch_conv_encoder_forward.15} parent=5 // pred_region
        %s822 = ssub.s32 %s10, 2
      $region52: #{patch_conv_encoder_forward.15} parent=5 // pred_fallthru
        _
    $region6: #{patch_conv_encoder_forward.15} parent=1 // loop_footer
      %s14 = sadd.s32 1, %s10
    $region7: #{patch_conv_encoder_forward.15} parent=1 // loop_footer_branch
      %9 = sbr.rel target = $region3
    $region8: #{patch_conv_encoder_forward.15} parent=1 // loop_exit
      _
    %823 = vsyncpa [#allocation4], 1
    %s824 = scalar_lea.sflag [#allocation4], 1
    %825 = vsyncpa %s824, 1

</llo_original>
